<compile_context>
chip_gen: v7x
topology: tpu7x:2x2x1
jax: 0.10.0
libtpu: 0.0.40
codegen_flags: <defaults>
</compile_context>

<pallas_src>
import numpy as np
import jax
import jax.numpy as jnp
from jax.experimental import pallas as pl
from jax.experimental.pallas import tpu as pltpu

NEG_SLOPE = 0.2
BN_EPS = 0.8  # nn.BatchNorm2d(out_filters, 0.8) -> 0.8 is eps (positional)

CONST_KEYS = ("w1", "b1", "s1",
              "g2", "w2", "b2", "s2",
              "g3", "w3", "b3", "s3",
              "g4", "w4", "b4", "s4",
              "fcw", "fcb")


# ------------------------------ Pallas kernel -------------------------------

def _bias_leaky_shift(u, b, s):
    # conv-out + bias (BN scale already folded in) -> LeakyReLU(0.2) -> +shift
    # Dropout2d(0.25) is identity in eval mode.
    # TODO(synk): training-mode Dropout2d (random channel masks) not reproduced.
    u = u + b
    y = jnp.where(u > 0.0, u, NEG_SLOPE * u)
    return y + s


def _disc_kernel(p_ref,
                 w1_ref, b1_ref, s1_ref,
                 g2_ref, w2_ref, b2_ref, s2_ref,
                 g3_ref, w3_ref, b3_ref, s3_ref,
                 g4_ref, w4_ref, b4_ref, s4_ref,
                 fcw_ref, fcb_ref,
                 o_ref):
    # ---- block 1: Conv(Cin->16) via host im2col patches, bias + LeakyReLU ----
    u = jnp.dot(p_ref[0], w1_ref[...], preferred_element_type=jnp.float32)
    y = _bias_leaky_shift(u, b1_ref[...], s1_ref[...])          # (HoWo, 16) f32

    # ---- blocks 2..4: in-kernel conv = 9 gather-matmul taps (VMEM resident) --
    for g_ref, w_ref, b_ref, s_ref in (
            (g2_ref, w2_ref, b2_ref, s2_ref),
            (g3_ref, w3_ref, b3_ref, s3_ref),
            (g4_ref, w4_ref, b4_ref, s4_ref)):
        yb = y.astype(jnp.bfloat16)
        acc = None
        for t in range(9):
            tap = jnp.dot(g_ref[t], yb,
                          preferred_element_type=jnp.float32).astype(jnp.bfloat16)
            d = jnp.dot(tap, w_ref[t], preferred_element_type=jnp.float32)
            acc = d if acc is None else acc + d
        y = _bias_leaky_shift(acc, b_ref[...], s_ref[...])

    # ---- head: Linear(128*ds*ds -> 1) as VPU mul + reduce, then Sigmoid ------
    a = y * fcw_ref[...]                         # (ds*ds, 128) f32
    z = jnp.sum(a, axis=1, keepdims=True)        # lane reduce  -> (ds*ds, 1)
    z = jnp.sum(z, axis=0, keepdims=True)        # sublane reduce -> (1, 1)
    z = z + fcb_ref[...]
    sig = pl.reciprocal(1.0 + jnp.exp(-z), approx=True)   # EUP path
    sig = jnp.clip(sig, 0.0, 1.0)                # guard approx-recip overshoot
    o_ref[0] = jnp.broadcast_to(sig, (1, 128))   # lane-dense output tile


# ------------------------------- host helpers -------------------------------

def _build_gather(h_in, w_in):
    """(9, Ho*Wo, H*W) 0/1 matrices: stride-2, pad-1, 3x3 shifted-window gather."""
    ho, wo = h_in // 2, w_in // 2
    g = np.zeros((9, ho * wo, h_in * w_in), np.float32)
    for kh in range(3):
        for kw in range(3):
            t = kh * 3 + kw
            for i in range(ho):
                r = 2 * i + kh - 1
                if not (0 <= r < h_in):
                    continue
                for j in range(wo):
                    c = 2 * j + kw - 1
                    if 0 <= c < w_in:
                        g[t, i * wo + j, r * w_in + c] = 1.0
    return jnp.asarray(g, jnp.bfloat16)


def _im2col_first(img_nchw):
    """Layer-1 im2col on the host (input is read from HBM once anyway)."""
    n, c, h, w = img_nchw.shape
    ho, wo = h // 2, w // 2
    x = jnp.transpose(img_nchw, (0, 2, 3, 1)).astype(jnp.float32)   # NHWC
    xp = jnp.pad(x, ((0, 0), (1, 1), (1, 1), (0, 0)))
    cols = []
    for kh in range(3):
        for kw in range(3):
            cols.append(xp[:, kh:kh + 2 * ho:2, kw:kw + 2 * wo:2, :])
    p = jnp.concatenate(cols, axis=-1)                               # (n,ho,wo,9c)
    return p.reshape(n, ho * wo, 9 * c).astype(jnp.bfloat16)


def discriminator_forward(img_nchw, params):
    patches = _im2col_first(img_nchw)            # (N, HoWo, 9*Cin) bf16
    n_im = patches.shape[0]
    consts = [params[k] for k in CONST_KEYS]

    def const_spec(a):
        nd = a.ndim
        return pl.BlockSpec(a.shape, lambda n, _nd=nd: (0,) * _nd)

    in_specs = [pl.BlockSpec((1,) + patches.shape[1:], lambda n: (n, 0, 0))]
    in_specs += [const_spec(c) for c in consts]

    # advisory cost estimate for the XLA scheduler
    flops = 2 * n_im * patches.shape[1] * patches.shape[2] * params["w1"].shape[1]
    for li in (2, 3, 4):
        t, mo, mi = params[f"g{li}"].shape
        _, ci, co = params[f"w{li}"].shape
        flops += n_im * t * 2 * (mo * mi * ci + mo * ci * co)
    flops += n_im * 2 * int(params["fcw"].size)
    bytes_accessed = sum(int(a.size) * a.dtype.itemsize
                         for a in [patches] + consts) + n_im * 128 * 4

    out = pl.pallas_call(
        _disc_kernel,
        out_shape=jax.ShapeDtypeStruct((n_im, 1, 128), jnp.float32),
        grid=(n_im,),
        in_specs=in_specs,
        out_specs=pl.BlockSpec((1, 1, 128), lambda n: (n, 0, 0)),
        compiler_params=pltpu.CompilerParams(
            dimension_semantics=("parallel",)),
        cost_estimate=pl.CostEstimate(flops=int(flops),
                                      transcendentals=int(n_im),
                                      bytes_accessed=int(bytes_accessed)),
    )(patches, *consts)
    return out[:, 0, :1]                         # (N, 1) validity


# ------------------------------ parameter init ------------------------------

def init_params(key, in_channels, img_size):
    chans = [in_channels, 16, 32, 64, 128]
    use_bn = [False, True, True, True]
    spat = [img_size // (2 ** i) for i in range(5)]     # e.g. [32,16,8,4,2]
    p = {}
    ws, bs, shifts = [], [], []
    for i in range(4):
        key, kw_, kb_ = jax.random.split(key, 3)
        cin, cout = chans[i], chans[i + 1]
        w_oihw = 0.05 * jax.random.normal(kw_, (cout, cin, 3, 3), jnp.float32)
        b = 0.05 * jax.random.normal(kb_, (cout,), jnp.float32)
        if use_bn[i]:
            # fresh BatchNorm2d (eval): gamma=1, beta=0, running stats (0, 1)
            gamma = jnp.ones((cout,), jnp.float32)
            beta = jnp.zeros((cout,), jnp.float32)
            rmean = jnp.zeros((cout,), jnp.float32)
            rvar = jnp.ones((cout,), jnp.float32)
            scale = gamma / jnp.sqrt(rvar + BN_EPS)
            shift = beta - rmean * scale
        else:
            scale = jnp.ones((cout,), jnp.float32)
            shift = jnp.zeros((cout,), jnp.float32)
        # fold BN scale through LeakyReLU into conv weight & bias (scale > 0)
        ws.append(w_oihw * scale[:, None, None, None])
        bs.append((b * scale).reshape(1, cout).astype(jnp.float32))
        shifts.append(shift.reshape(1, cout).astype(jnp.float32))

    # layer 1: im2col weight layout (kh,kw,ci) x cout
    p["w1"] = jnp.transpose(ws[0], (2, 3, 1, 0)).reshape(
        9 * chans[0], chans[1]).astype(jnp.bfloat16)
    p["b1"], p["s1"] = bs[0], shifts[0]

    # layers 2..4: per-tap weights (9, cin, cout) + per-image gather matrices
    for li in range(1, 4):
        cin, cout = chans[li], chans[li + 1]
        w_taps = jnp.transpose(ws[li], (2, 3, 1, 0)).reshape(
            9, cin, cout).astype(jnp.bfloat16)
        p[f"w{li + 1}"] = w_taps
        p[f"b{li + 1}"] = bs[li]
        p[f"s{li + 1}"] = shifts[li]
        p[f"g{li + 1}"] = _build_gather(spat[li], spat[li])

    # head: Linear(128*ds*ds -> 1); reorder weight from PyTorch NCHW-flatten
    # order (c*ds*ds + h*ds + w) into an (ds*ds, 128) lane-major matrix.
    ds = img_size // (2 ** 4)
    fin = 128 * ds * ds
    key, kw_, kb_ = jax.random.split(key, 3)
    fc_w = 0.05 * jax.random.normal(kw_, (fin, 1), jnp.float32)
    fc_b = 0.05 * jax.random.normal(kb_, (1,), jnp.float32)
    p["fcw"] = fc_w[:, 0].reshape(128, ds * ds).T.astype(jnp.float32)
    p["fcb"] = fc_b.reshape(1, 1).astype(jnp.float32)
    return p


# ----------------------------------- main ------------------------------------

if __name__ == "__main__":
    key = jax.random.PRNGKey(0)
    k_img, k_par = jax.random.split(key)

    batch, channels, img_size = 2, 3, 32     # opt.channels=3, opt.img_size=32
    img = jax.random.normal(k_img, (batch, channels, img_size, img_size),
                            jnp.float32)
    params = init_params(k_par, channels, img_size)

    fwd = jax.jit(discriminator_forward)
    validity = jax.block_until_ready(fwd(img, params))

    assert validity.shape == (batch, 1), validity.shape
    assert bool(jnp.all(jnp.isfinite(validity)))
    assert bool(jnp.all((validity >= 0.0) & (validity <= 1.0)))
    print("KERNEL_OK")
</pallas_src>

<mosaic_0001>
module attributes {stable_mosaic.version = 11 : i64} {
  func.func @_disc_kernel(%arg0: i32, %arg1: memref<1x256x27xbf16, #tpu.memory_space<vmem>>, %arg2: memref<27x16xbf16, #tpu.memory_space<vmem>>, %arg3: memref<1x16xf32, #tpu.memory_space<vmem>>, %arg4: memref<1x16xf32, #tpu.memory_space<vmem>>, %arg5: memref<9x64x256xbf16, #tpu.memory_space<vmem>>, %arg6: memref<9x16x32xbf16, #tpu.memory_space<vmem>>, %arg7: memref<1x32xf32, #tpu.memory_space<vmem>>, %arg8: memref<1x32xf32, #tpu.memory_space<vmem>>, %arg9: memref<9x16x64xbf16, #tpu.memory_space<vmem>>, %arg10: memref<9x32x64xbf16, #tpu.memory_space<vmem>>, %arg11: memref<1x64xf32, #tpu.memory_space<vmem>>, %arg12: memref<1x64xf32, #tpu.memory_space<vmem>>, %arg13: memref<9x4x16xbf16, #tpu.memory_space<vmem>>, %arg14: memref<9x64x128xbf16, #tpu.memory_space<vmem>>, %arg15: memref<1x128xf32, #tpu.memory_space<vmem>>, %arg16: memref<1x128xf32, #tpu.memory_space<vmem>>, %arg17: memref<4x128xf32, #tpu.memory_space<vmem>>, %arg18: memref<1x1xf32, #tpu.memory_space<vmem>>, %arg19: memref<1x1x128xf32, #tpu.memory_space<vmem>>) attributes {dimension_semantics = [#tpu.dimension_semantics<parallel>], iteration_bounds = array<i64: 2>, scalar_prefetch = 0 : i64, scratch_operands = 0 : i64, tpu.core_type = #tpu.core_type<tc>, window_params = [{transform_indices = @transform_0, window_bounds = array<i64: 1, 256, 27>}, {pipeline_mode = #tpu.pipeline_mode<synchronous>, transform_indices = @transform_1, window_bounds = array<i64: 27, 16>}, {pipeline_mode = #tpu.pipeline_mode<synchronous>, transform_indices = @transform_2, window_bounds = array<i64: 1, 16>}, {pipeline_mode = #tpu.pipeline_mode<synchronous>, transform_indices = @transform_3, window_bounds = array<i64: 1, 16>}, {pipeline_mode = #tpu.pipeline_mode<synchronous>, transform_indices = @transform_4, window_bounds = array<i64: 9, 64, 256>}, {pipeline_mode = #tpu.pipeline_mode<synchronous>, transform_indices = @transform_5, window_bounds = array<i64: 9, 16, 32>}, {pipeline_mode = #tpu.pipeline_mode<synchronous>, transform_indices = @transform_6, window_bounds = array<i64: 1, 32>}, {pipeline_mode = #tpu.pipeline_mode<synchronous>, transform_indices = @transform_7, window_bounds = array<i64: 1, 32>}, {pipeline_mode = #tpu.pipeline_mode<synchronous>, transform_indices = @transform_8, window_bounds = array<i64: 9, 16, 64>}, {pipeline_mode = #tpu.pipeline_mode<synchronous>, transform_indices = @transform_9, window_bounds = array<i64: 9, 32, 64>}, {pipeline_mode = #tpu.pipeline_mode<synchronous>, transform_indices = @transform_10, window_bounds = array<i64: 1, 64>}, {pipeline_mode = #tpu.pipeline_mode<synchronous>, transform_indices = @transform_11, window_bounds = array<i64: 1, 64>}, {pipeline_mode = #tpu.pipeline_mode<synchronous>, transform_indices = @transform_12, window_bounds = array<i64: 9, 4, 16>}, {pipeline_mode = #tpu.pipeline_mode<synchronous>, transform_indices = @transform_13, window_bounds = array<i64: 9, 64, 128>}, {pipeline_mode = #tpu.pipeline_mode<synchronous>, transform_indices = @transform_14, window_bounds = array<i64: 1, 128>}, {pipeline_mode = #tpu.pipeline_mode<synchronous>, transform_indices = @transform_15, window_bounds = array<i64: 1, 128>}, {pipeline_mode = #tpu.pipeline_mode<synchronous>, transform_indices = @transform_16, window_bounds = array<i64: 4, 128>}, {pipeline_mode = #tpu.pipeline_mode<synchronous>, transform_indices = @transform_17, window_bounds = array<i64: 1, 1>}, {transform_indices = @transform_18, window_bounds = array<i64: 1, 1, 128>}]} {
    %c0 = arith.constant 0 : index
    %c0_0 = arith.constant 0 : index
    %c0_1 = arith.constant 0 : index
    %0 = vector.load %arg1[%c0, %c0_0, %c0_1] : memref<1x256x27xbf16, #tpu.memory_space<vmem>>, vector<1x256x27xbf16>
    %1 = vector.shape_cast %0 : vector<1x256x27xbf16> to vector<256x27xbf16>
    %c0_2 = arith.constant 0 : index
    %c0_3 = arith.constant 0 : index
    %2 = vector.load %arg2[%c0_2, %c0_3] : memref<27x16xbf16, #tpu.memory_space<vmem>>, vector<27x16xbf16>
    %cst = arith.constant dense<0.000000e+00> : vector<256x16xf32>
    %3 = tpu.matmul %1, %2, %cst {dimension_numbers = #tpu.dot_dimension_numbers<[1], [0], [0], [1], [0, 0, 1, 1], [], []>} : vector<256x27xbf16>, vector<27x16xbf16>, vector<256x16xf32> -> vector<256x16xf32>
    %c0_4 = arith.constant 0 : index
    %c0_5 = arith.constant 0 : index
    %4 = vector.load %arg3[%c0_4, %c0_5] : memref<1x16xf32, #tpu.memory_space<vmem>>, vector<1x16xf32>
    %c0_6 = arith.constant 0 : index
    %c0_7 = arith.constant 0 : index
    %5 = vector.load %arg4[%c0_6, %c0_7] : memref<1x16xf32, #tpu.memory_space<vmem>>, vector<1x16xf32>
    %6 = vector.broadcast %4 : vector<1x16xf32> to vector<256x16xf32>
    %7 = arith.addf %3, %6 : vector<256x16xf32>
    %cst_8 = arith.constant 0.000000e+00 : f32
    %8 = vector.broadcast %cst_8 : f32 to vector<256x16xf32>
    %9 = arith.cmpf ogt, %7, %8 : vector<256x16xf32>
    %cst_9 = arith.constant 2.000000e-01 : f32
    %10 = vector.broadcast %cst_9 : f32 to vector<256x16xf32>
    %11 = arith.mulf %10, %7 : vector<256x16xf32>
    %12 = arith.select %9, %7, %11 : vector<256x16xi1>, vector<256x16xf32>
    %13 = vector.broadcast %5 : vector<1x16xf32> to vector<256x16xf32>
    %14 = arith.addf %12, %13 : vector<256x16xf32>
    %15 = arith.truncf %14 : vector<256x16xf32> to vector<256x16xbf16>
    %c0_10 = arith.constant 0 : index
    %c0_11 = arith.constant 0 : index
    %c0_12 = arith.constant 0 : index
    %16 = vector.load %arg5[%c0_10, %c0_11, %c0_12] : memref<9x64x256xbf16, #tpu.memory_space<vmem>>, vector<1x64x256xbf16>
    %17 = vector.shape_cast %16 : vector<1x64x256xbf16> to vector<64x256xbf16>
    %cst_13 = arith.constant dense<0.000000e+00> : vector<64x16xf32>
    %18 = tpu.matmul %17, %15, %cst_13 {dimension_numbers = #tpu.dot_dimension_numbers<[1], [0], [0], [1], [0, 0, 1, 1], [], []>} : vector<64x256xbf16>, vector<256x16xbf16>, vector<64x16xf32> -> vector<64x16xf32>
    %19 = arith.truncf %18 : vector<64x16xf32> to vector<64x16xbf16>
    %c0_14 = arith.constant 0 : index
    %c0_15 = arith.constant 0 : index
    %c0_16 = arith.constant 0 : index
    %20 = vector.load %arg6[%c0_14, %c0_15, %c0_16] : memref<9x16x32xbf16, #tpu.memory_space<vmem>>, vector<1x16x32xbf16>
    %21 = vector.shape_cast %20 : vector<1x16x32xbf16> to vector<16x32xbf16>
    %cst_17 = arith.constant dense<0.000000e+00> : vector<64x32xf32>
    %22 = tpu.matmul %19, %21, %cst_17 {dimension_numbers = #tpu.dot_dimension_numbers<[1], [0], [0], [1], [0, 0, 1, 1], [], []>} : vector<64x16xbf16>, vector<16x32xbf16>, vector<64x32xf32> -> vector<64x32xf32>
    %c1 = arith.constant 1 : index
    %c0_18 = arith.constant 0 : index
    %c0_19 = arith.constant 0 : index
    %23 = vector.load %arg5[%c1, %c0_18, %c0_19] : memref<9x64x256xbf16, #tpu.memory_space<vmem>>, vector<1x64x256xbf16>
    %24 = vector.shape_cast %23 : vector<1x64x256xbf16> to vector<64x256xbf16>
    %cst_20 = arith.constant dense<0.000000e+00> : vector<64x16xf32>
    %25 = tpu.matmul %24, %15, %cst_20 {dimension_numbers = #tpu.dot_dimension_numbers<[1], [0], [0], [1], [0, 0, 1, 1], [], []>} : vector<64x256xbf16>, vector<256x16xbf16>, vector<64x16xf32> -> vector<64x16xf32>
    %26 = arith.truncf %25 : vector<64x16xf32> to vector<64x16xbf16>
    %c1_21 = arith.constant 1 : index
    %c0_22 = arith.constant 0 : index
    %c0_23 = arith.constant 0 : index
    %27 = vector.load %arg6[%c1_21, %c0_22, %c0_23] : memref<9x16x32xbf16, #tpu.memory_space<vmem>>, vector<1x16x32xbf16>
    %28 = vector.shape_cast %27 : vector<1x16x32xbf16> to vector<16x32xbf16>
    %cst_24 = arith.constant dense<0.000000e+00> : vector<64x32xf32>
    %29 = tpu.matmul %26, %28, %cst_24 {dimension_numbers = #tpu.dot_dimension_numbers<[1], [0], [0], [1], [0, 0, 1, 1], [], []>} : vector<64x16xbf16>, vector<16x32xbf16>, vector<64x32xf32> -> vector<64x32xf32>
    %30 = arith.addf %22, %29 : vector<64x32xf32>
    %c2 = arith.constant 2 : index
    %c0_25 = arith.constant 0 : index
    %c0_26 = arith.constant 0 : index
    %31 = vector.load %arg5[%c2, %c0_25, %c0_26] : memref<9x64x256xbf16, #tpu.memory_space<vmem>>, vector<1x64x256xbf16>
    %32 = vector.shape_cast %31 : vector<1x64x256xbf16> to vector<64x256xbf16>
    %cst_27 = arith.constant dense<0.000000e+00> : vector<64x16xf32>
    %33 = tpu.matmul %32, %15, %cst_27 {dimension_numbers = #tpu.dot_dimension_numbers<[1], [0], [0], [1], [0, 0, 1, 1], [], []>} : vector<64x256xbf16>, vector<256x16xbf16>, vector<64x16xf32> -> vector<64x16xf32>
    %34 = arith.truncf %33 : vector<64x16xf32> to vector<64x16xbf16>
    %c2_28 = arith.constant 2 : index
    %c0_29 = arith.constant 0 : index
    %c0_30 = arith.constant 0 : index
    %35 = vector.load %arg6[%c2_28, %c0_29, %c0_30] : memref<9x16x32xbf16, #tpu.memory_space<vmem>>, vector<1x16x32xbf16>
    %36 = vector.shape_cast %35 : vector<1x16x32xbf16> to vector<16x32xbf16>
    %cst_31 = arith.constant dense<0.000000e+00> : vector<64x32xf32>
    %37 = tpu.matmul %34, %36, %cst_31 {dimension_numbers = #tpu.dot_dimension_numbers<[1], [0], [0], [1], [0, 0, 1, 1], [], []>} : vector<64x16xbf16>, vector<16x32xbf16>, vector<64x32xf32> -> vector<64x32xf32>
    %38 = arith.addf %30, %37 : vector<64x32xf32>
    %c3 = arith.constant 3 : index
    %c0_32 = arith.constant 0 : index
    %c0_33 = arith.constant 0 : index
    %39 = vector.load %arg5[%c3, %c0_32, %c0_33] : memref<9x64x256xbf16, #tpu.memory_space<vmem>>, vector<1x64x256xbf16>
    %40 = vector.shape_cast %39 : vector<1x64x256xbf16> to vector<64x256xbf16>
    %cst_34 = arith.constant dense<0.000000e+00> : vector<64x16xf32>
    %41 = tpu.matmul %40, %15, %cst_34 {dimension_numbers = #tpu.dot_dimension_numbers<[1], [0], [0], [1], [0, 0, 1, 1], [], []>} : vector<64x256xbf16>, vector<256x16xbf16>, vector<64x16xf32> -> vector<64x16xf32>
    %42 = arith.truncf %41 : vector<64x16xf32> to vector<64x16xbf16>
    %c3_35 = arith.constant 3 : index
    %c0_36 = arith.constant 0 : index
    %c0_37 = arith.constant 0 : index
    %43 = vector.load %arg6[%c3_35, %c0_36, %c0_37] : memref<9x16x32xbf16, #tpu.memory_space<vmem>>, vector<1x16x32xbf16>
    %44 = vector.shape_cast %43 : vector<1x16x32xbf16> to vector<16x32xbf16>
    %cst_38 = arith.constant dense<0.000000e+00> : vector<64x32xf32>
    %45 = tpu.matmul %42, %44, %cst_38 {dimension_numbers = #tpu.dot_dimension_numbers<[1], [0], [0], [1], [0, 0, 1, 1], [], []>} : vector<64x16xbf16>, vector<16x32xbf16>, vector<64x32xf32> -> vector<64x32xf32>
    %46 = arith.addf %38, %45 : vector<64x32xf32>
    %c4 = arith.constant 4 : index
    %c0_39 = arith.constant 0 : index
    %c0_40 = arith.constant 0 : index
    %47 = vector.load %arg5[%c4, %c0_39, %c0_40] : memref<9x64x256xbf16, #tpu.memory_space<vmem>>, vector<1x64x256xbf16>
    %48 = vector.shape_cast %47 : vector<1x64x256xbf16> to vector<64x256xbf16>
    %cst_41 = arith.constant dense<0.000000e+00> : vector<64x16xf32>
    %49 = tpu.matmul %48, %15, %cst_41 {dimension_numbers = #tpu.dot_dimension_numbers<[1], [0], [0], [1], [0, 0, 1, 1], [], []>} : vector<64x256xbf16>, vector<256x16xbf16>, vector<64x16xf32> -> vector<64x16xf32>
    %50 = arith.truncf %49 : vector<64x16xf32> to vector<64x16xbf16>
    %c4_42 = arith.constant 4 : index
    %c0_43 = arith.constant 0 : index
    %c0_44 = arith.constant 0 : index
    %51 = vector.load %arg6[%c4_42, %c0_43, %c0_44] : memref<9x16x32xbf16, #tpu.memory_space<vmem>>, vector<1x16x32xbf16>
    %52 = vector.shape_cast %51 : vector<1x16x32xbf16> to vector<16x32xbf16>
    %cst_45 = arith.constant dense<0.000000e+00> : vector<64x32xf32>
    %53 = tpu.matmul %50, %52, %cst_45 {dimension_numbers = #tpu.dot_dimension_numbers<[1], [0], [0], [1], [0, 0, 1, 1], [], []>} : vector<64x16xbf16>, vector<16x32xbf16>, vector<64x32xf32> -> vector<64x32xf32>
    %54 = arith.addf %46, %53 : vector<64x32xf32>
    %c5 = arith.constant 5 : index
    %c0_46 = arith.constant 0 : index
    %c0_47 = arith.constant 0 : index
    %55 = vector.load %arg5[%c5, %c0_46, %c0_47] : memref<9x64x256xbf16, #tpu.memory_space<vmem>>, vector<1x64x256xbf16>
    %56 = vector.shape_cast %55 : vector<1x64x256xbf16> to vector<64x256xbf16>
    %cst_48 = arith.constant dense<0.000000e+00> : vector<64x16xf32>
    %57 = tpu.matmul %56, %15, %cst_48 {dimension_numbers = #tpu.dot_dimension_numbers<[1], [0], [0], [1], [0, 0, 1, 1], [], []>} : vector<64x256xbf16>, vector<256x16xbf16>, vector<64x16xf32> -> vector<64x16xf32>
    %58 = arith.truncf %57 : vector<64x16xf32> to vector<64x16xbf16>
    %c5_49 = arith.constant 5 : index
    %c0_50 = arith.constant 0 : index
    %c0_51 = arith.constant 0 : index
    %59 = vector.load %arg6[%c5_49, %c0_50, %c0_51] : memref<9x16x32xbf16, #tpu.memory_space<vmem>>, vector<1x16x32xbf16>
    %60 = vector.shape_cast %59 : vector<1x16x32xbf16> to vector<16x32xbf16>
    %cst_52 = arith.constant dense<0.000000e+00> : vector<64x32xf32>
    %61 = tpu.matmul %58, %60, %cst_52 {dimension_numbers = #tpu.dot_dimension_numbers<[1], [0], [0], [1], [0, 0, 1, 1], [], []>} : vector<64x16xbf16>, vector<16x32xbf16>, vector<64x32xf32> -> vector<64x32xf32>
    %62 = arith.addf %54, %61 : vector<64x32xf32>
    %c6 = arith.constant 6 : index
    %c0_53 = arith.constant 0 : index
    %c0_54 = arith.constant 0 : index
    %63 = vector.load %arg5[%c6, %c0_53, %c0_54] : memref<9x64x256xbf16, #tpu.memory_space<vmem>>, vector<1x64x256xbf16>
    %64 = vector.shape_cast %63 : vector<1x64x256xbf16> to vector<64x256xbf16>
    %cst_55 = arith.constant dense<0.000000e+00> : vector<64x16xf32>
    %65 = tpu.matmul %64, %15, %cst_55 {dimension_numbers = #tpu.dot_dimension_numbers<[1], [0], [0], [1], [0, 0, 1, 1], [], []>} : vector<64x256xbf16>, vector<256x16xbf16>, vector<64x16xf32> -> vector<64x16xf32>
    %66 = arith.truncf %65 : vector<64x16xf32> to vector<64x16xbf16>
    %c6_56 = arith.constant 6 : index
    %c0_57 = arith.constant 0 : index
    %c0_58 = arith.constant 0 : index
    %67 = vector.load %arg6[%c6_56, %c0_57, %c0_58] : memref<9x16x32xbf16, #tpu.memory_space<vmem>>, vector<1x16x32xbf16>
    %68 = vector.shape_cast %67 : vector<1x16x32xbf16> to vector<16x32xbf16>
    %cst_59 = arith.constant dense<0.000000e+00> : vector<64x32xf32>
    %69 = tpu.matmul %66, %68, %cst_59 {dimension_numbers = #tpu.dot_dimension_numbers<[1], [0], [0], [1], [0, 0, 1, 1], [], []>} : vector<64x16xbf16>, vector<16x32xbf16>, vector<64x32xf32> -> vector<64x32xf32>
    %70 = arith.addf %62, %69 : vector<64x32xf32>
    %c7 = arith.constant 7 : index
    %c0_60 = arith.constant 0 : index
    %c0_61 = arith.constant 0 : index
    %71 = vector.load %arg5[%c7, %c0_60, %c0_61] : memref<9x64x256xbf16, #tpu.memory_space<vmem>>, vector<1x64x256xbf16>
    %72 = vector.shape_cast %71 : vector<1x64x256xbf16> to vector<64x256xbf16>
    %cst_62 = arith.constant dense<0.000000e+00> : vector<64x16xf32>
    %73 = tpu.matmul %72, %15, %cst_62 {dimension_numbers = #tpu.dot_dimension_numbers<[1], [0], [0], [1], [0, 0, 1, 1], [], []>} : vector<64x256xbf16>, vector<256x16xbf16>, vector<64x16xf32> -> vector<64x16xf32>
    %74 = arith.truncf %73 : vector<64x16xf32> to vector<64x16xbf16>
    %c7_63 = arith.constant 7 : index
    %c0_64 = arith.constant 0 : index
    %c0_65 = arith.constant 0 : index
    %75 = vector.load %arg6[%c7_63, %c0_64, %c0_65] : memref<9x16x32xbf16, #tpu.memory_space<vmem>>, vector<1x16x32xbf16>
    %76 = vector.shape_cast %75 : vector<1x16x32xbf16> to vector<16x32xbf16>
    %cst_66 = arith.constant dense<0.000000e+00> : vector<64x32xf32>
    %77 = tpu.matmul %74, %76, %cst_66 {dimension_numbers = #tpu.dot_dimension_numbers<[1], [0], [0], [1], [0, 0, 1, 1], [], []>} : vector<64x16xbf16>, vector<16x32xbf16>, vector<64x32xf32> -> vector<64x32xf32>
    %78 = arith.addf %70, %77 : vector<64x32xf32>
    %c8 = arith.constant 8 : index
    %c0_67 = arith.constant 0 : index
    %c0_68 = arith.constant 0 : index
    %79 = vector.load %arg5[%c8, %c0_67, %c0_68] : memref<9x64x256xbf16, #tpu.memory_space<vmem>>, vector<1x64x256xbf16>
    %80 = vector.shape_cast %79 : vector<1x64x256xbf16> to vector<64x256xbf16>
    %cst_69 = arith.constant dense<0.000000e+00> : vector<64x16xf32>
    %81 = tpu.matmul %80, %15, %cst_69 {dimension_numbers = #tpu.dot_dimension_numbers<[1], [0], [0], [1], [0, 0, 1, 1], [], []>} : vector<64x256xbf16>, vector<256x16xbf16>, vector<64x16xf32> -> vector<64x16xf32>
    %82 = arith.truncf %81 : vector<64x16xf32> to vector<64x16xbf16>
    %c8_70 = arith.constant 8 : index
    %c0_71 = arith.constant 0 : index
    %c0_72 = arith.constant 0 : index
    %83 = vector.load %arg6[%c8_70, %c0_71, %c0_72] : memref<9x16x32xbf16, #tpu.memory_space<vmem>>, vector<1x16x32xbf16>
    %84 = vector.shape_cast %83 : vector<1x16x32xbf16> to vector<16x32xbf16>
    %cst_73 = arith.constant dense<0.000000e+00> : vector<64x32xf32>
    %85 = tpu.matmul %82, %84, %cst_73 {dimension_numbers = #tpu.dot_dimension_numbers<[1], [0], [0], [1], [0, 0, 1, 1], [], []>} : vector<64x16xbf16>, vector<16x32xbf16>, vector<64x32xf32> -> vector<64x32xf32>
    %86 = arith.addf %78, %85 : vector<64x32xf32>
    %c0_74 = arith.constant 0 : index
    %c0_75 = arith.constant 0 : index
    %87 = vector.load %arg7[%c0_74, %c0_75] : memref<1x32xf32, #tpu.memory_space<vmem>>, vector<1x32xf32>
    %c0_76 = arith.constant 0 : index
    %c0_77 = arith.constant 0 : index
    %88 = vector.load %arg8[%c0_76, %c0_77] : memref<1x32xf32, #tpu.memory_space<vmem>>, vector<1x32xf32>
    %89 = vector.broadcast %87 : vector<1x32xf32> to vector<64x32xf32>
    %90 = arith.addf %86, %89 : vector<64x32xf32>
    %cst_78 = arith.constant 0.000000e+00 : f32
    %91 = vector.broadcast %cst_78 : f32 to vector<64x32xf32>
    %92 = arith.cmpf ogt, %90, %91 : vector<64x32xf32>
    %cst_79 = arith.constant 2.000000e-01 : f32
    %93 = vector.broadcast %cst_79 : f32 to vector<64x32xf32>
    %94 = arith.mulf %93, %90 : vector<64x32xf32>
    %95 = arith.select %92, %90, %94 : vector<64x32xi1>, vector<64x32xf32>
    %96 = vector.broadcast %88 : vector<1x32xf32> to vector<64x32xf32>
    %97 = arith.addf %95, %96 : vector<64x32xf32>
    %98 = arith.truncf %97 : vector<64x32xf32> to vector<64x32xbf16>
    %c0_80 = arith.constant 0 : index
    %c0_81 = arith.constant 0 : index
    %c0_82 = arith.constant 0 : index
    %99 = vector.load %arg9[%c0_80, %c0_81, %c0_82] : memref<9x16x64xbf16, #tpu.memory_space<vmem>>, vector<1x16x64xbf16>
    %100 = vector.shape_cast %99 : vector<1x16x64xbf16> to vector<16x64xbf16>
    %cst_83 = arith.constant dense<0.000000e+00> : vector<16x32xf32>
    %101 = tpu.matmul %100, %98, %cst_83 {dimension_numbers = #tpu.dot_dimension_numbers<[1], [0], [0], [1], [0, 0, 1, 1], [], []>} : vector<16x64xbf16>, vector<64x32xbf16>, vector<16x32xf32> -> vector<16x32xf32>
    %102 = arith.truncf %101 : vector<16x32xf32> to vector<16x32xbf16>
    %c0_84 = arith.constant 0 : index
    %c0_85 = arith.constant 0 : index
    %c0_86 = arith.constant 0 : index
    %103 = vector.load %arg10[%c0_84, %c0_85, %c0_86] : memref<9x32x64xbf16, #tpu.memory_space<vmem>>, vector<1x32x64xbf16>
    %104 = vector.shape_cast %103 : vector<1x32x64xbf16> to vector<32x64xbf16>
    %cst_87 = arith.constant dense<0.000000e+00> : vector<16x64xf32>
    %105 = tpu.matmul %102, %104, %cst_87 {dimension_numbers = #tpu.dot_dimension_numbers<[1], [0], [0], [1], [0, 0, 1, 1], [], []>} : vector<16x32xbf16>, vector<32x64xbf16>, vector<16x64xf32> -> vector<16x64xf32>
    %c1_88 = arith.constant 1 : index
    %c0_89 = arith.constant 0 : index
    %c0_90 = arith.constant 0 : index
    %106 = vector.load %arg9[%c1_88, %c0_89, %c0_90] : memref<9x16x64xbf16, #tpu.memory_space<vmem>>, vector<1x16x64xbf16>
    %107 = vector.shape_cast %106 : vector<1x16x64xbf16> to vector<16x64xbf16>
    %cst_91 = arith.constant dense<0.000000e+00> : vector<16x32xf32>
    %108 = tpu.matmul %107, %98, %cst_91 {dimension_numbers = #tpu.dot_dimension_numbers<[1], [0], [0], [1], [0, 0, 1, 1], [], []>} : vector<16x64xbf16>, vector<64x32xbf16>, vector<16x32xf32> -> vector<16x32xf32>
    %109 = arith.truncf %108 : vector<16x32xf32> to vector<16x32xbf16>
    %c1_92 = arith.constant 1 : index
    %c0_93 = arith.constant 0 : index
    %c0_94 = arith.constant 0 : index
    %110 = vector.load %arg10[%c1_92, %c0_93, %c0_94] : memref<9x32x64xbf16, #tpu.memory_space<vmem>>, vector<1x32x64xbf16>
    %111 = vector.shape_cast %110 : vector<1x32x64xbf16> to vector<32x64xbf16>
    %cst_95 = arith.constant dense<0.000000e+00> : vector<16x64xf32>
    %112 = tpu.matmul %109, %111, %cst_95 {dimension_numbers = #tpu.dot_dimension_numbers<[1], [0], [0], [1], [0, 0, 1, 1], [], []>} : vector<16x32xbf16>, vector<32x64xbf16>, vector<16x64xf32> -> vector<16x64xf32>
    %113 = arith.addf %105, %112 : vector<16x64xf32>
    %c2_96 = arith.constant 2 : index
    %c0_97 = arith.constant 0 : index
    %c0_98 = arith.constant 0 : index
    %114 = vector.load %arg9[%c2_96, %c0_97, %c0_98] : memref<9x16x64xbf16, #tpu.memory_space<vmem>>, vector<1x16x64xbf16>
    %115 = vector.shape_cast %114 : vector<1x16x64xbf16> to vector<16x64xbf16>
    %cst_99 = arith.constant dense<0.000000e+00> : vector<16x32xf32>
    %116 = tpu.matmul %115, %98, %cst_99 {dimension_numbers = #tpu.dot_dimension_numbers<[1], [0], [0], [1], [0, 0, 1, 1], [], []>} : vector<16x64xbf16>, vector<64x32xbf16>, vector<16x32xf32> -> vector<16x32xf32>
    %117 = arith.truncf %116 : vector<16x32xf32> to vector<16x32xbf16>
    %c2_100 = arith.constant 2 : index
    %c0_101 = arith.constant 0 : index
    %c0_102 = arith.constant 0 : index
    %118 = vector.load %arg10[%c2_100, %c0_101, %c0_102] : memref<9x32x64xbf16, #tpu.memory_space<vmem>>, vector<1x32x64xbf16>
    %119 = vector.shape_cast %118 : vector<1x32x64xbf16> to vector<32x64xbf16>
    %cst_103 = arith.constant dense<0.000000e+00> : vector<16x64xf32>
    %120 = tpu.matmul %117, %119, %cst_103 {dimension_numbers = #tpu.dot_dimension_numbers<[1], [0], [0], [1], [0, 0, 1, 1], [], []>} : vector<16x32xbf16>, vector<32x64xbf16>, vector<16x64xf32> -> vector<16x64xf32>
    %121 = arith.addf %113, %120 : vector<16x64xf32>
    %c3_104 = arith.constant 3 : index
    %c0_105 = arith.constant 0 : index
    %c0_106 = arith.constant 0 : index
    %122 = vector.load %arg9[%c3_104, %c0_105, %c0_106] : memref<9x16x64xbf16, #tpu.memory_space<vmem>>, vector<1x16x64xbf16>
    %123 = vector.shape_cast %122 : vector<1x16x64xbf16> to vector<16x64xbf16>
    %cst_107 = arith.constant dense<0.000000e+00> : vector<16x32xf32>
    %124 = tpu.matmul %123, %98, %cst_107 {dimension_numbers = #tpu.dot_dimension_numbers<[1], [0], [0], [1], [0, 0, 1, 1], [], []>} : vector<16x64xbf16>, vector<64x32xbf16>, vector<16x32xf32> -> vector<16x32xf32>
    %125 = arith.truncf %124 : vector<16x32xf32> to vector<16x32xbf16>
    %c3_108 = arith.constant 3 : index
    %c0_109 = arith.constant 0 : index
    %c0_110 = arith.constant 0 : index
    %126 = vector.load %arg10[%c3_108, %c0_109, %c0_110] : memref<9x32x64xbf16, #tpu.memory_space<vmem>>, vector<1x32x64xbf16>
    %127 = vector.shape_cast %126 : vector<1x32x64xbf16> to vector<32x64xbf16>
    %cst_111 = arith.constant dense<0.000000e+00> : vector<16x64xf32>
    %128 = tpu.matmul %125, %127, %cst_111 {dimension_numbers = #tpu.dot_dimension_numbers<[1], [0], [0], [1], [0, 0, 1, 1], [], []>} : vector<16x32xbf16>, vector<32x64xbf16>, vector<16x64xf32> -> vector<16x64xf32>
    %129 = arith.addf %121, %128 : vector<16x64xf32>
    %c4_112 = arith.constant 4 : index
    %c0_113 = arith.constant 0 : index
    %c0_114 = arith.constant 0 : index
    %130 = vector.load %arg9[%c4_112, %c0_113, %c0_114] : memref<9x16x64xbf16, #tpu.memory_space<vmem>>, vector<1x16x64xbf16>
    %131 = vector.shape_cast %130 : vector<1x16x64xbf16> to vector<16x64xbf16>
    %cst_115 = arith.constant dense<0.000000e+00> : vector<16x32xf32>
    %132 = tpu.matmul %131, %98, %cst_115 {dimension_numbers = #tpu.dot_dimension_numbers<[1], [0], [0], [1], [0, 0, 1, 1], [], []>} : vector<16x64xbf16>, vector<64x32xbf16>, vector<16x32xf32> -> vector<16x32xf32>
    %133 = arith.truncf %132 : vector<16x32xf32> to vector<16x32xbf16>
    %c4_116 = arith.constant 4 : index
    %c0_117 = arith.constant 0 : index
    %c0_118 = arith.constant 0 : index
    %134 = vector.load %arg10[%c4_116, %c0_117, %c0_118] : memref<9x32x64xbf16, #tpu.memory_space<vmem>>, vector<1x32x64xbf16>
    %135 = vector.shape_cast %134 : vector<1x32x64xbf16> to vector<32x64xbf16>
    %cst_119 = arith.constant dense<0.000000e+00> : vector<16x64xf32>
    %136 = tpu.matmul %133, %135, %cst_119 {dimension_numbers = #tpu.dot_dimension_numbers<[1], [0], [0], [1], [0, 0, 1, 1], [], []>} : vector<16x32xbf16>, vector<32x64xbf16>, vector<16x64xf32> -> vector<16x64xf32>
    %137 = arith.addf %129, %136 : vector<16x64xf32>
    %c5_120 = arith.constant 5 : index
    %c0_121 = arith.constant 0 : index
    %c0_122 = arith.constant 0 : index
    %138 = vector.load %arg9[%c5_120, %c0_121, %c0_122] : memref<9x16x64xbf16, #tpu.memory_space<vmem>>, vector<1x16x64xbf16>
    %139 = vector.shape_cast %138 : vector<1x16x64xbf16> to vector<16x64xbf16>
    %cst_123 = arith.constant dense<0.000000e+00> : vector<16x32xf32>
    %140 = tpu.matmul %139, %98, %cst_123 {dimension_numbers = #tpu.dot_dimension_numbers<[1], [0], [0], [1], [0, 0, 1, 1], [], []>} : vector<16x64xbf16>, vector<64x32xbf16>, vector<16x32xf32> -> vector<16x32xf32>
    %141 = arith.truncf %140 : vector<16x32xf32> to vector<16x32xbf16>
    %c5_124 = arith.constant 5 : index
    %c0_125 = arith.constant 0 : index
    %c0_126 = arith.constant 0 : index
    %142 = vector.load %arg10[%c5_124, %c0_125, %c0_126] : memref<9x32x64xbf16, #tpu.memory_space<vmem>>, vector<1x32x64xbf16>
    %143 = vector.shape_cast %142 : vector<1x32x64xbf16> to vector<32x64xbf16>
    %cst_127 = arith.constant dense<0.000000e+00> : vector<16x64xf32>
    %144 = tpu.matmul %141, %143, %cst_127 {dimension_numbers = #tpu.dot_dimension_numbers<[1], [0], [0], [1], [0, 0, 1, 1], [], []>} : vector<16x32xbf16>, vector<32x64xbf16>, vector<16x64xf32> -> vector<16x64xf32>
    %145 = arith.addf %137, %144 : vector<16x64xf32>
    %c6_128 = arith.constant 6 : index
    %c0_129 = arith.constant 0 : index
    %c0_130 = arith.constant 0 : index
    %146 = vector.load %arg9[%c6_128, %c0_129, %c0_130] : memref<9x16x64xbf16, #tpu.memory_space<vmem>>, vector<1x16x64xbf16>
    %147 = vector.shape_cast %146 : vector<1x16x64xbf16> to vector<16x64xbf16>
    %cst_131 = arith.constant dense<0.000000e+00> : vector<16x32xf32>
    %148 = tpu.matmul %147, %98, %cst_131 {dimension_numbers = #tpu.dot_dimension_numbers<[1], [0], [0], [1], [0, 0, 1, 1], [], []>} : vector<16x64xbf16>, vector<64x32xbf16>, vector<16x32xf32> -> vector<16x32xf32>
    %149 = arith.truncf %148 : vector<16x32xf32> to vector<16x32xbf16>
    %c6_132 = arith.constant 6 : index
    %c0_133 = arith.constant 0 : index
    %c0_134 = arith.constant 0 : index
    %150 = vector.load %arg10[%c6_132, %c0_133, %c0_134] : memref<9x32x64xbf16, #tpu.memory_space<vmem>>, vector<1x32x64xbf16>
    %151 = vector.shape_cast %150 : vector<1x32x64xbf16> to vector<32x64xbf16>
    %cst_135 = arith.constant dense<0.000000e+00> : vector<16x64xf32>
    %152 = tpu.matmul %149, %151, %cst_135 {dimension_numbers = #tpu.dot_dimension_numbers<[1], [0], [0], [1], [0, 0, 1, 1], [], []>} : vector<16x32xbf16>, vector<32x64xbf16>, vector<16x64xf32> -> vector<16x64xf32>
    %153 = arith.addf %145, %152 : vector<16x64xf32>
    %c7_136 = arith.constant 7 : index
    %c0_137 = arith.constant 0 : index
    %c0_138 = arith.constant 0 : index
    %154 = vector.load %arg9[%c7_136, %c0_137, %c0_138] : memref<9x16x64xbf16, #tpu.memory_space<vmem>>, vector<1x16x64xbf16>
    %155 = vector.shape_cast %154 : vector<1x16x64xbf16> to vector<16x64xbf16>
    %cst_139 = arith.constant dense<0.000000e+00> : vector<16x32xf32>
    %156 = tpu.matmul %155, %98, %cst_139 {dimension_numbers = #tpu.dot_dimension_numbers<[1], [0], [0], [1], [0, 0, 1, 1], [], []>} : vector<16x64xbf16>, vector<64x32xbf16>, vector<16x32xf32> -> vector<16x32xf32>
    %157 = arith.truncf %156 : vector<16x32xf32> to vector<16x32xbf16>
    %c7_140 = arith.constant 7 : index
    %c0_141 = arith.constant 0 : index
    %c0_142 = arith.constant 0 : index
    %158 = vector.load %arg10[%c7_140, %c0_141, %c0_142] : memref<9x32x64xbf16, #tpu.memory_space<vmem>>, vector<1x32x64xbf16>
    %159 = vector.shape_cast %158 : vector<1x32x64xbf16> to vector<32x64xbf16>
    %cst_143 = arith.constant dense<0.000000e+00> : vector<16x64xf32>
    %160 = tpu.matmul %157, %159, %cst_143 {dimension_numbers = #tpu.dot_dimension_numbers<[1], [0], [0], [1], [0, 0, 1, 1], [], []>} : vector<16x32xbf16>, vector<32x64xbf16>, vector<16x64xf32> -> vector<16x64xf32>
    %161 = arith.addf %153, %160 : vector<16x64xf32>
    %c8_144 = arith.constant 8 : index
    %c0_145 = arith.constant 0 : index
    %c0_146 = arith.constant 0 : index
    %162 = vector.load %arg9[%c8_144, %c0_145, %c0_146] : memref<9x16x64xbf16, #tpu.memory_space<vmem>>, vector<1x16x64xbf16>
    %163 = vector.shape_cast %162 : vector<1x16x64xbf16> to vector<16x64xbf16>
    %cst_147 = arith.constant dense<0.000000e+00> : vector<16x32xf32>
    %164 = tpu.matmul %163, %98, %cst_147 {dimension_numbers = #tpu.dot_dimension_numbers<[1], [0], [0], [1], [0, 0, 1, 1], [], []>} : vector<16x64xbf16>, vector<64x32xbf16>, vector<16x32xf32> -> vector<16x32xf32>
    %165 = arith.truncf %164 : vector<16x32xf32> to vector<16x32xbf16>
    %c8_148 = arith.constant 8 : index
    %c0_149 = arith.constant 0 : index
    %c0_150 = arith.constant 0 : index
    %166 = vector.load %arg10[%c8_148, %c0_149, %c0_150] : memref<9x32x64xbf16, #tpu.memory_space<vmem>>, vector<1x32x64xbf16>
    %167 = vector.shape_cast %166 : vector<1x32x64xbf16> to vector<32x64xbf16>
    %cst_151 = arith.constant dense<0.000000e+00> : vector<16x64xf32>
    %168 = tpu.matmul %165, %167, %cst_151 {dimension_numbers = #tpu.dot_dimension_numbers<[1], [0], [0], [1], [0, 0, 1, 1], [], []>} : vector<16x32xbf16>, vector<32x64xbf16>, vector<16x64xf32> -> vector<16x64xf32>
    %169 = arith.addf %161, %168 : vector<16x64xf32>
    %c0_152 = arith.constant 0 : index
    %c0_153 = arith.constant 0 : index
    %170 = vector.load %arg11[%c0_152, %c0_153] : memref<1x64xf32, #tpu.memory_space<vmem>>, vector<1x64xf32>
    %c0_154 = arith.constant 0 : index
    %c0_155 = arith.constant 0 : index
    %171 = vector.load %arg12[%c0_154, %c0_155] : memref<1x64xf32, #tpu.memory_space<vmem>>, vector<1x64xf32>
    %172 = vector.broadcast %170 : vector<1x64xf32> to vector<16x64xf32>
    %173 = arith.addf %169, %172 : vector<16x64xf32>
    %cst_156 = arith.constant 0.000000e+00 : f32
    %174 = vector.broadcast %cst_156 : f32 to vector<16x64xf32>
    %175 = arith.cmpf ogt, %173, %174 : vector<16x64xf32>
    %cst_157 = arith.constant 2.000000e-01 : f32
    %176 = vector.broadcast %cst_157 : f32 to vector<16x64xf32>
    %177 = arith.mulf %176, %173 : vector<16x64xf32>
    %178 = arith.select %175, %173, %177 : vector<16x64xi1>, vector<16x64xf32>
    %179 = vector.broadcast %171 : vector<1x64xf32> to vector<16x64xf32>
    %180 = arith.addf %178, %179 : vector<16x64xf32>
    %181 = arith.truncf %180 : vector<16x64xf32> to vector<16x64xbf16>
    %c0_158 = arith.constant 0 : index
    %c0_159 = arith.constant 0 : index
    %c0_160 = arith.constant 0 : index
    %182 = vector.load %arg13[%c0_158, %c0_159, %c0_160] : memref<9x4x16xbf16, #tpu.memory_space<vmem>>, vector<1x4x16xbf16>
    %183 = vector.shape_cast %182 : vector<1x4x16xbf16> to vector<4x16xbf16>
    %cst_161 = arith.constant dense<0.000000e+00> : vector<4x64xf32>
    %184 = tpu.matmul %183, %181, %cst_161 {dimension_numbers = #tpu.dot_dimension_numbers<[1], [0], [0], [1], [0, 0, 1, 1], [], []>} : vector<4x16xbf16>, vector<16x64xbf16>, vector<4x64xf32> -> vector<4x64xf32>
    %185 = arith.truncf %184 : vector<4x64xf32> to vector<4x64xbf16>
    %c0_162 = arith.constant 0 : index
    %c0_163 = arith.constant 0 : index
    %c0_164 = arith.constant 0 : index
    %186 = vector.load %arg14[%c0_162, %c0_163, %c0_164] : memref<9x64x128xbf16, #tpu.memory_space<vmem>>, vector<1x64x128xbf16>
    %187 = vector.shape_cast %186 : vector<1x64x128xbf16> to vector<64x128xbf16>
    %cst_165 = arith.constant dense<0.000000e+00> : vector<4x128xf32>
    %188 = tpu.matmul %185, %187, %cst_165 {dimension_numbers = #tpu.dot_dimension_numbers<[1], [0], [0], [1], [0, 0, 1, 1], [], []>} : vector<4x64xbf16>, vector<64x128xbf16>, vector<4x128xf32> -> vector<4x128xf32>
    %c1_166 = arith.constant 1 : index
    %c0_167 = arith.constant 0 : index
    %c0_168 = arith.constant 0 : index
    %189 = vector.load %arg13[%c1_166, %c0_167, %c0_168] : memref<9x4x16xbf16, #tpu.memory_space<vmem>>, vector<1x4x16xbf16>
    %190 = vector.shape_cast %189 : vector<1x4x16xbf16> to vector<4x16xbf16>
    %cst_169 = arith.constant dense<0.000000e+00> : vector<4x64xf32>
    %191 = tpu.matmul %190, %181, %cst_169 {dimension_numbers = #tpu.dot_dimension_numbers<[1], [0], [0], [1], [0, 0, 1, 1], [], []>} : vector<4x16xbf16>, vector<16x64xbf16>, vector<4x64xf32> -> vector<4x64xf32>
    %192 = arith.truncf %191 : vector<4x64xf32> to vector<4x64xbf16>
    %c1_170 = arith.constant 1 : index
    %c0_171 = arith.constant 0 : index
    %c0_172 = arith.constant 0 : index
    %193 = vector.load %arg14[%c1_170, %c0_171, %c0_172] : memref<9x64x128xbf16, #tpu.memory_space<vmem>>, vector<1x64x128xbf16>
    %194 = vector.shape_cast %193 : vector<1x64x128xbf16> to vector<64x128xbf16>
    %cst_173 = arith.constant dense<0.000000e+00> : vector<4x128xf32>
    %195 = tpu.matmul %192, %194, %cst_173 {dimension_numbers = #tpu.dot_dimension_numbers<[1], [0], [0], [1], [0, 0, 1, 1], [], []>} : vector<4x64xbf16>, vector<64x128xbf16>, vector<4x128xf32> -> vector<4x128xf32>
    %196 = arith.addf %188, %195 : vector<4x128xf32>
    %c2_174 = arith.constant 2 : index
    %c0_175 = arith.constant 0 : index
    %c0_176 = arith.constant 0 : index
    %197 = vector.load %arg13[%c2_174, %c0_175, %c0_176] : memref<9x4x16xbf16, #tpu.memory_space<vmem>>, vector<1x4x16xbf16>
    %198 = vector.shape_cast %197 : vector<1x4x16xbf16> to vector<4x16xbf16>
    %cst_177 = arith.constant dense<0.000000e+00> : vector<4x64xf32>
    %199 = tpu.matmul %198, %181, %cst_177 {dimension_numbers = #tpu.dot_dimension_numbers<[1], [0], [0], [1], [0, 0, 1, 1], [], []>} : vector<4x16xbf16>, vector<16x64xbf16>, vector<4x64xf32> -> vector<4x64xf32>
    %200 = arith.truncf %199 : vector<4x64xf32> to vector<4x64xbf16>
    %c2_178 = arith.constant 2 : index
    %c0_179 = arith.constant 0 : index
    %c0_180 = arith.constant 0 : index
    %201 = vector.load %arg14[%c2_178, %c0_179, %c0_180] : memref<9x64x128xbf16, #tpu.memory_space<vmem>>, vector<1x64x128xbf16>
    %202 = vector.shape_cast %201 : vector<1x64x128xbf16> to vector<64x128xbf16>
    %cst_181 = arith.constant dense<0.000000e+00> : vector<4x128xf32>
    %203 = tpu.matmul %200, %202, %cst_181 {dimension_numbers = #tpu.dot_dimension_numbers<[1], [0], [0], [1], [0, 0, 1, 1], [], []>} : vector<4x64xbf16>, vector<64x128xbf16>, vector<4x128xf32> -> vector<4x128xf32>
    %204 = arith.addf %196, %203 : vector<4x128xf32>
    %c3_182 = arith.constant 3 : index
    %c0_183 = arith.constant 0 : index
    %c0_184 = arith.constant 0 : index
    %205 = vector.load %arg13[%c3_182, %c0_183, %c0_184] : memref<9x4x16xbf16, #tpu.memory_space<vmem>>, vector<1x4x16xbf16>
    %206 = vector.shape_cast %205 : vector<1x4x16xbf16> to vector<4x16xbf16>
    %cst_185 = arith.constant dense<0.000000e+00> : vector<4x64xf32>
    %207 = tpu.matmul %206, %181, %cst_185 {dimension_numbers = #tpu.dot_dimension_numbers<[1], [0], [0], [1], [0, 0, 1, 1], [], []>} : vector<4x16xbf16>, vector<16x64xbf16>, vector<4x64xf32> -> vector<4x64xf32>
    %208 = arith.truncf %207 : vector<4x64xf32> to vector<4x64xbf16>
    %c3_186 = arith.constant 3 : index
    %c0_187 = arith.constant 0 : index
    %c0_188 = arith.constant 0 : index
    %209 = vector.load %arg14[%c3_186, %c0_187, %c0_188] : memref<9x64x128xbf16, #tpu.memory_space<vmem>>, vector<1x64x128xbf16>
    %210 = vector.shape_cast %209 : vector<1x64x128xbf16> to vector<64x128xbf16>
    %cst_189 = arith.constant dense<0.000000e+00> : vector<4x128xf32>
    %211 = tpu.matmul %208, %210, %cst_189 {dimension_numbers = #tpu.dot_dimension_numbers<[1], [0], [0], [1], [0, 0, 1, 1], [], []>} : vector<4x64xbf16>, vector<64x128xbf16>, vector<4x128xf32> -> vector<4x128xf32>
    %212 = arith.addf %204, %211 : vector<4x128xf32>
    %c4_190 = arith.constant 4 : index
    %c0_191 = arith.constant 0 : index
    %c0_192 = arith.constant 0 : index
    %213 = vector.load %arg13[%c4_190, %c0_191, %c0_192] : memref<9x4x16xbf16, #tpu.memory_space<vmem>>, vector<1x4x16xbf16>
    %214 = vector.shape_cast %213 : vector<1x4x16xbf16> to vector<4x16xbf16>
    %cst_193 = arith.constant dense<0.000000e+00> : vector<4x64xf32>
    %215 = tpu.matmul %214, %181, %cst_193 {dimension_numbers = #tpu.dot_dimension_numbers<[1], [0], [0], [1], [0, 0, 1, 1], [], []>} : vector<4x16xbf16>, vector<16x64xbf16>, vector<4x64xf32> -> vector<4x64xf32>
    %216 = arith.truncf %215 : vector<4x64xf32> to vector<4x64xbf16>
    %c4_194 = arith.constant 4 : index
    %c0_195 = arith.constant 0 : index
    %c0_196 = arith.constant 0 : index
    %217 = vector.load %arg14[%c4_194, %c0_195, %c0_196] : memref<9x64x128xbf16, #tpu.memory_space<vmem>>, vector<1x64x128xbf16>
    %218 = vector.shape_cast %217 : vector<1x64x128xbf16> to vector<64x128xbf16>
    %cst_197 = arith.constant dense<0.000000e+00> : vector<4x128xf32>
    %219 = tpu.matmul %216, %218, %cst_197 {dimension_numbers = #tpu.dot_dimension_numbers<[1], [0], [0], [1], [0, 0, 1, 1], [], []>} : vector<4x64xbf16>, vector<64x128xbf16>, vector<4x128xf32> -> vector<4x128xf32>
    %220 = arith.addf %212, %219 : vector<4x128xf32>
    %c5_198 = arith.constant 5 : index
    %c0_199 = arith.constant 0 : index
    %c0_200 = arith.constant 0 : index
    %221 = vector.load %arg13[%c5_198, %c0_199, %c0_200] : memref<9x4x16xbf16, #tpu.memory_space<vmem>>, vector<1x4x16xbf16>
    %222 = vector.shape_cast %221 : vector<1x4x16xbf16> to vector<4x16xbf16>
    %cst_201 = arith.constant dense<0.000000e+00> : vector<4x64xf32>
    %223 = tpu.matmul %222, %181, %cst_201 {dimension_numbers = #tpu.dot_dimension_numbers<[1], [0], [0], [1], [0, 0, 1, 1], [], []>} : vector<4x16xbf16>, vector<16x64xbf16>, vector<4x64xf32> -> vector<4x64xf32>
    %224 = arith.truncf %223 : vector<4x64xf32> to vector<4x64xbf16>
    %c5_202 = arith.constant 5 : index
    %c0_203 = arith.constant 0 : index
    %c0_204 = arith.constant 0 : index
    %225 = vector.load %arg14[%c5_202, %c0_203, %c0_204] : memref<9x64x128xbf16, #tpu.memory_space<vmem>>, vector<1x64x128xbf16>
    %226 = vector.shape_cast %225 : vector<1x64x128xbf16> to vector<64x128xbf16>
    %cst_205 = arith.constant dense<0.000000e+00> : vector<4x128xf32>
    %227 = tpu.matmul %224, %226, %cst_205 {dimension_numbers = #tpu.dot_dimension_numbers<[1], [0], [0], [1], [0, 0, 1, 1], [], []>} : vector<4x64xbf16>, vector<64x128xbf16>, vector<4x128xf32> -> vector<4x128xf32>
    %228 = arith.addf %220, %227 : vector<4x128xf32>
    %c6_206 = arith.constant 6 : index
    %c0_207 = arith.constant 0 : index
    %c0_208 = arith.constant 0 : index
    %229 = vector.load %arg13[%c6_206, %c0_207, %c0_208] : memref<9x4x16xbf16, #tpu.memory_space<vmem>>, vector<1x4x16xbf16>
    %230 = vector.shape_cast %229 : vector<1x4x16xbf16> to vector<4x16xbf16>
    %cst_209 = arith.constant dense<0.000000e+00> : vector<4x64xf32>
    %231 = tpu.matmul %230, %181, %cst_209 {dimension_numbers = #tpu.dot_dimension_numbers<[1], [0], [0], [1], [0, 0, 1, 1], [], []>} : vector<4x16xbf16>, vector<16x64xbf16>, vector<4x64xf32> -> vector<4x64xf32>
    %232 = arith.truncf %231 : vector<4x64xf32> to vector<4x64xbf16>
    %c6_210 = arith.constant 6 : index
    %c0_211 = arith.constant 0 : index
    %c0_212 = arith.constant 0 : index
    %233 = vector.load %arg14[%c6_210, %c0_211, %c0_212] : memref<9x64x128xbf16, #tpu.memory_space<vmem>>, vector<1x64x128xbf16>
    %234 = vector.shape_cast %233 : vector<1x64x128xbf16> to vector<64x128xbf16>
    %cst_213 = arith.constant dense<0.000000e+00> : vector<4x128xf32>
    %235 = tpu.matmul %232, %234, %cst_213 {dimension_numbers = #tpu.dot_dimension_numbers<[1], [0], [0], [1], [0, 0, 1, 1], [], []>} : vector<4x64xbf16>, vector<64x128xbf16>, vector<4x128xf32> -> vector<4x128xf32>
    %236 = arith.addf %228, %235 : vector<4x128xf32>
    %c7_214 = arith.constant 7 : index
    %c0_215 = arith.constant 0 : index
    %c0_216 = arith.constant 0 : index
    %237 = vector.load %arg13[%c7_214, %c0_215, %c0_216] : memref<9x4x16xbf16, #tpu.memory_space<vmem>>, vector<1x4x16xbf16>
    %238 = vector.shape_cast %237 : vector<1x4x16xbf16> to vector<4x16xbf16>
    %cst_217 = arith.constant dense<0.000000e+00> : vector<4x64xf32>
    %239 = tpu.matmul %238, %181, %cst_217 {dimension_numbers = #tpu.dot_dimension_numbers<[1], [0], [0], [1], [0, 0, 1, 1], [], []>} : vector<4x16xbf16>, vector<16x64xbf16>, vector<4x64xf32> -> vector<4x64xf32>
    %240 = arith.truncf %239 : vector<4x64xf32> to vector<4x64xbf16>
    %c7_218 = arith.constant 7 : index
    %c0_219 = arith.constant 0 : index
    %c0_220 = arith.constant 0 : index
    %241 = vector.load %arg14[%c7_218, %c0_219, %c0_220] : memref<9x64x128xbf16, #tpu.memory_space<vmem>>, vector<1x64x128xbf16>
    %242 = vector.shape_cast %241 : vector<1x64x128xbf16> to vector<64x128xbf16>
    %cst_221 = arith.constant dense<0.000000e+00> : vector<4x128xf32>
    %243 = tpu.matmul %240, %242, %cst_221 {dimension_numbers = #tpu.dot_dimension_numbers<[1], [0], [0], [1], [0, 0, 1, 1], [], []>} : vector<4x64xbf16>, vector<64x128xbf16>, vector<4x128xf32> -> vector<4x128xf32>
    %244 = arith.addf %236, %243 : vector<4x128xf32>
    %c8_222 = arith.constant 8 : index
    %c0_223 = arith.constant 0 : index
    %c0_224 = arith.constant 0 : index
    %245 = vector.load %arg13[%c8_222, %c0_223, %c0_224] : memref<9x4x16xbf16, #tpu.memory_space<vmem>>, vector<1x4x16xbf16>
    %246 = vector.shape_cast %245 : vector<1x4x16xbf16> to vector<4x16xbf16>
    %cst_225 = arith.constant dense<0.000000e+00> : vector<4x64xf32>
    %247 = tpu.matmul %246, %181, %cst_225 {dimension_numbers = #tpu.dot_dimension_numbers<[1], [0], [0], [1], [0, 0, 1, 1], [], []>} : vector<4x16xbf16>, vector<16x64xbf16>, vector<4x64xf32> -> vector<4x64xf32>
    %248 = arith.truncf %247 : vector<4x64xf32> to vector<4x64xbf16>
    %c8_226 = arith.constant 8 : index
    %c0_227 = arith.constant 0 : index
    %c0_228 = arith.constant 0 : index
    %249 = vector.load %arg14[%c8_226, %c0_227, %c0_228] : memref<9x64x128xbf16, #tpu.memory_space<vmem>>, vector<1x64x128xbf16>
    %250 = vector.shape_cast %249 : vector<1x64x128xbf16> to vector<64x128xbf16>
    %cst_229 = arith.constant dense<0.000000e+00> : vector<4x128xf32>
    %251 = tpu.matmul %248, %250, %cst_229 {dimension_numbers = #tpu.dot_dimension_numbers<[1], [0], [0], [1], [0, 0, 1, 1], [], []>} : vector<4x64xbf16>, vector<64x128xbf16>, vector<4x128xf32> -> vector<4x128xf32>
    %252 = arith.addf %244, %251 : vector<4x128xf32>
    %c0_230 = arith.constant 0 : index
    %c0_231 = arith.constant 0 : index
    %253 = vector.load %arg15[%c0_230, %c0_231] : memref<1x128xf32, #tpu.memory_space<vmem>>, vector<1x128xf32>
    %c0_232 = arith.constant 0 : index
    %c0_233 = arith.constant 0 : index
    %254 = vector.load %arg16[%c0_232, %c0_233] : memref<1x128xf32, #tpu.memory_space<vmem>>, vector<1x128xf32>
    %255 = vector.broadcast %253 : vector<1x128xf32> to vector<4x128xf32>
    %256 = arith.addf %252, %255 : vector<4x128xf32>
    %cst_234 = arith.constant 0.000000e+00 : f32
    %257 = vector.broadcast %cst_234 : f32 to vector<4x128xf32>
    %258 = arith.cmpf ogt, %256, %257 : vector<4x128xf32>
    %cst_235 = arith.constant 2.000000e-01 : f32
    %259 = vector.broadcast %cst_235 : f32 to vector<4x128xf32>
    %260 = arith.mulf %259, %256 : vector<4x128xf32>
    %261 = arith.select %258, %256, %260 : vector<4x128xi1>, vector<4x128xf32>
    %262 = vector.broadcast %254 : vector<1x128xf32> to vector<4x128xf32>
    %263 = arith.addf %261, %262 : vector<4x128xf32>
    %c0_236 = arith.constant 0 : index
    %c0_237 = arith.constant 0 : index
    %264 = vector.load %arg17[%c0_236, %c0_237] : memref<4x128xf32, #tpu.memory_space<vmem>>, vector<4x128xf32>
    %265 = arith.mulf %263, %264 : vector<4x128xf32>
    %cst_238 = arith.constant dense<0.000000e+00> : vector<4xf32>
    %266 = vector.multi_reduction <add>, %265, %cst_238 [1] : vector<4x128xf32> to vector<4xf32>
    %267 = vector.shape_cast %266 : vector<4xf32> to vector<4x1xf32>
    %cst_239 = arith.constant dense<0.000000e+00> : vector<1xf32>
    %268 = vector.multi_reduction <add>, %267, %cst_239 [0] : vector<4x1xf32> to vector<1xf32>
    %269 = vector.shape_cast %268 : vector<1xf32> to vector<1x1xf32>
    %c0_240 = arith.constant 0 : index
    %c0_241 = arith.constant 0 : index
    %270 = vector.load %arg18[%c0_240, %c0_241] : memref<1x1xf32, #tpu.memory_space<vmem>>, vector<1x1xf32>
    %271 = arith.addf %269, %270 : vector<1x1xf32>
    %cst_242 = arith.constant 0.000000e+00 : f32
    %272 = vector.broadcast %cst_242 : f32 to vector<1x1xf32>
    %273 = arith.subf %272, %271 : vector<1x1xf32>
    %274 = math.exp %273 : vector<1x1xf32>
    %cst_243 = arith.constant 1.000000e+00 : f32
    %275 = vector.broadcast %cst_243 : f32 to vector<1x1xf32>
    %276 = arith.addf %275, %274 : vector<1x1xf32>
    %277 = tpu.reciprocal %276 {approx = true} : vector<1x1xf32> -> vector<1x1xf32>
    %cst_244 = arith.constant 0.000000e+00 : f32
    %cst_245 = arith.constant 1.000000e+00 : f32
    %278 = vector.broadcast %cst_244 : f32 to vector<1x1xf32>
    %279 = arith.maximumf %278, %277 : vector<1x1xf32>
    %280 = vector.broadcast %cst_245 : f32 to vector<1x1xf32>
    %281 = arith.minimumf %280, %279 : vector<1x1xf32>
    %282 = vector.shape_cast %281 : vector<1x1xf32> to vector<1x1xf32>
    %283 = vector.broadcast %282 : vector<1x1xf32> to vector<1x128xf32>
    %c0_246 = arith.constant 0 : index
    %c0_247 = arith.constant 0 : index
    %c0_248 = arith.constant 0 : index
    %284 = vector.load %arg19[%c0_246, %c0_247, %c0_248] : memref<1x1x128xf32, #tpu.memory_space<vmem>>, vector<1x1x128xf32>
    %285 = vector.shape_cast %284 : vector<1x1x128xf32> to vector<1x128xf32>
    %286 = vector.shape_cast %283 : vector<1x128xf32> to vector<1x1x128xf32>
    tpu.vector_store %arg19[%c0_246, %c0_247, %c0_248], %286 {strides = array<i32>} : memref<1x1x128xf32, #tpu.memory_space<vmem>>, vector<1x1x128xf32>,
    return
  }
  func.func @transform_0(%arg0: i32) -> (i32, i32, i32) {
    %c0_i32 = arith.constant 0 : i32
    %c0_i32_0 = arith.constant 0 : i32
    %c0_i32_1 = arith.constant 0 : i32
    return %arg0, %c0_i32, %c0_i32_0 : i32, i32, i32
  }
  func.func @transform_1(%arg0: i32) -> (i32, i32) {
    %c0_i32 = arith.constant 0 : i32
    %c0_i32_0 = arith.constant 0 : i32
    %c0_i32_1 = arith.constant 0 : i32
    return %c0_i32, %c0_i32_0 : i32, i32
  }
  func.func @transform_2(%arg0: i32) -> (i32, i32) {
    %c0_i32 = arith.constant 0 : i32
    %c0_i32_0 = arith.constant 0 : i32
    %c0_i32_1 = arith.constant 0 : i32
    return %c0_i32, %c0_i32_0 : i32, i32
  }
  func.func @transform_3(%arg0: i32) -> (i32, i32) {
    %c0_i32 = arith.constant 0 : i32
    %c0_i32_0 = arith.constant 0 : i32
    %c0_i32_1 = arith.constant 0 : i32
    return %c0_i32, %c0_i32_0 : i32, i32
  }
  func.func @transform_4(%arg0: i32) -> (i32, i32, i32) {
    %c0_i32 = arith.constant 0 : i32
    %c0_i32_0 = arith.constant 0 : i32
    %c0_i32_1 = arith.constant 0 : i32
    %c0_i32_2 = arith.constant 0 : i32
    return %c0_i32, %c0_i32_0, %c0_i32_1 : i32, i32, i32
  }
  func.func @transform_5(%arg0: i32) -> (i32, i32, i32) {
    %c0_i32 = arith.constant 0 : i32
    %c0_i32_0 = arith.constant 0 : i32
    %c0_i32_1 = arith.constant 0 : i32
    %c0_i32_2 = arith.constant 0 : i32
    return %c0_i32, %c0_i32_0, %c0_i32_1 : i32, i32, i32
  }
  func.func @transform_6(%arg0: i32) -> (i32, i32) {
    %c0_i32 = arith.constant 0 : i32
    %c0_i32_0 = arith.constant 0 : i32
    %c0_i32_1 = arith.constant 0 : i32
    return %c0_i32, %c0_i32_0 : i32, i32
  }
  func.func @transform_7(%arg0: i32) -> (i32, i32) {
    %c0_i32 = arith.constant 0 : i32
    %c0_i32_0 = arith.constant 0 : i32
    %c0_i32_1 = arith.constant 0 : i32
    return %c0_i32, %c0_i32_0 : i32, i32
  }
  func.func @transform_8(%arg0: i32) -> (i32, i32, i32) {
    %c0_i32 = arith.constant 0 : i32
    %c0_i32_0 = arith.constant 0 : i32
    %c0_i32_1 = arith.constant 0 : i32
    %c0_i32_2 = arith.constant 0 : i32
    return %c0_i32, %c0_i32_0, %c0_i32_1 : i32, i32, i32
  }
  func.func @transform_9(%arg0: i32) -> (i32, i32, i32) {
    %c0_i32 = arith.constant 0 : i32
    %c0_i32_0 = arith.constant 0 : i32
    %c0_i32_1 = arith.constant 0 : i32
    %c0_i32_2 = arith.constant 0 : i32
    return %c0_i32, %c0_i32_0, %c0_i32_1 : i32, i32, i32
  }
  func.func @transform_10(%arg0: i32) -> (i32, i32) {
    %c0_i32 = arith.constant 0 : i32
    %c0_i32_0 = arith.constant 0 : i32
    %c0_i32_1 = arith.constant 0 : i32
    return %c0_i32, %c0_i32_0 : i32, i32
  }
  func.func @transform_11(%arg0: i32) -> (i32, i32) {
    %c0_i32 = arith.constant 0 : i32
    %c0_i32_0 = arith.constant 0 : i32
    %c0_i32_1 = arith.constant 0 : i32
    return %c0_i32, %c0_i32_0 : i32, i32
  }
  func.func @transform_12(%arg0: i32) -> (i32, i32, i32) {
    %c0_i32 = arith.constant 0 : i32
    %c0_i32_0 = arith.constant 0 : i32
    %c0_i32_1 = arith.constant 0 : i32
    %c0_i32_2 = arith.constant 0 : i32
    return %c0_i32, %c0_i32_0, %c0_i32_1 : i32, i32, i32
  }
  func.func @transform_13(%arg0: i32) -> (i32, i32, i32) {
    %c0_i32 = arith.constant 0 : i32
    %c0_i32_0 = arith.constant 0 : i32
    %c0_i32_1 = arith.constant 0 : i32
    %c0_i32_2 = arith.constant 0 : i32
    return %c0_i32, %c0_i32_0, %c0_i32_1 : i32, i32, i32
  }
  func.func @transform_14(%arg0: i32) -> (i32, i32) {
    %c0_i32 = arith.constant 0 : i32
    %c0_i32_0 = arith.constant 0 : i32
    %c0_i32_1 = arith.constant 0 : i32
    return %c0_i32, %c0_i32_0 : i32, i32
  }
  func.func @transform_15(%arg0: i32) -> (i32, i32) {
    %c0_i32 = arith.constant 0 : i32
    %c0_i32_0 = arith.constant 0 : i32
    %c0_i32_1 = arith.constant 0 : i32
    return %c0_i32, %c0_i32_0 : i32, i32
  }
  func.func @transform_16(%arg0: i32) -> (i32, i32) {
    %c0_i32 = arith.constant 0 : i32
    %c0_i32_0 = arith.constant 0 : i32
    %c0_i32_1 = arith.constant 0 : i32
    return %c0_i32, %c0_i32_0 : i32, i32
  }
  func.func @transform_17(%arg0: i32) -> (i32, i32) {
    %c0_i32 = arith.constant 0 : i32
    %c0_i32_0 = arith.constant 0 : i32
    %c0_i32_1 = arith.constant 0 : i32
    return %c0_i32, %c0_i32_0 : i32, i32
  }
  func.func @transform_18(%arg0: i32) -> (i32, i32, i32) {
    %c0_i32 = arith.constant 0 : i32
    %c0_i32_0 = arith.constant 0 : i32
    %c0_i32_1 = arith.constant 0 : i32
    return %arg0, %c0_i32, %c0_i32_0 : i32, i32, i32
  }
}

</mosaic_0001>

<llo_original>
// kernel: discriminator_forward.1
$region0: #{discriminator_forward.1}
  #allocation0 [shape = 'u32[]', space=smem, size = 0x4, offset = 0x4, fixed_abs, tag = 'smem constant byte address 0x4 - core index']
  #allocation1 [shape = 'u32[144,128]{1,0:T(1,128)}', space=vmem, size = 0x12000, scoped, tag = 'internal scratch']
  #allocation2 [shape = 'f32[1,1]{1,0:T(1,128)S(1)}', space=vmem, size = 0x200, scoped, tag = 'scoped memory for discriminator_forward.1']
  %s0 = inlined_call_operand.vmem [shape: bf16[2,256,27], index: 0, kind: input, shape index: {}]
  %s1 = inlined_call_operand.vmem [shape: bf16[27,16], index: 1, kind: input, shape index: {}]
  %s2 = inlined_call_operand.vmem [shape: f32[1,16], index: 2, kind: input, shape index: {}]
  %s3 = inlined_call_operand.vmem [shape: f32[1,16], index: 3, kind: input, shape index: {}]
  %s4 = inlined_call_operand.vmem [shape: bf16[9,64,256], index: 4, kind: input, shape index: {}]
  %s5 = inlined_call_operand.vmem [shape: bf16[9,16,32], index: 5, kind: input, shape index: {}]
  %s6 = inlined_call_operand.vmem [shape: f32[1,32], index: 6, kind: input, shape index: {}]
  %s7 = inlined_call_operand.vmem [shape: f32[1,32], index: 7, kind: input, shape index: {}]
  %s8 = inlined_call_operand.vmem [shape: bf16[9,16,64], index: 8, kind: input, shape index: {}]
  %s9 = inlined_call_operand.vmem [shape: bf16[9,32,64], index: 9, kind: input, shape index: {}]
  %s10 = inlined_call_operand.vmem [shape: f32[1,64], index: 10, kind: input, shape index: {}]
  %s11 = inlined_call_operand.vmem [shape: f32[1,64], index: 11, kind: input, shape index: {}]
  %s12 = inlined_call_operand.vmem [shape: bf16[9,4,16], index: 12, kind: input, shape index: {}]
  %s13 = inlined_call_operand.vmem [shape: bf16[9,64,128], index: 13, kind: input, shape index: {}]
  %s14 = inlined_call_operand.vmem [shape: f32[1,128], index: 14, kind: input, shape index: {}]
  %s15 = inlined_call_operand.vmem [shape: f32[1,128], index: 15, kind: input, shape index: {}]
  %s16 = inlined_call_operand.vmem [shape: f32[4,128], index: 16, kind: input, shape index: {}]
  %s17 = inlined_call_operand.<no memory space> [shape: f32[1,1], index: 17, kind: input, shape index: {}]
  %s18 = inlined_call_operand.vmem [shape: f32[2,1,128], index: 18, kind: output, shape index: {}]
  %s19 = sld [smem:[#allocation0]]
  $region105: #{discriminator_forward.1} parent=0
    _
  %s21 = ssub.s32 1, %s19
  %s22 = scalar_select 0, %s21, %s19
  %v23 = vstv %s17
  %24 = vst [vmem:[#allocation2] sm:$0x1] %v23
  loop: start=0, step=1, limit=4
  $region2: #{discriminator_forward.1} parent=0 // loop_pre_header
    _
  $region3: #{discriminator_forward.1} parent=0 // loop_header
    %s26 = sphi 0, %s30
    %p27 = scmp.ge.s32.totalorder %s26, 4
    %s36 = sphi 0, %s38
    %s39 = sphi 0, %s36
    %s40 = sphi 0, %s39
    %s56 = sphi 0, %s40
    %s60 = sphi 0, %s60
    %s62 = sphi 0, %s60
    %s63 = sphi 0, %s62
    %s77 = sphi 0, %s63
    %s81 = sphi 0, %s81
    %s83 = sphi 0, %s81
    %s84 = sphi 0, %s83
    %s98 = sphi 0, %s84
    %s102 = sphi 0, %s102
    %s104 = sphi 0, %s102
    %s105 = sphi 0, %s104
    %s119 = sphi 0, %s105
    %s123 = sphi 0, %s123
    %s125 = sphi 0, %s123
    %s126 = sphi 0, %s125
    %s140 = sphi 0, %s126
    %s144 = sphi 0, %s144
    %s146 = sphi 0, %s144
    %s147 = sphi 0, %s146
    %s161 = sphi 0, %s147
    %s165 = sphi 0, %s165
    %s167 = sphi 0, %s165
    %s168 = sphi 0, %s167
    %s182 = sphi 0, %s168
    %s186 = sphi 0, %s186
    %s188 = sphi 0, %s186
    %s189 = sphi 0, %s188
    %s203 = sphi 0, %s189
    %s207 = sphi 0, %s207
    %s209 = sphi 0, %s207
    %s210 = sphi 0, %s209
    %s224 = sphi 0, %s210
    %s228 = sphi 0, %s228
    %s230 = sphi 0, %s228
    %s231 = sphi 0, %s230
    %s245 = sphi 0, %s231
    %s249 = sphi 0, %s249
    %s251 = sphi 0, %s249
    %s252 = sphi 0, %s251
    %s266 = sphi 0, %s252
    %s270 = sphi 0, %s270
    %s272 = sphi 0, %s270
    %s273 = sphi 0, %s272
    %s287 = sphi 0, %s273
    %s291 = sphi 0, %s291
    %s293 = sphi 0, %s291
    %s294 = sphi 0, %s293
    %s308 = sphi 0, %s294
    %s312 = sphi 0, %s312
    %s314 = sphi 0, %s312
    %s315 = sphi 0, %s314
    %s329 = sphi 0, %s315
    %s333 = sphi 0, %s333
    %s335 = sphi 0, %s333
    %s336 = sphi 0, %s335
    %s350 = sphi 0, %s336
    %s354 = sphi 0, %s354
    %s356 = sphi 0, %s354
    %s357 = sphi 0, %s356
    %s371 = sphi 0, %s357
    %s375 = sphi 0, %s375
    %s377 = sphi 0, %s375
    %s378 = sphi 0, %s377
    %s392 = sphi 0, %s378
    %s396 = sphi 0, %s396
    %s398 = sphi 0, %s396
    %s399 = sphi 0, %s398
    %s413 = sphi 0, %s399
    %s419 = sphi 0, %s421
    %s422 = sphi 0, %s419
    %s423 = sphi 0, %s422
    %s439 = sphi 0, %s423
  $region4: #{discriminator_forward.1} parent=0 // loop_header_branch
    %29 = sbr.rel (%p27) target = $region8
  $region5: #{discriminator_forward.1} parent=0 // loop_body
    %s31 = ssub.s32 %s26, 1
    %s32 = ssub.s32 %s26, 2
    %s33 = sadd.s32 %s26, 1
    %s34 = ssub.s32 %s26, %s33
    %p35 = scmp.eq.s32.totalorder %s34, 0
    %s37 = sadd.s32 %s36, 1
    %s38 = scalar_select %p35, %s36, %s37
    %p41 = pneg %p35
    %p42 = scmp.eq.s32.totalorder %s26, 1
    %p43 = por %p41, %p42
    %p44 = scmp.ne.s32.totalorder %s36, %s39
    %p45 = scmp.eq.s32.totalorder %s26, 0
    %p46 = por %p44, %p45
    %p47 = scmp.ne.s32.totalorder %s36, %s39
    %p48 = scmp.eq.s32.totalorder %s31, 1
    %p49 = por %p47, %p48
    %p50 = scmp.ne.s32.totalorder %s39, %s40
    %p51 = scmp.eq.s32.totalorder %s31, 0
    %p52 = por %p50, %p51
    %p53 = scmp.ne.s32.totalorder %s39, %s40
    %p54 = scmp.eq.s32.totalorder %s32, 1
    %p55 = por %p53, %p54
    %p57 = scmp.ne.s32.totalorder %s40, %s56
    %p58 = scmp.eq.s32.totalorder %s32, 0
    %p59 = por %p57, %p58
    %s61 = sadd.s32 %s60, 1
    %p64 = scmp.eq.s32.totalorder %s26, 1
    %p65 = scmp.ne.s32.totalorder %s60, %s62
    %p66 = scmp.eq.s32.totalorder %s26, 0
    %p67 = por %p65, %p66
    %p68 = scmp.ne.s32.totalorder %s60, %s62
    %p69 = scmp.eq.s32.totalorder %s31, 1
    %p70 = por %p68, %p69
    %p71 = scmp.ne.s32.totalorder %s62, %s63
    %p72 = scmp.eq.s32.totalorder %s31, 0
    %p73 = por %p71, %p72
    %p74 = scmp.ne.s32.totalorder %s62, %s63
    %p75 = scmp.eq.s32.totalorder %s32, 1
    %p76 = por %p74, %p75
    %p78 = scmp.ne.s32.totalorder %s63, %s77
    %p79 = scmp.eq.s32.totalorder %s32, 0
    %p80 = por %p78, %p79
    %s82 = sadd.s32 %s81, 1
    %p85 = scmp.eq.s32.totalorder %s26, 1
    %p86 = scmp.ne.s32.totalorder %s81, %s83
    %p87 = scmp.eq.s32.totalorder %s26, 0
    %p88 = por %p86, %p87
    %p89 = scmp.ne.s32.totalorder %s81, %s83
    %p90 = scmp.eq.s32.totalorder %s31, 1
    %p91 = por %p89, %p90
    %p92 = scmp.ne.s32.totalorder %s83, %s84
    %p93 = scmp.eq.s32.totalorder %s31, 0
    %p94 = por %p92, %p93
    %p95 = scmp.ne.s32.totalorder %s83, %s84
    %p96 = scmp.eq.s32.totalorder %s32, 1
    %p97 = por %p95, %p96
    %p99 = scmp.ne.s32.totalorder %s84, %s98
    %p100 = scmp.eq.s32.totalorder %s32, 0
    %p101 = por %p99, %p100
    %s103 = sadd.s32 %s102, 1
    %p106 = scmp.eq.s32.totalorder %s26, 1
    %p107 = scmp.ne.s32.totalorder %s102, %s104
    %p108 = scmp.eq.s32.totalorder %s26, 0
    %p109 = por %p107, %p108
    %p110 = scmp.ne.s32.totalorder %s102, %s104
    %p111 = scmp.eq.s32.totalorder %s31, 1
    %p112 = por %p110, %p111
    %p113 = scmp.ne.s32.totalorder %s104, %s105
    %p114 = scmp.eq.s32.totalorder %s31, 0
    %p115 = por %p113, %p114
    %p116 = scmp.ne.s32.totalorder %s104, %s105
    %p117 = scmp.eq.s32.totalorder %s32, 1
    %p118 = por %p116, %p117
    %p120 = scmp.ne.s32.totalorder %s105, %s119
    %p121 = scmp.eq.s32.totalorder %s32, 0
    %p122 = por %p120, %p121
    %s124 = sadd.s32 %s123, 1
    %p127 = scmp.eq.s32.totalorder %s26, 1
    %p128 = scmp.ne.s32.totalorder %s123, %s125
    %p129 = scmp.eq.s32.totalorder %s26, 0
    %p130 = por %p128, %p129
    %p131 = scmp.ne.s32.totalorder %s123, %s125
    %p132 = scmp.eq.s32.totalorder %s31, 1
    %p133 = por %p131, %p132
    %p134 = scmp.ne.s32.totalorder %s125, %s126
    %p135 = scmp.eq.s32.totalorder %s31, 0
    %p136 = por %p134, %p135
    %p137 = scmp.ne.s32.totalorder %s125, %s126
    %p138 = scmp.eq.s32.totalorder %s32, 1
    %p139 = por %p137, %p138
    %p141 = scmp.ne.s32.totalorder %s126, %s140
    %p142 = scmp.eq.s32.totalorder %s32, 0
    %p143 = por %p141, %p142
    %s145 = sadd.s32 %s144, 1
    %p148 = scmp.eq.s32.totalorder %s26, 1
    %p149 = scmp.ne.s32.totalorder %s144, %s146
    %p150 = scmp.eq.s32.totalorder %s26, 0
    %p151 = por %p149, %p150
    %p152 = scmp.ne.s32.totalorder %s144, %s146
    %p153 = scmp.eq.s32.totalorder %s31, 1
    %p154 = por %p152, %p153
    %p155 = scmp.ne.s32.totalorder %s146, %s147
    %p156 = scmp.eq.s32.totalorder %s31, 0
    %p157 = por %p155, %p156
    %p158 = scmp.ne.s32.totalorder %s146, %s147
    %p159 = scmp.eq.s32.totalorder %s32, 1
    %p160 = por %p158, %p159
    %p162 = scmp.ne.s32.totalorder %s147, %s161
    %p163 = scmp.eq.s32.totalorder %s32, 0
    %p164 = por %p162, %p163
    %s166 = sadd.s32 %s165, 1
    %p169 = scmp.eq.s32.totalorder %s26, 1
    %p170 = scmp.ne.s32.totalorder %s165, %s167
    %p171 = scmp.eq.s32.totalorder %s26, 0
    %p172 = por %p170, %p171
    %p173 = scmp.ne.s32.totalorder %s165, %s167
    %p174 = scmp.eq.s32.totalorder %s31, 1
    %p175 = por %p173, %p174
    %p176 = scmp.ne.s32.totalorder %s167, %s168
    %p177 = scmp.eq.s32.totalorder %s31, 0
    %p178 = por %p176, %p177
    %p179 = scmp.ne.s32.totalorder %s167, %s168
    %p180 = scmp.eq.s32.totalorder %s32, 1
    %p181 = por %p179, %p180
    %p183 = scmp.ne.s32.totalorder %s168, %s182
    %p184 = scmp.eq.s32.totalorder %s32, 0
    %p185 = por %p183, %p184
    %s187 = sadd.s32 %s186, 1
    %p190 = scmp.eq.s32.totalorder %s26, 1
    %p191 = scmp.ne.s32.totalorder %s186, %s188
    %p192 = scmp.eq.s32.totalorder %s26, 0
    %p193 = por %p191, %p192
    %p194 = scmp.ne.s32.totalorder %s186, %s188
    %p195 = scmp.eq.s32.totalorder %s31, 1
    %p196 = por %p194, %p195
    %p197 = scmp.ne.s32.totalorder %s188, %s189
    %p198 = scmp.eq.s32.totalorder %s31, 0
    %p199 = por %p197, %p198
    %p200 = scmp.ne.s32.totalorder %s188, %s189
    %p201 = scmp.eq.s32.totalorder %s32, 1
    %p202 = por %p200, %p201
    %p204 = scmp.ne.s32.totalorder %s189, %s203
    %p205 = scmp.eq.s32.totalorder %s32, 0
    %p206 = por %p204, %p205
    %s208 = sadd.s32 %s207, 1
    %p211 = scmp.eq.s32.totalorder %s26, 1
    %p212 = scmp.ne.s32.totalorder %s207, %s209
    %p213 = scmp.eq.s32.totalorder %s26, 0
    %p214 = por %p212, %p213
    %p215 = scmp.ne.s32.totalorder %s207, %s209
    %p216 = scmp.eq.s32.totalorder %s31, 1
    %p217 = por %p215, %p216
    %p218 = scmp.ne.s32.totalorder %s209, %s210
    %p219 = scmp.eq.s32.totalorder %s31, 0
    %p220 = por %p218, %p219
    %p221 = scmp.ne.s32.totalorder %s209, %s210
    %p222 = scmp.eq.s32.totalorder %s32, 1
    %p223 = por %p221, %p222
    %p225 = scmp.ne.s32.totalorder %s210, %s224
    %p226 = scmp.eq.s32.totalorder %s32, 0
    %p227 = por %p225, %p226
    %s229 = sadd.s32 %s228, 1
    %p232 = scmp.eq.s32.totalorder %s26, 1
    %p233 = scmp.ne.s32.totalorder %s228, %s230
    %p234 = scmp.eq.s32.totalorder %s26, 0
    %p235 = por %p233, %p234
    %p236 = scmp.ne.s32.totalorder %s228, %s230
    %p237 = scmp.eq.s32.totalorder %s31, 1
    %p238 = por %p236, %p237
    %p239 = scmp.ne.s32.totalorder %s230, %s231
    %p240 = scmp.eq.s32.totalorder %s31, 0
    %p241 = por %p239, %p240
    %p242 = scmp.ne.s32.totalorder %s230, %s231
    %p243 = scmp.eq.s32.totalorder %s32, 1
    %p244 = por %p242, %p243
    %p246 = scmp.ne.s32.totalorder %s231, %s245
    %p247 = scmp.eq.s32.totalorder %s32, 0
    %p248 = por %p246, %p247
    %s250 = sadd.s32 %s249, 1
    %p253 = scmp.eq.s32.totalorder %s26, 1
    %p254 = scmp.ne.s32.totalorder %s249, %s251
    %p255 = scmp.eq.s32.totalorder %s26, 0
    %p256 = por %p254, %p255
    %p257 = scmp.ne.s32.totalorder %s249, %s251
    %p258 = scmp.eq.s32.totalorder %s31, 1
    %p259 = por %p257, %p258
    %p260 = scmp.ne.s32.totalorder %s251, %s252
    %p261 = scmp.eq.s32.totalorder %s31, 0
    %p262 = por %p260, %p261
    %p263 = scmp.ne.s32.totalorder %s251, %s252
    %p264 = scmp.eq.s32.totalorder %s32, 1
    %p265 = por %p263, %p264
    %p267 = scmp.ne.s32.totalorder %s252, %s266
    %p268 = scmp.eq.s32.totalorder %s32, 0
    %p269 = por %p267, %p268
    %s271 = sadd.s32 %s270, 1
    %p274 = scmp.eq.s32.totalorder %s26, 1
    %p275 = scmp.ne.s32.totalorder %s270, %s272
    %p276 = scmp.eq.s32.totalorder %s26, 0
    %p277 = por %p275, %p276
    %p278 = scmp.ne.s32.totalorder %s270, %s272
    %p279 = scmp.eq.s32.totalorder %s31, 1
    %p280 = por %p278, %p279
    %p281 = scmp.ne.s32.totalorder %s272, %s273
    %p282 = scmp.eq.s32.totalorder %s31, 0
    %p283 = por %p281, %p282
    %p284 = scmp.ne.s32.totalorder %s272, %s273
    %p285 = scmp.eq.s32.totalorder %s32, 1
    %p286 = por %p284, %p285
    %p288 = scmp.ne.s32.totalorder %s273, %s287
    %p289 = scmp.eq.s32.totalorder %s32, 0
    %p290 = por %p288, %p289
    %s292 = sadd.s32 %s291, 1
    %p295 = scmp.eq.s32.totalorder %s26, 1
    %p296 = scmp.ne.s32.totalorder %s291, %s293
    %p297 = scmp.eq.s32.totalorder %s26, 0
    %p298 = por %p296, %p297
    %p299 = scmp.ne.s32.totalorder %s291, %s293
    %p300 = scmp.eq.s32.totalorder %s31, 1
    %p301 = por %p299, %p300
    %p302 = scmp.ne.s32.totalorder %s293, %s294
    %p303 = scmp.eq.s32.totalorder %s31, 0
    %p304 = por %p302, %p303
    %p305 = scmp.ne.s32.totalorder %s293, %s294
    %p306 = scmp.eq.s32.totalorder %s32, 1
    %p307 = por %p305, %p306
    %p309 = scmp.ne.s32.totalorder %s294, %s308
    %p310 = scmp.eq.s32.totalorder %s32, 0
    %p311 = por %p309, %p310
    %s313 = sadd.s32 %s312, 1
    %p316 = scmp.eq.s32.totalorder %s26, 1
    %p317 = scmp.ne.s32.totalorder %s312, %s314
    %p318 = scmp.eq.s32.totalorder %s26, 0
    %p319 = por %p317, %p318
    %p320 = scmp.ne.s32.totalorder %s312, %s314
    %p321 = scmp.eq.s32.totalorder %s31, 1
    %p322 = por %p320, %p321
    %p323 = scmp.ne.s32.totalorder %s314, %s315
    %p324 = scmp.eq.s32.totalorder %s31, 0
    %p325 = por %p323, %p324
    %p326 = scmp.ne.s32.totalorder %s314, %s315
    %p327 = scmp.eq.s32.totalorder %s32, 1
    %p328 = por %p326, %p327
    %p330 = scmp.ne.s32.totalorder %s315, %s329
    %p331 = scmp.eq.s32.totalorder %s32, 0
    %p332 = por %p330, %p331
    %s334 = sadd.s32 %s333, 1
    %p337 = scmp.eq.s32.totalorder %s26, 1
    %p338 = scmp.ne.s32.totalorder %s333, %s335
    %p339 = scmp.eq.s32.totalorder %s26, 0
    %p340 = por %p338, %p339
    %p341 = scmp.ne.s32.totalorder %s333, %s335
    %p342 = scmp.eq.s32.totalorder %s31, 1
    %p343 = por %p341, %p342
    %p344 = scmp.ne.s32.totalorder %s335, %s336
    %p345 = scmp.eq.s32.totalorder %s31, 0
    %p346 = por %p344, %p345
    %p347 = scmp.ne.s32.totalorder %s335, %s336
    %p348 = scmp.eq.s32.totalorder %s32, 1
    %p349 = por %p347, %p348
    %p351 = scmp.ne.s32.totalorder %s336, %s350
    %p352 = scmp.eq.s32.totalorder %s32, 0
    %p353 = por %p351, %p352
    %s355 = sadd.s32 %s354, 1
    %p358 = scmp.eq.s32.totalorder %s26, 1
    %p359 = scmp.ne.s32.totalorder %s354, %s356
    %p360 = scmp.eq.s32.totalorder %s26, 0
    %p361 = por %p359, %p360
    %p362 = scmp.ne.s32.totalorder %s354, %s356
    %p363 = scmp.eq.s32.totalorder %s31, 1
    %p364 = por %p362, %p363
    %p365 = scmp.ne.s32.totalorder %s356, %s357
    %p366 = scmp.eq.s32.totalorder %s31, 0
    %p367 = por %p365, %p366
    %p368 = scmp.ne.s32.totalorder %s356, %s357
    %p369 = scmp.eq.s32.totalorder %s32, 1
    %p370 = por %p368, %p369
    %p372 = scmp.ne.s32.totalorder %s357, %s371
    %p373 = scmp.eq.s32.totalorder %s32, 0
    %p374 = por %p372, %p373
    %s376 = sadd.s32 %s375, 1
    %p379 = scmp.eq.s32.totalorder %s26, 1
    %p380 = scmp.ne.s32.totalorder %s375, %s377
    %p381 = scmp.eq.s32.totalorder %s26, 0
    %p382 = por %p380, %p381
    %p383 = scmp.ne.s32.totalorder %s375, %s377
    %p384 = scmp.eq.s32.totalorder %s31, 1
    %p385 = por %p383, %p384
    %p386 = scmp.ne.s32.totalorder %s377, %s378
    %p387 = scmp.eq.s32.totalorder %s31, 0
    %p388 = por %p386, %p387
    %p389 = scmp.ne.s32.totalorder %s377, %s378
    %p390 = scmp.eq.s32.totalorder %s32, 1
    %p391 = por %p389, %p390
    %p393 = scmp.ne.s32.totalorder %s378, %s392
    %p394 = scmp.eq.s32.totalorder %s32, 0
    %p395 = por %p393, %p394
    %s397 = sadd.s32 %s396, 1
    %p400 = scmp.eq.s32.totalorder %s26, 1
    %p401 = scmp.ne.s32.totalorder %s396, %s398
    %p402 = scmp.eq.s32.totalorder %s26, 0
    %p403 = por %p401, %p402
    %p404 = scmp.ne.s32.totalorder %s396, %s398
    %p405 = scmp.eq.s32.totalorder %s31, 1
    %p406 = por %p404, %p405
    %p407 = scmp.ne.s32.totalorder %s398, %s399
    %p408 = scmp.eq.s32.totalorder %s31, 0
    %p409 = por %p407, %p408
    %p410 = scmp.ne.s32.totalorder %s398, %s399
    %p411 = scmp.eq.s32.totalorder %s32, 1
    %p412 = por %p410, %p411
    %p414 = scmp.ne.s32.totalorder %s399, %s413
    %p415 = scmp.eq.s32.totalorder %s32, 0
    %p416 = por %p414, %p415
    %s417 = ssub.s32 %s26, %s33
    %p418 = scmp.eq.s32.totalorder %s417, 0
    %s420 = sadd.s32 %s419, 1
    %s421 = scalar_select %p418, %s419, %s420
    %p424 = pneg %p418
    %p425 = scmp.eq.s32.totalorder %s26, 1
    %p426 = por %p424, %p425
    %p427 = scmp.ne.s32.totalorder %s419, %s422
    %p428 = scmp.eq.s32.totalorder %s26, 0
    %p429 = por %p427, %p428
    %p430 = scmp.ne.s32.totalorder %s419, %s422
    %p431 = scmp.eq.s32.totalorder %s31, 1
    %p432 = por %p430, %p431
    %p433 = scmp.ne.s32.totalorder %s422, %s423
    %p434 = scmp.eq.s32.totalorder %s31, 0
    %p435 = por %p433, %p434
    %p436 = scmp.ne.s32.totalorder %s422, %s423
    %p437 = scmp.eq.s32.totalorder %s32, 1
    %p438 = por %p436, %p437
    %p440 = scmp.ne.s32.totalorder %s423, %s439
    %p441 = scmp.eq.s32.totalorder %s32, 0
    %p442 = por %p440, %p441
    %p443 = scmp.le.s32.totalorder 1, %s26
    %p444 = scmp.lt.s32.totalorder %s26, 3
    %p445 = pnand %p443, %p444
    %p446 = pneg %p445
    // Predicated region
    $region9: #{discriminator_forward.1} parent=5 // pred_check
      _
    $region10: #{discriminator_forward.1} parent=5 // pred_check_branch
      %448 = sbr.rel (%p445) target = $region12
    $region11: #{discriminator_forward.1} parent=5 // pred_region
      %s449 = ssub.s32 %s26, 1
      // Predicated region
      $region13: #{discriminator_forward.1} parent=11 // pred_check
        %p450 = pneg %p73
      $region14: #{discriminator_forward.1} parent=11 // pred_check_branch
        %452 = sbr.rel (%p450) target = $region16
      $region15: #{discriminator_forward.1} parent=11 // pred_region
        _
      $region16: #{discriminator_forward.1} parent=11 // pred_fallthru
        _
      // Predicated region
      $region17: #{discriminator_forward.1} parent=11 // pred_check
        %p453 = pneg %p94
      $region18: #{discriminator_forward.1} parent=11 // pred_check_branch
        %455 = sbr.rel (%p453) target = $region20
      $region19: #{discriminator_forward.1} parent=11 // pred_region
        _
      $region20: #{discriminator_forward.1} parent=11 // pred_fallthru
        _
      // Predicated region
      $region21: #{discriminator_forward.1} parent=11 // pred_check
        %p456 = pneg %p115
      $region22: #{discriminator_forward.1} parent=11 // pred_check_branch
        %458 = sbr.rel (%p456) target = $region24
      $region23: #{discriminator_forward.1} parent=11 // pred_region
        _
      $region24: #{discriminator_forward.1} parent=11 // pred_fallthru
        _
      // Predicated region
      $region25: #{discriminator_forward.1} parent=11 // pred_check
        %p459 = pneg %p136
      $region26: #{discriminator_forward.1} parent=11 // pred_check_branch
        %461 = sbr.rel (%p459) target = $region28
      $region27: #{discriminator_forward.1} parent=11 // pred_region
        _
      $region28: #{discriminator_forward.1} parent=11 // pred_fallthru
        _
      // Predicated region
      $region29: #{discriminator_forward.1} parent=11 // pred_check
        %p462 = pneg %p157
      $region30: #{discriminator_forward.1} parent=11 // pred_check_branch
        %464 = sbr.rel (%p462) target = $region32
      $region31: #{discriminator_forward.1} parent=11 // pred_region
        _
      $region32: #{discriminator_forward.1} parent=11 // pred_fallthru
        _
      // Predicated region
      $region33: #{discriminator_forward.1} parent=11 // pred_check
        %p465 = pneg %p178
      $region34: #{discriminator_forward.1} parent=11 // pred_check_branch
        %467 = sbr.rel (%p465) target = $region36
      $region35: #{discriminator_forward.1} parent=11 // pred_region
        _
      $region36: #{discriminator_forward.1} parent=11 // pred_fallthru
        _
      // Predicated region
      $region37: #{discriminator_forward.1} parent=11 // pred_check
        %p468 = pneg %p199
      $region38: #{discriminator_forward.1} parent=11 // pred_check_branch
        %470 = sbr.rel (%p468) target = $region40
      $region39: #{discriminator_forward.1} parent=11 // pred_region
        _
      $region40: #{discriminator_forward.1} parent=11 // pred_fallthru
        _
      // Predicated region
      $region41: #{discriminator_forward.1} parent=11 // pred_check
        %p471 = pneg %p220
      $region42: #{discriminator_forward.1} parent=11 // pred_check_branch
        %473 = sbr.rel (%p471) target = $region44
      $region43: #{discriminator_forward.1} parent=11 // pred_region
        _
      $region44: #{discriminator_forward.1} parent=11 // pred_fallthru
        _
      // Predicated region
      $region45: #{discriminator_forward.1} parent=11 // pred_check
        %p474 = pneg %p241
      $region46: #{discriminator_forward.1} parent=11 // pred_check_branch
        %476 = sbr.rel (%p474) target = $region48
      $region47: #{discriminator_forward.1} parent=11 // pred_region
        _
      $region48: #{discriminator_forward.1} parent=11 // pred_fallthru
        _
      // Predicated region
      $region49: #{discriminator_forward.1} parent=11 // pred_check
        %p477 = pneg %p262
      $region50: #{discriminator_forward.1} parent=11 // pred_check_branch
        %479 = sbr.rel (%p477) target = $region52
      $region51: #{discriminator_forward.1} parent=11 // pred_region
        _
      $region52: #{discriminator_forward.1} parent=11 // pred_fallthru
        _
      // Predicated region
      $region53: #{discriminator_forward.1} parent=11 // pred_check
        %p480 = pneg %p283
      $region54: #{discriminator_forward.1} parent=11 // pred_check_branch
        %482 = sbr.rel (%p480) target = $region56
      $region55: #{discriminator_forward.1} parent=11 // pred_region
        _
      $region56: #{discriminator_forward.1} parent=11 // pred_fallthru
        _
      // Predicated region
      $region57: #{discriminator_forward.1} parent=11 // pred_check
        %p483 = pneg %p304
      $region58: #{discriminator_forward.1} parent=11 // pred_check_branch
        %485 = sbr.rel (%p483) target = $region60
      $region59: #{discriminator_forward.1} parent=11 // pred_region
        _
      $region60: #{discriminator_forward.1} parent=11 // pred_fallthru
        _
      // Predicated region
      $region61: #{discriminator_forward.1} parent=11 // pred_check
        %p486 = pneg %p325
      $region62: #{discriminator_forward.1} parent=11 // pred_check_branch
        %488 = sbr.rel (%p486) target = $region64
      $region63: #{discriminator_forward.1} parent=11 // pred_region
        _
      $region64: #{discriminator_forward.1} parent=11 // pred_fallthru
        _
      // Predicated region
      $region65: #{discriminator_forward.1} parent=11 // pred_check
        %p489 = pneg %p346
      $region66: #{discriminator_forward.1} parent=11 // pred_check_branch
        %491 = sbr.rel (%p489) target = $region68
      $region67: #{discriminator_forward.1} parent=11 // pred_region
        _
      $region68: #{discriminator_forward.1} parent=11 // pred_fallthru
        _
      // Predicated region
      $region69: #{discriminator_forward.1} parent=11 // pred_check
        %p492 = pneg %p367
      $region70: #{discriminator_forward.1} parent=11 // pred_check_branch
        %494 = sbr.rel (%p492) target = $region72
      $region71: #{discriminator_forward.1} parent=11 // pred_region
        _
      $region72: #{discriminator_forward.1} parent=11 // pred_fallthru
        _
      // Predicated region
      $region73: #{discriminator_forward.1} parent=11 // pred_check
        %p495 = pneg %p388
      $region74: #{discriminator_forward.1} parent=11 // pred_check_branch
        %497 = sbr.rel (%p495) target = $region76
      $region75: #{discriminator_forward.1} parent=11 // pred_region
        _
      $region76: #{discriminator_forward.1} parent=11 // pred_fallthru
        _
      // Predicated region
      $region77: #{discriminator_forward.1} parent=11 // pred_check
        %p498 = pneg %p409
      $region78: #{discriminator_forward.1} parent=11 // pred_check_branch
        %500 = sbr.rel (%p498) target = $region80
      $region79: #{discriminator_forward.1} parent=11 // pred_region
        _
      $region80: #{discriminator_forward.1} parent=11 // pred_fallthru
        _
    $region12: #{discriminator_forward.1} parent=5 // pred_fallthru
      _
    %p501 = scmp.lt.s32.totalorder %s26, 2
    // Predicated region
    $region81: #{discriminator_forward.1} parent=5 // pred_check
      %p502 = pneg %p501
    $region82: #{discriminator_forward.1} parent=5 // pred_check_branch
      %504 = sbr.rel (%p502) target = $region84
    $region83: #{discriminator_forward.1} parent=5 // pred_region
      // Predicated region
      $region85: #{discriminator_forward.1} parent=83 // pred_check
        %p505 = pneg %p46
      $region86: #{discriminator_forward.1} parent=83 // pred_check_branch
        %507 = sbr.rel (%p505) target = $region88
      $region87: #{discriminator_forward.1} parent=83 // pred_region
        %p508 = scmp.lt.s32.totalorder %s26, 1
        %s509 = scalar_select %p508, %s26, 1
        %s510 = smul.addr %s509, 32
        %s511 = smul.addr %s510, 4
        %s512 = scalar_lea.vmem %s0, %s511
      $region88: #{discriminator_forward.1} parent=83 // pred_fallthru
        _
    $region84: #{discriminator_forward.1} parent=5 // pred_fallthru
      _
    %p513 = scmp.le.s32.totalorder 1, %s26
    %p514 = scmp.lt.s32.totalorder %s26, 3
    %p515 = pnand %p513, %p514
    %p516 = pneg %p515
    // Predicated region
    $region89: #{discriminator_forward.1} parent=5 // pred_check
      _
    $region90: #{discriminator_forward.1} parent=5 // pred_check_branch
      %518 = sbr.rel (%p515) target = $region92
    $region91: #{discriminator_forward.1} parent=5 // pred_region
      %s519 = ssub.s32 %s26, 1
      %p520 = scmp.lt.s32.totalorder %s31, 1
      %s521 = scalar_select %p520, %s31, 1
      %s522 = smul.addr %s521, 32
      %s523 = smul.addr %s522, 4
      %s524 = scalar_lea.vmem %s0, %s523
      %p525 = pneg %p52
      %p526 = pneg %p49
      %p527 = pneg %p73
      %p528 = pneg %p70
      %p529 = pneg %p94
      %p530 = pneg %p91
      %p531 = pneg %p115
      %p532 = pneg %p112
      %p533 = pneg %p136
      %p534 = pneg %p133
      %p535 = pneg %p157
      %p536 = pneg %p154
      %p537 = pneg %p178
      %p538 = pneg %p175
      %p539 = pneg %p199
      %p540 = pneg %p196
      %p541 = pneg %p220
      %p542 = pneg %p217
      %p543 = pneg %p241
      %p544 = pneg %p238
      %p545 = pneg %p262
      %p546 = pneg %p259
      %p547 = pneg %p283
      %p548 = pneg %p280
      %p549 = pneg %p304
      %p550 = pneg %p301
      %p551 = pneg %p325
      %p552 = pneg %p322
      %p553 = pneg %p346
      %p554 = pneg %p343
      %p555 = pneg %p367
      %p556 = pneg %p364
      %p557 = pneg %p388
      %p558 = pneg %p385
      %p559 = pneg %p409
      %p560 = pneg %p406
      %p561 = pneg %p435
      %p562 = pneg %p432
      %p563 = scmp.lt.s32.totalorder %s31, 1
      %s564 = scalar_select %p563, %s31, 1
      %s565 = scalar_lea.vmem %s18, %s564
      %p566 = scmp.lt.s32.totalorder %s31, 1
      %s567 = scalar_select %p566, %s31, 1
      %s568 = smul.addr %s567, 32
      %s569 = smul.addr %s568, 4
      %s570 = scalar_lea.vmem %s0, %s569
      %p571 = scmp.lt.s32.totalorder %s31, 1
      %s572 = scalar_select %p571, %s31, 1
      %s573 = scalar_lea.vmem %s18, %s572
      %v575 = vld [vmem:[%s570] sm:$0xf]
      %v576 = vld [vmem:[%s570 + $0x4] sm:$0xf]
      %v577 = vld [vmem:[%s570 + $0x8] sm:$0xf]
      %v578 = vld [vmem:[%s570 + $0xc] sm:$0xf]
      %v579 = vld [vmem:[%s570 + $0x10] sm:$0xf]
      %v580 = vld [vmem:[%s570 + $0x14] sm:$0xf]
      %v581 = vld [vmem:[%s570 + $0x18] sm:$0xf]
      %v582 = vld [vmem:[%s570 + $0x1c] sm:$0xf]
      %v583 = vld [vmem:[%s570 + $0x20] sm:$0xf]
      %v584 = vld [vmem:[%s570 + $0x24] sm:$0xf]
      %v585 = vld [vmem:[%s570 + $0x28] sm:$0xf]
      %v586 = vld [vmem:[%s570 + $0x2c] sm:$0xf]
      %v587 = vld [vmem:[%s570 + $0x30] sm:$0xf]
      %v588 = vld [vmem:[%s570 + $0x34] sm:$0xf]
      %v589 = vld [vmem:[%s570 + $0x38] sm:$0xf]
      %v590 = vld [vmem:[%s570 + $0x3c] sm:$0xf]
      %v591 = vld [vmem:[%s570 + $0x40] sm:$0xf]
      %v592 = vld [vmem:[%s570 + $0x44] sm:$0xf]
      %v593 = vld [vmem:[%s570 + $0x48] sm:$0xf]
      %v594 = vld [vmem:[%s570 + $0x4c] sm:$0xf]
      %v595 = vld [vmem:[%s570 + $0x50] sm:$0xf]
      %v596 = vld [vmem:[%s570 + $0x54] sm:$0xf]
      %v597 = vld [vmem:[%s570 + $0x58] sm:$0xf]
      %v598 = vld [vmem:[%s570 + $0x5c] sm:$0xf]
      %v599 = vld [vmem:[%s570 + $0x60] sm:$0xf]
      %v600 = vld [vmem:[%s570 + $0x64] sm:$0xf]
      %v601 = vld [vmem:[%s570 + $0x68] sm:$0xf]
      %v602 = vld [vmem:[%s570 + $0x6c] sm:$0xf]
      %v603 = vld [vmem:[%s570 + $0x70] sm:$0xf]
      %v604 = vld [vmem:[%s570 + $0x74] sm:$0xf]
      %v605 = vld [vmem:[%s570 + $0x78] sm:$0xf]
      %v606 = vld [vmem:[%s570 + $0x7c] sm:$0xf]
      %v607 = vld [vmem:[%s1] sm:$0xf]
      %v608 = vld [vmem:[%s1 + $0x4] sm:$0xf]
      %v609 = vld [vmem:[%s1 + $0x8] sm:$0xf]
      %v610 = vld [vmem:[%s1 + $0xc] sm:$0x3]
      %v611 = vld [vmem:[%s2] sm:$0x1]
      %v612 = vld [vmem:[%s3] sm:$0x1]
      %v614 = vlaneseq
      %v615 = vshrl.u32 %v614, 7
      %v616 = vsub.s32 0, %v615
      %v617 = vrot.slane %v611, %v616
      %v651 = vunpack.c.l.b16 %v575
      %v652 = vunpack.c.l.b16 %v576
      %v653 = vunpack.c.l.b16 %v577
      %v654 = vunpack.c.l.b16 %v578
      %v655 = vunpack.c.l.b16 %v579
      %v656 = vunpack.c.l.b16 %v580
      %v657 = vunpack.c.l.b16 %v581
      %v658 = vunpack.c.l.b16 %v582
      %v659 = vunpack.c.l.b16 %v583
      %v660 = vunpack.c.l.b16 %v584
      %v661 = vunpack.c.l.b16 %v585
      %v662 = vunpack.c.l.b16 %v586
      %v663 = vunpack.c.l.b16 %v587
      %v664 = vunpack.c.l.b16 %v588
      %v665 = vunpack.c.l.b16 %v589
      %v666 = vunpack.c.l.b16 %v590
      %v667 = vunpack.c.l.b16 %v591
      %v668 = vunpack.c.l.b16 %v592
      %v669 = vunpack.c.l.b16 %v593
      %v670 = vunpack.c.l.b16 %v594
      %v671 = vunpack.c.l.b16 %v595
      %v672 = vunpack.c.l.b16 %v596
      %v673 = vunpack.c.l.b16 %v597
      %v674 = vunpack.c.l.b16 %v598
      %v675 = vunpack.c.l.b16 %v599
      %v676 = vunpack.c.l.b16 %v600
      %v677 = vunpack.c.l.b16 %v601
      %v678 = vunpack.c.l.b16 %v602
      %v679 = vunpack.c.l.b16 %v603
      %v680 = vunpack.c.l.b16 %v604
      %v681 = vunpack.c.l.b16 %v605
      %v682 = vunpack.c.l.b16 %v606
      %v683 = vpack.c.b16 %v652, %v651
      %v684 = vpack.c.b16 %v654, %v653
      %v685 = vpack.c.b16 %v656, %v655
      %v686 = vpack.c.b16 %v658, %v657
      %v687 = vpack.c.b16 %v660, %v659
      %v688 = vpack.c.b16 %v662, %v661
      %v689 = vpack.c.b16 %v664, %v663
      %v690 = vpack.c.b16 %v666, %v665
      %v691 = vpack.c.b16 %v668, %v667
      %v692 = vpack.c.b16 %v670, %v669
      %v693 = vpack.c.b16 %v672, %v671
      %v694 = vpack.c.b16 %v674, %v673
      %v695 = vpack.c.b16 %v676, %v675
      %v696 = vpack.c.b16 %v678, %v677
      %v697 = vpack.c.b16 %v680, %v679
      %v698 = vpack.c.b16 %v682, %v681
      %v703 = vunpack.c.l.b16 %v607
      %v704 = vunpack.c.l.b16 %v608
      %v705 = vunpack.c.l.b16 %v609
      %v706 = vunpack.c.l.b16 %v610
      %v707 = vpack.c.b16 %v704, %v703
      %v708 = vpack.c.b16 %v706, %v705
      %vm710 = vcmask 220160
      %v712 = vsel %vm710, %v683, 0
      %v715 = vsel %vm710, %v684, 0
      %v718 = vsel %vm710, %v685, 0
      %v721 = vsel %vm710, %v686, 0
      %v724 = vsel %vm710, %v687, 0
      %v727 = vsel %vm710, %v688, 0
      %v730 = vsel %vm710, %v689, 0
      %v733 = vsel %vm710, %v690, 0
      %v736 = vsel %vm710, %v691, 0
      %v739 = vsel %vm710, %v692, 0
      %v742 = vsel %vm710, %v693, 0
      %v745 = vsel %vm710, %v694, 0
      %v748 = vsel %vm710, %v695, 0
      %v751 = vsel %vm710, %v696, 0
      %v754 = vsel %vm710, %v697, 0
      %v757 = vsel %vm710, %v698, 0
      %vm759 = vcmask 1044480
      %vm760 = vcmask 1045504
      %v761 = vsel %vm759, 4294967295, 65535
      %v762 = vsel %vm760, %v761, 0
      %v764 = vand.u32 %v708, %v762
      %766 = vmatprep.subr.bf16.mxu0 0
      %767 = vmatpush1.bf16.msra.mxu0 %v707
      %768 = vmatprep.subr.bf16.mxu0 0
      %769 = vmatpush1.bf16.msra.mxu0 %v764
      %770 = vmatprep.subr.bf16.mxu0 0
      %771 = vmatpush1.bf16.msra.mxu0 0
      %772 = vmatprep.subr.bf16.mxu0 0
      %773 = vmatpush1.bf16.msra.mxu0 0
      %774 = vmatprep.subr.bf16.mxu0 0
      %775 = vmatpush1.bf16.msra.mxu0 0
      %776 = vmatprep.subr.bf16.mxu0 0
      %777 = vmatpush1.bf16.msra.mxu0 0
      %778 = vmatprep.subr.bf16.mxu0 0
      %779 = vmatpush1.bf16.msra.mxu0 0
      %780 = vmatprep.subr.bf16.mxu0 0
      %781 = vmatpush1.bf16.msra.mxu0 0
      %782 = vmatprep.subr.bf16.mxu0 0
      %783 = vmatpush1.bf16.msra.mxu0 0
      %784 = vmatprep.subr.bf16.mxu0 0
      %785 = vmatpush1.bf16.msra.mxu0 0
      %786 = vmatprep.subr.bf16.mxu0 0
      %787 = vmatpush1.bf16.msra.mxu0 0
      %788 = vmatprep.subr.bf16.mxu0 0
      %789 = vmatpush1.bf16.msra.mxu0 0
      %790 = vmatprep.subr.bf16.mxu0 0
      %791 = vmatpush1.bf16.msra.mxu0 0
      %792 = vmatprep.subr.bf16.mxu0 0
      %793 = vmatpush1.bf16.msra.mxu0 0
      %794 = vmatprep.subr.bf16.mxu0 0
      %795 = vmatpush1.bf16.msra.mxu0 0
      %796 = vmatprep.subr.bf16.mxu0 0
      %797 = vmatpush1.bf16.msra.mxu0 0
      %798 = vmatprep.mubr.bf16.mxu0 0
      %799 = vmatmul.mubr.bf16.gmra.mrb[0].mxu0 %v712
      %v800 = vpop.f32.mrb[0].mxu0
      %v801 = vadd.f32 %v617, %v800
      %v802 = vpop.f32.mrb[0].mxu0
      %v803 = vpop.f32.mrb[0].mxu0
      %v804 = vadd.f32 %v617, %v803
      %v805 = vpop.f32.mrb[0].mxu0
      %806 = vmatprep.mubr.bf16.mxu0 0
      %807 = vmatmul.mubr.bf16.gmra.mrb[0].mxu0 %v715
      %v808 = vpop.f32.mrb[0].mxu0
      %v809 = vadd.f32 %v617, %v808
      %v810 = vpop.f32.mrb[0].mxu0
      %v811 = vpop.f32.mrb[0].mxu0
      %v812 = vadd.f32 %v617, %v811
      %v813 = vpop.f32.mrb[0].mxu0
      %814 = vmatprep.mubr.bf16.mxu0 0
      %815 = vmatmul.mubr.bf16.gmra.mrb[0].mxu0 %v718
      %v816 = vpop.f32.mrb[0].mxu0
      %v817 = vadd.f32 %v617, %v816
      %v818 = vpop.f32.mrb[0].mxu0
      %v819 = vpop.f32.mrb[0].mxu0
      %v820 = vadd.f32 %v617, %v819
      %v821 = vpop.f32.mrb[0].mxu0
      %822 = vmatprep.mubr.bf16.mxu0 0
      %823 = vmatmul.mubr.bf16.gmra.mrb[0].mxu0 %v721
      %v824 = vpop.f32.mrb[0].mxu0
      %v825 = vadd.f32 %v617, %v824
      %v826 = vpop.f32.mrb[0].mxu0
      %v827 = vpop.f32.mrb[0].mxu0
      %v828 = vadd.f32 %v617, %v827
      %v829 = vpop.f32.mrb[0].mxu0
      %830 = vmatprep.mubr.bf16.mxu0 0
      %831 = vmatmul.mubr.bf16.gmra.mrb[0].mxu0 %v724
      %v832 = vpop.f32.mrb[0].mxu0
      %v833 = vadd.f32 %v617, %v832
      %v834 = vpop.f32.mrb[0].mxu0
      %v835 = vpop.f32.mrb[0].mxu0
      %v836 = vadd.f32 %v617, %v835
      %v837 = vpop.f32.mrb[0].mxu0
      %838 = vmatprep.mubr.bf16.mxu0 0
      %839 = vmatmul.mubr.bf16.gmra.mrb[0].mxu0 %v727
      %v840 = vpop.f32.mrb[0].mxu0
      %v841 = vadd.f32 %v617, %v840
      %v842 = vpop.f32.mrb[0].mxu0
      %v843 = vpop.f32.mrb[0].mxu0
      %v844 = vadd.f32 %v617, %v843
      %v845 = vpop.f32.mrb[0].mxu0
      %846 = vmatprep.mubr.bf16.mxu0 0
      %847 = vmatmul.mubr.bf16.gmra.mrb[0].mxu0 %v730
      %v848 = vpop.f32.mrb[0].mxu0
      %v849 = vadd.f32 %v617, %v848
      %v850 = vpop.f32.mrb[0].mxu0
      %v851 = vpop.f32.mrb[0].mxu0
      %v852 = vadd.f32 %v617, %v851
      %v853 = vpop.f32.mrb[0].mxu0
      %854 = vmatprep.mubr.bf16.mxu0 0
      %855 = vmatmul.mubr.bf16.gmra.mrb[0].mxu0 %v733
      %v856 = vpop.f32.mrb[0].mxu0
      %v857 = vadd.f32 %v617, %v856
      %v858 = vpop.f32.mrb[0].mxu0
      %v859 = vpop.f32.mrb[0].mxu0
      %v860 = vadd.f32 %v617, %v859
      %v861 = vpop.f32.mrb[0].mxu0
      %862 = vmatprep.mubr.bf16.mxu0 0
      %863 = vmatmul.mubr.bf16.gmra.mrb[0].mxu0 %v736
      %v864 = vpop.f32.mrb[0].mxu0
      %v865 = vadd.f32 %v617, %v864
      %v866 = vpop.f32.mrb[0].mxu0
      %v867 = vpop.f32.mrb[0].mxu0
      %v868 = vadd.f32 %v617, %v867
      %v869 = vpop.f32.mrb[0].mxu0
      %870 = vmatprep.mubr.bf16.mxu0 0
      %871 = vmatmul.mubr.bf16.gmra.mrb[0].mxu0 %v739
      %v872 = vpop.f32.mrb[0].mxu0
      %v873 = vadd.f32 %v617, %v872
      %v874 = vpop.f32.mrb[0].mxu0
      %v875 = vpop.f32.mrb[0].mxu0
      %v876 = vadd.f32 %v617, %v875
      %v877 = vpop.f32.mrb[0].mxu0
      %878 = vmatprep.mubr.bf16.mxu0 0
      %879 = vmatmul.mubr.bf16.gmra.mrb[0].mxu0 %v742
      %v880 = vpop.f32.mrb[0].mxu0
      %v881 = vadd.f32 %v617, %v880
      %v882 = vpop.f32.mrb[0].mxu0
      %v883 = vpop.f32.mrb[0].mxu0
      %v884 = vadd.f32 %v617, %v883
      %v885 = vpop.f32.mrb[0].mxu0
      %886 = vmatprep.mubr.bf16.mxu0 0
      %887 = vmatmul.mubr.bf16.gmra.mrb[0].mxu0 %v745
      %v888 = vpop.f32.mrb[0].mxu0
      %v889 = vadd.f32 %v617, %v888
      %v890 = vpop.f32.mrb[0].mxu0
      %v891 = vpop.f32.mrb[0].mxu0
      %v892 = vadd.f32 %v617, %v891
      %v893 = vpop.f32.mrb[0].mxu0
      %894 = vmatprep.mubr.bf16.mxu0 0
      %895 = vmatmul.mubr.bf16.gmra.mrb[0].mxu0 %v748
      %v896 = vpop.f32.mrb[0].mxu0
      %v897 = vadd.f32 %v617, %v896
      %v898 = vpop.f32.mrb[0].mxu0
      %v899 = vpop.f32.mrb[0].mxu0
      %v900 = vadd.f32 %v617, %v899
      %v901 = vpop.f32.mrb[0].mxu0
      %902 = vmatprep.mubr.bf16.mxu0 0
      %903 = vmatmul.mubr.bf16.gmra.mrb[0].mxu0 %v751
      %v904 = vpop.f32.mrb[0].mxu0
      %v905 = vadd.f32 %v617, %v904
      %v906 = vpop.f32.mrb[0].mxu0
      %v907 = vpop.f32.mrb[0].mxu0
      %v908 = vadd.f32 %v617, %v907
      %v909 = vpop.f32.mrb[0].mxu0
      %910 = vmatprep.mubr.bf16.mxu0 0
      %911 = vmatmul.mubr.bf16.gmra.mrb[0].mxu0 %v754
      %v912 = vpop.f32.mrb[0].mxu0
      %v913 = vadd.f32 %v617, %v912
      %v914 = vpop.f32.mrb[0].mxu0
      %v915 = vpop.f32.mrb[0].mxu0
      %v916 = vadd.f32 %v617, %v915
      %v917 = vpop.f32.mrb[0].mxu0
      %918 = vmatprep.mubr.bf16.mxu0 0
      %919 = vmatmul.mubr.bf16.gmra.mrb[0].mxu0 %v757
      %v920 = vpop.f32.mrb[0].mxu0
      %v921 = vadd.f32 %v617, %v920
      %v922 = vpop.f32.mrb[0].mxu0
      %v923 = vpop.f32.mrb[0].mxu0
      %v924 = vadd.f32 %v617, %v923
      %v925 = vpop.f32.mrb[0].mxu0
      %926 = vdwg.mxu0
      %vm927 = vcmp.gt.f32.partialorder %v801, 0.0
      %vm928 = vcmp.gt.f32.partialorder %v804, 0.0
      %vm929 = vcmp.gt.f32.partialorder %v809, 0.0
      %vm930 = vcmp.gt.f32.partialorder %v812, 0.0
      %vm931 = vcmp.gt.f32.partialorder %v817, 0.0
      %vm932 = vcmp.gt.f32.partialorder %v820, 0.0
      %vm933 = vcmp.gt.f32.partialorder %v825, 0.0
      %vm934 = vcmp.gt.f32.partialorder %v828, 0.0
      %vm935 = vcmp.gt.f32.partialorder %v833, 0.0
      %vm936 = vcmp.gt.f32.partialorder %v836, 0.0
      %vm937 = vcmp.gt.f32.partialorder %v841, 0.0
      %vm938 = vcmp.gt.f32.partialorder %v844, 0.0
      %vm939 = vcmp.gt.f32.partialorder %v849, 0.0
      %vm940 = vcmp.gt.f32.partialorder %v852, 0.0
      %vm941 = vcmp.gt.f32.partialorder %v857, 0.0
      %vm942 = vcmp.gt.f32.partialorder %v860, 0.0
      %vm943 = vcmp.gt.f32.partialorder %v865, 0.0
      %vm944 = vcmp.gt.f32.partialorder %v868, 0.0
      %vm945 = vcmp.gt.f32.partialorder %v873, 0.0
      %vm946 = vcmp.gt.f32.partialorder %v876, 0.0
      %vm947 = vcmp.gt.f32.partialorder %v881, 0.0
      %vm948 = vcmp.gt.f32.partialorder %v884, 0.0
      %vm949 = vcmp.gt.f32.partialorder %v889, 0.0
      %vm950 = vcmp.gt.f32.partialorder %v892, 0.0
      %vm951 = vcmp.gt.f32.partialorder %v897, 0.0
      %vm952 = vcmp.gt.f32.partialorder %v900, 0.0
      %vm953 = vcmp.gt.f32.partialorder %v905, 0.0
      %vm954 = vcmp.gt.f32.partialorder %v908, 0.0
      %vm955 = vcmp.gt.f32.partialorder %v913, 0.0
      %vm956 = vcmp.gt.f32.partialorder %v916, 0.0
      %vm957 = vcmp.gt.f32.partialorder %v921, 0.0
      %vm958 = vcmp.gt.f32.partialorder %v924, 0.0
      %v959 = vmul.f32 %v801, 0.2
      %v960 = vmul.f32 %v804, 0.2
      %v961 = vmul.f32 %v809, 0.2
      %v962 = vmul.f32 %v812, 0.2
      %v963 = vmul.f32 %v817, 0.2
      %v964 = vmul.f32 %v820, 0.2
      %v965 = vmul.f32 %v825, 0.2
      %v966 = vmul.f32 %v828, 0.2
      %v967 = vmul.f32 %v833, 0.2
      %v968 = vmul.f32 %v836, 0.2
      %v969 = vmul.f32 %v841, 0.2
      %v970 = vmul.f32 %v844, 0.2
      %v971 = vmul.f32 %v849, 0.2
      %v972 = vmul.f32 %v852, 0.2
      %v973 = vmul.f32 %v857, 0.2
      %v974 = vmul.f32 %v860, 0.2
      %v975 = vmul.f32 %v865, 0.2
      %v976 = vmul.f32 %v868, 0.2
      %v977 = vmul.f32 %v873, 0.2
      %v978 = vmul.f32 %v876, 0.2
      %v979 = vmul.f32 %v881, 0.2
      %v980 = vmul.f32 %v884, 0.2
      %v981 = vmul.f32 %v889, 0.2
      %v982 = vmul.f32 %v892, 0.2
      %v983 = vmul.f32 %v897, 0.2
      %v984 = vmul.f32 %v900, 0.2
      %v985 = vmul.f32 %v905, 0.2
      %v986 = vmul.f32 %v908, 0.2
      %v987 = vmul.f32 %v913, 0.2
      %v988 = vmul.f32 %v916, 0.2
      %v989 = vmul.f32 %v921, 0.2
      %v990 = vmul.f32 %v924, 0.2
      %v991 = vsel %vm927, %v801, %v959
      %v992 = vsel %vm928, %v804, %v960
      %v993 = vsel %vm929, %v809, %v961
      %v994 = vsel %vm930, %v812, %v962
      %v995 = vsel %vm931, %v817, %v963
      %v996 = vsel %vm932, %v820, %v964
      %v997 = vsel %vm933, %v825, %v965
      %v998 = vsel %vm934, %v828, %v966
      %v999 = vsel %vm935, %v833, %v967
      %v1000 = vsel %vm936, %v836, %v968
      %v1001 = vsel %vm937, %v841, %v969
      %v1002 = vsel %vm938, %v844, %v970
      %v1003 = vsel %vm939, %v849, %v971
      %v1004 = vsel %vm940, %v852, %v972
      %v1005 = vsel %vm941, %v857, %v973
      %v1006 = vsel %vm942, %v860, %v974
      %v1007 = vsel %vm943, %v865, %v975
      %v1008 = vsel %vm944, %v868, %v976
      %v1009 = vsel %vm945, %v873, %v977
      %v1010 = vsel %vm946, %v876, %v978
      %v1011 = vsel %vm947, %v881, %v979
      %v1012 = vsel %vm948, %v884, %v980
      %v1013 = vsel %vm949, %v889, %v981
      %v1014 = vsel %vm950, %v892, %v982
      %v1015 = vsel %vm951, %v897, %v983
      %v1016 = vsel %vm952, %v900, %v984
      %v1017 = vsel %vm953, %v905, %v985
      %v1018 = vsel %vm954, %v908, %v986
      %v1019 = vsel %vm955, %v913, %v987
      %v1020 = vsel %vm956, %v916, %v988
      %v1021 = vsel %vm957, %v921, %v989
      %v1022 = vsel %vm958, %v924, %v990
      %v1024 = vlaneseq
      %v1025 = vshrl.u32 %v1024, 7
      %v1026 = vsub.s32 0, %v1025
      %v1027 = vrot.slane %v612, %v1026
      %v1029 = vadd.f32 %v991, %v1027
      %v1030 = vadd.f32 %v992, %v1027
      %v1031 = vadd.f32 %v993, %v1027
      %v1032 = vadd.f32 %v994, %v1027
      %v1033 = vadd.f32 %v995, %v1027
      %v1034 = vadd.f32 %v996, %v1027
      %v1035 = vadd.f32 %v997, %v1027
      %v1036 = vadd.f32 %v998, %v1027
      %v1037 = vadd.f32 %v999, %v1027
      %v1038 = vadd.f32 %v1000, %v1027
      %v1039 = vadd.f32 %v1001, %v1027
      %v1040 = vadd.f32 %v1002, %v1027
      %v1041 = vadd.f32 %v1003, %v1027
      %v1042 = vadd.f32 %v1004, %v1027
      %v1043 = vadd.f32 %v1005, %v1027
      %v1044 = vadd.f32 %v1006, %v1027
      %v1045 = vadd.f32 %v1007, %v1027
      %v1046 = vadd.f32 %v1008, %v1027
      %v1047 = vadd.f32 %v1009, %v1027
      %v1048 = vadd.f32 %v1010, %v1027
      %v1049 = vadd.f32 %v1011, %v1027
      %v1050 = vadd.f32 %v1012, %v1027
      %v1051 = vadd.f32 %v1013, %v1027
      %v1052 = vadd.f32 %v1014, %v1027
      %v1053 = vadd.f32 %v1015, %v1027
      %v1054 = vadd.f32 %v1016, %v1027
      %v1055 = vadd.f32 %v1017, %v1027
      %v1056 = vadd.f32 %v1018, %v1027
      %v1057 = vadd.f32 %v1019, %v1027
      %v1058 = vadd.f32 %v1020, %v1027
      %v1059 = vadd.f32 %v1021, %v1027
      %v1060 = vadd.f32 %v1022, %v1027
      %v1061 = vpack.c.bf16 %v1030, %v1029
      %v1062 = vpack.c.bf16 %v1032, %v1031
      %v1063 = vpack.c.bf16 %v1034, %v1033
      %v1064 = vpack.c.bf16 %v1036, %v1035
      %v1065 = vpack.c.bf16 %v1038, %v1037
      %v1066 = vpack.c.bf16 %v1040, %v1039
      %v1067 = vpack.c.bf16 %v1042, %v1041
      %v1068 = vpack.c.bf16 %v1044, %v1043
      %v1069 = vpack.c.bf16 %v1046, %v1045
      %v1070 = vpack.c.bf16 %v1048, %v1047
      %v1071 = vpack.c.bf16 %v1050, %v1049
      %v1072 = vpack.c.bf16 %v1052, %v1051
      %v1073 = vpack.c.bf16 %v1054, %v1053
      %v1074 = vpack.c.bf16 %v1056, %v1055
      %v1075 = vpack.c.bf16 %v1058, %v1057
      %v1076 = vpack.c.bf16 %v1060, %v1059
      %v1077 = vld [vmem:[%s4] sm:$0xff]
      %v1078 = vld [vmem:[%s4 + $0x8] sm:$0xff]
      %v1079 = vld [vmem:[%s4 + $0x10] sm:$0xff]
      %v1080 = vld [vmem:[%s4 + $0x18] sm:$0xff]
      %v1081 = vld [vmem:[%s4 + $0x20] sm:$0xff]
      %v1082 = vld [vmem:[%s4 + $0x28] sm:$0xff]
      %v1083 = vld [vmem:[%s4 + $0x30] sm:$0xff]
      %v1084 = vld [vmem:[%s4 + $0x38] sm:$0xff]
      %v1093 = vunpack.c.l.b16 %v1077
      %v1094 = vunpack.c.h.b16 %v1077
      %v1095 = vunpack.c.l.b16 %v1078
      %v1096 = vunpack.c.h.b16 %v1078
      %v1097 = vunpack.c.l.b16 %v1079
      %v1098 = vunpack.c.h.b16 %v1079
      %v1099 = vunpack.c.l.b16 %v1080
      %v1100 = vunpack.c.h.b16 %v1080
      %v1101 = vunpack.c.l.b16 %v1081
      %v1102 = vunpack.c.h.b16 %v1081
      %v1103 = vunpack.c.l.b16 %v1082
      %v1104 = vunpack.c.h.b16 %v1082
      %v1105 = vunpack.c.l.b16 %v1083
      %v1106 = vunpack.c.h.b16 %v1083
      %v1107 = vunpack.c.l.b16 %v1084
      %v1108 = vunpack.c.h.b16 %v1084
      %v1109 = vpack.c.b16 %v1095, %v1093
      %v1110 = vpack.c.b16 %v1096, %v1094
      %v1111 = vpack.c.b16 %v1099, %v1097
      %v1112 = vpack.c.b16 %v1100, %v1098
      %v1113 = vpack.c.b16 %v1103, %v1101
      %v1114 = vpack.c.b16 %v1104, %v1102
      %v1115 = vpack.c.b16 %v1107, %v1105
      %v1116 = vpack.c.b16 %v1108, %v1106
      %1125 = vmatprep.subr.bf16.mxu0 0
      %1126 = vmatpush1.bf16.msra.mxu0 %v1061
      %1127 = vmatprep.subr.bf16.mxu0 0
      %1128 = vmatpush1.bf16.msra.mxu0 %v1062
      %1129 = vmatprep.subr.bf16.mxu0 0
      %1130 = vmatpush1.bf16.msra.mxu0 %v1063
      %1131 = vmatprep.subr.bf16.mxu0 0
      %1132 = vmatpush1.bf16.msra.mxu0 %v1064
      %1133 = vmatprep.subr.bf16.mxu0 0
      %1134 = vmatpush1.bf16.msra.mxu0 %v1065
      %1135 = vmatprep.subr.bf16.mxu0 0
      %1136 = vmatpush1.bf16.msra.mxu0 %v1066
      %1137 = vmatprep.subr.bf16.mxu0 0
      %1138 = vmatpush1.bf16.msra.mxu0 %v1067
      %1139 = vmatprep.subr.bf16.mxu0 0
      %1140 = vmatpush1.bf16.msra.mxu0 %v1068
      %1141 = vmatprep.subr.bf16.mxu0 0
      %1142 = vmatpush1.bf16.msra.mxu0 %v1069
      %1143 = vmatprep.subr.bf16.mxu0 0
      %1144 = vmatpush1.bf16.msra.mxu0 %v1070
      %1145 = vmatprep.subr.bf16.mxu0 0
      %1146 = vmatpush1.bf16.msra.mxu0 %v1071
      %1147 = vmatprep.subr.bf16.mxu0 0
      %1148 = vmatpush1.bf16.msra.mxu0 %v1072
      %1149 = vmatprep.subr.bf16.mxu0 0
      %1150 = vmatpush1.bf16.msra.mxu0 %v1073
      %1151 = vmatprep.subr.bf16.mxu0 0
      %1152 = vmatpush1.bf16.msra.mxu0 %v1074
      %1153 = vmatprep.subr.bf16.mxu0 0
      %1154 = vmatpush1.bf16.msra.mxu0 %v1075
      %1155 = vmatprep.subr.bf16.mxu0 0
      %1156 = vmatpush1.bf16.msra.mxu0 %v1076
      %1157 = vmatprep.mubr.bf16.mxu0 %v1110
      %1158 = vmatmul.mubr.bf16.gmra.mrb[0].mxu0 %v1109
      %v1159 = vpop.f32.mrb[0].mxu0
      %v1160 = vadd.f32 0.0, %v1159
      %v1161 = vpop.f32.mrb[0].mxu0
      %v1162 = vpop.f32.mrb[0].mxu0
      %v1163 = vadd.f32 0.0, %v1162
      %v1164 = vpop.f32.mrb[0].mxu0
      %1165 = vmatprep.mubr.bf16.mxu0 %v1112
      %1166 = vmatmul.mubr.bf16.gmra.mrb[0].mxu0 %v1111
      %v1167 = vpop.f32.mrb[0].mxu0
      %v1168 = vadd.f32 0.0, %v1167
      %v1169 = vpop.f32.mrb[0].mxu0
      %v1170 = vpop.f32.mrb[0].mxu0
      %v1171 = vadd.f32 0.0, %v1170
      %v1172 = vpop.f32.mrb[0].mxu0
      %1173 = vmatprep.mubr.bf16.mxu0 %v1114
      %1174 = vmatmul.mubr.bf16.gmra.mrb[0].mxu0 %v1113
      %v1175 = vpop.f32.mrb[0].mxu0
      %v1176 = vadd.f32 0.0, %v1175
      %v1177 = vpop.f32.mrb[0].mxu0
      %v1178 = vpop.f32.mrb[0].mxu0
      %v1179 = vadd.f32 0.0, %v1178
      %v1180 = vpop.f32.mrb[0].mxu0
      %1181 = vmatprep.mubr.bf16.mxu0 %v1116
      %1182 = vmatmul.mubr.bf16.gmra.mrb[0].mxu0 %v1115
      %v1183 = vpop.f32.mrb[0].mxu0
      %v1184 = vadd.f32 0.0, %v1183
      %v1185 = vpop.f32.mrb[0].mxu0
      %v1186 = vpop.f32.mrb[0].mxu0
      %v1187 = vadd.f32 0.0, %v1186
      %v1188 = vpop.f32.mrb[0].mxu0
      %1189 = vdwg.mxu0
      %v1190 = vpack.c.bf16 %v1163, %v1160
      %v1191 = vpack.c.bf16 %v1171, %v1168
      %v1192 = vpack.c.bf16 %v1179, %v1176
      %v1193 = vpack.c.bf16 %v1187, %v1184
      %v1194 = vld [vmem:[%s5] sm:$0xf]
      %v1195 = vld [vmem:[%s5 + $0x4] sm:$0xf]
      %s1196 = scalar_lea.vmem %s4, 64
      %v1197 = vld [vmem:[%s1196] sm:$0xff]
      %v1198 = vld [vmem:[%s1196 + $0x8] sm:$0xff]
      %v1199 = vld [vmem:[%s1196 + $0x10] sm:$0xff]
      %v1200 = vld [vmem:[%s1196 + $0x18] sm:$0xff]
      %v1201 = vld [vmem:[%s1196 + $0x20] sm:$0xff]
      %v1202 = vld [vmem:[%s1196 + $0x28] sm:$0xff]
      %v1203 = vld [vmem:[%s1196 + $0x30] sm:$0xff]
      %v1204 = vld [vmem:[%s1196 + $0x38] sm:$0xff]
      %v1213 = vunpack.c.l.b16 %v1197
      %v1214 = vunpack.c.h.b16 %v1197
      %v1215 = vunpack.c.l.b16 %v1198
      %v1216 = vunpack.c.h.b16 %v1198
      %v1217 = vunpack.c.l.b16 %v1199
      %v1218 = vunpack.c.h.b16 %v1199
      %v1219 = vunpack.c.l.b16 %v1200
      %v1220 = vunpack.c.h.b16 %v1200
      %v1221 = vunpack.c.l.b16 %v1201
      %v1222 = vunpack.c.h.b16 %v1201
      %v1223 = vunpack.c.l.b16 %v1202
      %v1224 = vunpack.c.h.b16 %v1202
      %v1225 = vunpack.c.l.b16 %v1203
      %v1226 = vunpack.c.h.b16 %v1203
      %v1227 = vunpack.c.l.b16 %v1204
      %v1228 = vunpack.c.h.b16 %v1204
      %v1229 = vpack.c.b16 %v1215, %v1213
      %v1230 = vpack.c.b16 %v1216, %v1214
      %v1231 = vpack.c.b16 %v1219, %v1217
      %v1232 = vpack.c.b16 %v1220, %v1218
      %v1233 = vpack.c.b16 %v1223, %v1221
      %v1234 = vpack.c.b16 %v1224, %v1222
      %v1235 = vpack.c.b16 %v1227, %v1225
      %v1236 = vpack.c.b16 %v1228, %v1226
      %1245 = vmatprep.subr.bf16.mxu0 0
      %1246 = vmatpush1.bf16.msra.mxu0 %v1061
      %1247 = vmatprep.subr.bf16.mxu0 0
      %1248 = vmatpush1.bf16.msra.mxu0 %v1062
      %1249 = vmatprep.subr.bf16.mxu0 0
      %1250 = vmatpush1.bf16.msra.mxu0 %v1063
      %1251 = vmatprep.subr.bf16.mxu0 0
      %1252 = vmatpush1.bf16.msra.mxu0 %v1064
      %1253 = vmatprep.subr.bf16.mxu0 0
      %1254 = vmatpush1.bf16.msra.mxu0 %v1065
      %1255 = vmatprep.subr.bf16.mxu0 0
      %1256 = vmatpush1.bf16.msra.mxu0 %v1066
      %1257 = vmatprep.subr.bf16.mxu0 0
      %1258 = vmatpush1.bf16.msra.mxu0 %v1067
      %1259 = vmatprep.subr.bf16.mxu0 0
      %1260 = vmatpush1.bf16.msra.mxu0 %v1068
      %1261 = vmatprep.subr.bf16.mxu0 0
      %1262 = vmatpush1.bf16.msra.mxu0 %v1069
      %1263 = vmatprep.subr.bf16.mxu0 0
      %1264 = vmatpush1.bf16.msra.mxu0 %v1070
      %1265 = vmatprep.subr.bf16.mxu0 0
      %1266 = vmatpush1.bf16.msra.mxu0 %v1071
      %1267 = vmatprep.subr.bf16.mxu0 0
      %1268 = vmatpush1.bf16.msra.mxu0 %v1072
      %1269 = vmatprep.subr.bf16.mxu0 0
      %1270 = vmatpush1.bf16.msra.mxu0 %v1073
      %1271 = vmatprep.subr.bf16.mxu0 0
      %1272 = vmatpush1.bf16.msra.mxu0 %v1074
      %1273 = vmatprep.subr.bf16.mxu0 0
      %1274 = vmatpush1.bf16.msra.mxu0 %v1075
      %1275 = vmatprep.subr.bf16.mxu0 0
      %1276 = vmatpush1.bf16.msra.mxu0 %v1076
      %1277 = vmatprep.mubr.bf16.mxu0 %v1230
      %1278 = vmatmul.mubr.bf16.gmra.mrb[0].mxu0 %v1229
      %v1279 = vpop.f32.mrb[0].mxu0
      %v1280 = vadd.f32 0.0, %v1279
      %v1281 = vpop.f32.mrb[0].mxu0
      %v1282 = vpop.f32.mrb[0].mxu0
      %v1283 = vadd.f32 0.0, %v1282
      %v1284 = vpop.f32.mrb[0].mxu0
      %1285 = vmatprep.mubr.bf16.mxu0 %v1232
      %1286 = vmatmul.mubr.bf16.gmra.mrb[0].mxu0 %v1231
      %v1287 = vpop.f32.mrb[0].mxu0
      %v1288 = vadd.f32 0.0, %v1287
      %v1289 = vpop.f32.mrb[0].mxu0
      %v1290 = vpop.f32.mrb[0].mxu0
      %v1291 = vadd.f32 0.0, %v1290
      %v1292 = vpop.f32.mrb[0].mxu0
      %1293 = vmatprep.mubr.bf16.mxu0 %v1234
      %1294 = vmatmul.mubr.bf16.gmra.mrb[0].mxu0 %v1233
      %v1295 = vpop.f32.mrb[0].mxu0
      %v1296 = vadd.f32 0.0, %v1295
      %v1297 = vpop.f32.mrb[0].mxu0
      %v1298 = vpop.f32.mrb[0].mxu0
      %v1299 = vadd.f32 0.0, %v1298
      %v1300 = vpop.f32.mrb[0].mxu0
      %1301 = vmatprep.mubr.bf16.mxu0 %v1236
      %1302 = vmatmul.mubr.bf16.gmra.mrb[0].mxu0 %v1235
      %v1303 = vpop.f32.mrb[0].mxu0
      %v1304 = vadd.f32 0.0, %v1303
      %v1305 = vpop.f32.mrb[0].mxu0
      %v1306 = vpop.f32.mrb[0].mxu0
      %v1307 = vadd.f32 0.0, %v1306
      %v1308 = vpop.f32.mrb[0].mxu0
      %1309 = vdwg.mxu0
      %v1310 = vpack.c.bf16 %v1283, %v1280
      %v1311 = vpack.c.bf16 %v1291, %v1288
      %v1312 = vpack.c.bf16 %v1299, %v1296
      %v1313 = vpack.c.bf16 %v1307, %v1304
      %s1314 = scalar_lea.vmem %s5, 8
      %v1315 = vld [vmem:[%s1314] sm:$0xf]
      %v1316 = vld [vmem:[%s1314 + $0x4] sm:$0xf]
      %v1319 = vunpack.c.l.b16 %v1315
      %v1320 = vunpack.c.l.b16 %v1316
      %v1321 = vpack.c.b16 %v1320, %v1319
      %vm1323 = vcmask 130048
      %v1325 = vsel %vm1323, %v1310, 0
      %v1328 = vsel %vm1323, %v1311, 0
      %v1331 = vsel %vm1323, %v1312, 0
      %v1334 = vsel %vm1323, %v1313, 0
      %1336 = vmatprep.subr.bf16.mxu0 0
      %1337 = vmatpush1.bf16.msra.mxu0 %v1321
      %1338 = vmatprep.subr.bf16.mxu0 0
      %1339 = vmatpush1.bf16.msra.mxu0 0
      %1340 = vmatprep.subr.bf16.mxu0 0
      %1341 = vmatpush1.bf16.msra.mxu0 0
      %1342 = vmatprep.subr.bf16.mxu0 0
      %1343 = vmatpush1.bf16.msra.mxu0 0
      %1344 = vmatprep.subr.bf16.mxu0 0
      %1345 = vmatpush1.bf16.msra.mxu0 0
      %1346 = vmatprep.subr.bf16.mxu0 0
      %1347 = vmatpush1.bf16.msra.mxu0 0
      %1348 = vmatprep.subr.bf16.mxu0 0
      %1349 = vmatpush1.bf16.msra.mxu0 0
      %1350 = vmatprep.subr.bf16.mxu0 0
      %1351 = vmatpush1.bf16.msra.mxu0 0
      %1352 = vmatprep.subr.bf16.mxu0 0
      %1353 = vmatpush1.bf16.msra.mxu0 0
      %1354 = vmatprep.subr.bf16.mxu0 0
      %1355 = vmatpush1.bf16.msra.mxu0 0
      %1356 = vmatprep.subr.bf16.mxu0 0
      %1357 = vmatpush1.bf16.msra.mxu0 0
      %1358 = vmatprep.subr.bf16.mxu0 0
      %1359 = vmatpush1.bf16.msra.mxu0 0
      %1360 = vmatprep.subr.bf16.mxu0 0
      %1361 = vmatpush1.bf16.msra.mxu0 0
      %1362 = vmatprep.subr.bf16.mxu0 0
      %1363 = vmatpush1.bf16.msra.mxu0 0
      %1364 = vmatprep.subr.bf16.mxu0 0
      %1365 = vmatpush1.bf16.msra.mxu0 0
      %1366 = vmatprep.subr.bf16.mxu0 0
      %1367 = vmatpush1.bf16.msra.mxu0 0
      %1368 = vmatprep.mubr.bf16.mxu0 0
      %1369 = vmatmul.mubr.bf16.gmra.mrb[0].mxu0 %v1325
      %v1370 = vpop.f32.mrb[0].mxu0
      %v1371 = vadd.f32 0.0, %v1370
      %v1372 = vpop.f32.mrb[0].mxu0
      %v1373 = vpop.f32.mrb[0].mxu0
      %v1374 = vadd.f32 0.0, %v1373
      %v1375 = vpop.f32.mrb[0].mxu0
      %1376 = vmatprep.mubr.bf16.mxu0 0
      %1377 = vmatmul.mubr.bf16.gmra.mrb[0].mxu0 %v1328
      %v1378 = vpop.f32.mrb[0].mxu0
      %v1379 = vadd.f32 0.0, %v1378
      %v1380 = vpop.f32.mrb[0].mxu0
      %v1381 = vpop.f32.mrb[0].mxu0
      %v1382 = vadd.f32 0.0, %v1381
      %v1383 = vpop.f32.mrb[0].mxu0
      %1384 = vmatprep.mubr.bf16.mxu0 0
      %1385 = vmatmul.mubr.bf16.gmra.mrb[0].mxu0 %v1331
      %v1386 = vpop.f32.mrb[0].mxu0
      %v1387 = vadd.f32 0.0, %v1386
      %v1388 = vpop.f32.mrb[0].mxu0
      %v1389 = vpop.f32.mrb[0].mxu0
      %v1390 = vadd.f32 0.0, %v1389
      %v1391 = vpop.f32.mrb[0].mxu0
      %1392 = vmatprep.mubr.bf16.mxu0 0
      %1393 = vmatmul.mubr.bf16.gmra.mrb[0].mxu0 %v1334
      %v1394 = vpop.f32.mrb[0].mxu0
      %v1395 = vadd.f32 0.0, %v1394
      %v1396 = vpop.f32.mrb[0].mxu0
      %v1397 = vpop.f32.mrb[0].mxu0
      %v1398 = vadd.f32 0.0, %v1397
      %v1399 = vpop.f32.mrb[0].mxu0
      %1400 = vdwg.mxu0
      %v1403 = vunpack.c.l.b16 %v1194
      %v1404 = vunpack.c.l.b16 %v1195
      %v1405 = vpack.c.b16 %v1404, %v1403
      %v1408 = vsel %vm1323, %v1190, 0
      %v1411 = vsel %vm1323, %v1191, 0
      %v1414 = vsel %vm1323, %v1192, 0
      %v1417 = vsel %vm1323, %v1193, 0
      %1419 = vmatprep.subr.bf16.mxu0 0
      %1420 = vmatpush1.bf16.msra.mxu0 %v1405
      %1421 = vmatprep.subr.bf16.mxu0 0
      %1422 = vmatpush1.bf16.msra.mxu0 0
      %1423 = vmatprep.subr.bf16.mxu0 0
      %1424 = vmatpush1.bf16.msra.mxu0 0
      %1425 = vmatprep.subr.bf16.mxu0 0
      %1426 = vmatpush1.bf16.msra.mxu0 0
      %1427 = vmatprep.subr.bf16.mxu0 0
      %1428 = vmatpush1.bf16.msra.mxu0 0
      %1429 = vmatprep.subr.bf16.mxu0 0
      %1430 = vmatpush1.bf16.msra.mxu0 0
      %1431 = vmatprep.subr.bf16.mxu0 0
      %1432 = vmatpush1.bf16.msra.mxu0 0
      %1433 = vmatprep.subr.bf16.mxu0 0
      %1434 = vmatpush1.bf16.msra.mxu0 0
      %1435 = vmatprep.subr.bf16.mxu0 0
      %1436 = vmatpush1.bf16.msra.mxu0 0
      %1437 = vmatprep.subr.bf16.mxu0 0
      %1438 = vmatpush1.bf16.msra.mxu0 0
      %1439 = vmatprep.subr.bf16.mxu0 0
      %1440 = vmatpush1.bf16.msra.mxu0 0
      %1441 = vmatprep.subr.bf16.mxu0 0
      %1442 = vmatpush1.bf16.msra.mxu0 0
      %1443 = vmatprep.subr.bf16.mxu0 0
      %1444 = vmatpush1.bf16.msra.mxu0 0
      %1445 = vmatprep.subr.bf16.mxu0 0
      %1446 = vmatpush1.bf16.msra.mxu0 0
      %1447 = vmatprep.subr.bf16.mxu0 0
      %1448 = vmatpush1.bf16.msra.mxu0 0
      %1449 = vmatprep.subr.bf16.mxu0 0
      %1450 = vmatpush1.bf16.msra.mxu0 0
      %1451 = vmatprep.mubr.bf16.mxu0 0
      %1452 = vmatmul.mubr.bf16.gmra.mrb[0].mxu0 %v1408
      %v1453 = vpop.f32.mrb[0].mxu0
      %v1454 = vadd.f32 %v1371, %v1453
      %v1455 = vpop.f32.mrb[0].mxu0
      %v1456 = vpop.f32.mrb[0].mxu0
      %v1457 = vadd.f32 %v1374, %v1456
      %v1458 = vpop.f32.mrb[0].mxu0
      %1459 = vmatprep.mubr.bf16.mxu0 0
      %1460 = vmatmul.mubr.bf16.gmra.mrb[0].mxu0 %v1411
      %v1461 = vpop.f32.mrb[0].mxu0
      %v1462 = vadd.f32 %v1379, %v1461
      %v1463 = vpop.f32.mrb[0].mxu0
      %v1464 = vpop.f32.mrb[0].mxu0
      %v1465 = vadd.f32 %v1382, %v1464
      %v1466 = vpop.f32.mrb[0].mxu0
      %1467 = vmatprep.mubr.bf16.mxu0 0
      %1468 = vmatmul.mubr.bf16.gmra.mrb[0].mxu0 %v1414
      %v1469 = vpop.f32.mrb[0].mxu0
      %v1470 = vadd.f32 %v1387, %v1469
      %v1471 = vpop.f32.mrb[0].mxu0
      %v1472 = vpop.f32.mrb[0].mxu0
      %v1473 = vadd.f32 %v1390, %v1472
      %v1474 = vpop.f32.mrb[0].mxu0
      %1475 = vmatprep.mubr.bf16.mxu0 0
      %1476 = vmatmul.mubr.bf16.gmra.mrb[0].mxu0 %v1417
      %v1477 = vpop.f32.mrb[0].mxu0
      %v1478 = vadd.f32 %v1395, %v1477
      %v1479 = vpop.f32.mrb[0].mxu0
      %v1480 = vpop.f32.mrb[0].mxu0
      %v1481 = vadd.f32 %v1398, %v1480
      %v1482 = vpop.f32.mrb[0].mxu0
      %1483 = vdwg.mxu0
      %s1484 = scalar_lea.vmem %s4, 128
      %v1485 = vld [vmem:[%s1484] sm:$0xff]
      %v1486 = vld [vmem:[%s1484 + $0x8] sm:$0xff]
      %v1487 = vld [vmem:[%s1484 + $0x10] sm:$0xff]
      %v1488 = vld [vmem:[%s1484 + $0x18] sm:$0xff]
      %v1489 = vld [vmem:[%s1484 + $0x20] sm:$0xff]
      %v1490 = vld [vmem:[%s1484 + $0x28] sm:$0xff]
      %v1491 = vld [vmem:[%s1484 + $0x30] sm:$0xff]
      %v1492 = vld [vmem:[%s1484 + $0x38] sm:$0xff]
      %v1501 = vunpack.c.l.b16 %v1485
      %v1502 = vunpack.c.h.b16 %v1485
      %v1503 = vunpack.c.l.b16 %v1486
      %v1504 = vunpack.c.h.b16 %v1486
      %v1505 = vunpack.c.l.b16 %v1487
      %v1506 = vunpack.c.h.b16 %v1487
      %v1507 = vunpack.c.l.b16 %v1488
      %v1508 = vunpack.c.h.b16 %v1488
      %v1509 = vunpack.c.l.b16 %v1489
      %v1510 = vunpack.c.h.b16 %v1489
      %v1511 = vunpack.c.l.b16 %v1490
      %v1512 = vunpack.c.h.b16 %v1490
      %v1513 = vunpack.c.l.b16 %v1491
      %v1514 = vunpack.c.h.b16 %v1491
      %v1515 = vunpack.c.l.b16 %v1492
      %v1516 = vunpack.c.h.b16 %v1492
      %v1517 = vpack.c.b16 %v1503, %v1501
      %v1518 = vpack.c.b16 %v1504, %v1502
      %v1519 = vpack.c.b16 %v1507, %v1505
      %v1520 = vpack.c.b16 %v1508, %v1506
      %v1521 = vpack.c.b16 %v1511, %v1509
      %v1522 = vpack.c.b16 %v1512, %v1510
      %v1523 = vpack.c.b16 %v1515, %v1513
      %v1524 = vpack.c.b16 %v1516, %v1514
      %1533 = vmatprep.subr.bf16.mxu0 0
      %1534 = vmatpush1.bf16.msra.mxu0 %v1061
      %1535 = vmatprep.subr.bf16.mxu0 0
      %1536 = vmatpush1.bf16.msra.mxu0 %v1062
      %1537 = vmatprep.subr.bf16.mxu0 0
      %1538 = vmatpush1.bf16.msra.mxu0 %v1063
      %1539 = vmatprep.subr.bf16.mxu0 0
      %1540 = vmatpush1.bf16.msra.mxu0 %v1064
      %1541 = vmatprep.subr.bf16.mxu0 0
      %1542 = vmatpush1.bf16.msra.mxu0 %v1065
      %1543 = vmatprep.subr.bf16.mxu0 0
      %1544 = vmatpush1.bf16.msra.mxu0 %v1066
      %1545 = vmatprep.subr.bf16.mxu0 0
      %1546 = vmatpush1.bf16.msra.mxu0 %v1067
      %1547 = vmatprep.subr.bf16.mxu0 0
      %1548 = vmatpush1.bf16.msra.mxu0 %v1068
      %1549 = vmatprep.subr.bf16.mxu0 0
      %1550 = vmatpush1.bf16.msra.mxu0 %v1069
      %1551 = vmatprep.subr.bf16.mxu0 0
      %1552 = vmatpush1.bf16.msra.mxu0 %v1070
      %1553 = vmatprep.subr.bf16.mxu0 0
      %1554 = vmatpush1.bf16.msra.mxu0 %v1071
      %1555 = vmatprep.subr.bf16.mxu0 0
      %1556 = vmatpush1.bf16.msra.mxu0 %v1072
      %1557 = vmatprep.subr.bf16.mxu0 0
      %1558 = vmatpush1.bf16.msra.mxu0 %v1073
      %1559 = vmatprep.subr.bf16.mxu0 0
      %1560 = vmatpush1.bf16.msra.mxu0 %v1074
      %1561 = vmatprep.subr.bf16.mxu0 0
      %1562 = vmatpush1.bf16.msra.mxu0 %v1075
      %1563 = vmatprep.subr.bf16.mxu0 0
      %1564 = vmatpush1.bf16.msra.mxu0 %v1076
      %1565 = vmatprep.mubr.bf16.mxu0 %v1518
      %1566 = vmatmul.mubr.bf16.gmra.mrb[0].mxu0 %v1517
      %v1567 = vpop.f32.mrb[0].mxu0
      %v1568 = vadd.f32 0.0, %v1567
      %v1569 = vpop.f32.mrb[0].mxu0
      %v1570 = vpop.f32.mrb[0].mxu0
      %v1571 = vadd.f32 0.0, %v1570
      %v1572 = vpop.f32.mrb[0].mxu0
      %1573 = vmatprep.mubr.bf16.mxu0 %v1520
      %1574 = vmatmul.mubr.bf16.gmra.mrb[0].mxu0 %v1519
      %v1575 = vpop.f32.mrb[0].mxu0
      %v1576 = vadd.f32 0.0, %v1575
      %v1577 = vpop.f32.mrb[0].mxu0
      %v1578 = vpop.f32.mrb[0].mxu0
      %v1579 = vadd.f32 0.0, %v1578
      %v1580 = vpop.f32.mrb[0].mxu0
      %1581 = vmatprep.mubr.bf16.mxu0 %v1522
      %1582 = vmatmul.mubr.bf16.gmra.mrb[0].mxu0 %v1521
      %v1583 = vpop.f32.mrb[0].mxu0
      %v1584 = vadd.f32 0.0, %v1583
      %v1585 = vpop.f32.mrb[0].mxu0
      %v1586 = vpop.f32.mrb[0].mxu0
      %v1587 = vadd.f32 0.0, %v1586
      %v1588 = vpop.f32.mrb[0].mxu0
      %1589 = vmatprep.mubr.bf16.mxu0 %v1524
      %1590 = vmatmul.mubr.bf16.gmra.mrb[0].mxu0 %v1523
      %v1591 = vpop.f32.mrb[0].mxu0
      %v1592 = vadd.f32 0.0, %v1591
      %v1593 = vpop.f32.mrb[0].mxu0
      %v1594 = vpop.f32.mrb[0].mxu0
      %v1595 = vadd.f32 0.0, %v1594
      %v1596 = vpop.f32.mrb[0].mxu0
      %1597 = vdwg.mxu0
      %v1598 = vpack.c.bf16 %v1571, %v1568
      %v1599 = vpack.c.bf16 %v1579, %v1576
      %v1600 = vpack.c.bf16 %v1587, %v1584
      %v1601 = vpack.c.bf16 %v1595, %v1592
      %s1602 = scalar_lea.vmem %s5, 16
      %v1603 = vld [vmem:[%s1602] sm:$0xf]
      %v1604 = vld [vmem:[%s1602 + $0x4] sm:$0xf]
      %v1607 = vunpack.c.l.b16 %v1603
      %v1608 = vunpack.c.l.b16 %v1604
      %v1609 = vpack.c.b16 %v1608, %v1607
      %v1612 = vsel %vm1323, %v1598, 0
      %v1615 = vsel %vm1323, %v1599, 0
      %v1618 = vsel %vm1323, %v1600, 0
      %v1621 = vsel %vm1323, %v1601, 0
      %1623 = vmatprep.subr.bf16.mxu0 0
      %1624 = vmatpush1.bf16.msra.mxu0 %v1609
      %1625 = vmatprep.subr.bf16.mxu0 0
      %1626 = vmatpush1.bf16.msra.mxu0 0
      %1627 = vmatprep.subr.bf16.mxu0 0
      %1628 = vmatpush1.bf16.msra.mxu0 0
      %1629 = vmatprep.subr.bf16.mxu0 0
      %1630 = vmatpush1.bf16.msra.mxu0 0
      %1631 = vmatprep.subr.bf16.mxu0 0
      %1632 = vmatpush1.bf16.msra.mxu0 0
      %1633 = vmatprep.subr.bf16.mxu0 0
      %1634 = vmatpush1.bf16.msra.mxu0 0
      %1635 = vmatprep.subr.bf16.mxu0 0
      %1636 = vmatpush1.bf16.msra.mxu0 0
      %1637 = vmatprep.subr.bf16.mxu0 0
      %1638 = vmatpush1.bf16.msra.mxu0 0
      %1639 = vmatprep.subr.bf16.mxu0 0
      %1640 = vmatpush1.bf16.msra.mxu0 0
      %1641 = vmatprep.subr.bf16.mxu0 0
      %1642 = vmatpush1.bf16.msra.mxu0 0
      %1643 = vmatprep.subr.bf16.mxu0 0
      %1644 = vmatpush1.bf16.msra.mxu0 0
      %1645 = vmatprep.subr.bf16.mxu0 0
      %1646 = vmatpush1.bf16.msra.mxu0 0
      %1647 = vmatprep.subr.bf16.mxu0 0
      %1648 = vmatpush1.bf16.msra.mxu0 0
      %1649 = vmatprep.subr.bf16.mxu0 0
      %1650 = vmatpush1.bf16.msra.mxu0 0
      %1651 = vmatprep.subr.bf16.mxu0 0
      %1652 = vmatpush1.bf16.msra.mxu0 0
      %1653 = vmatprep.subr.bf16.mxu0 0
      %1654 = vmatpush1.bf16.msra.mxu0 0
      %1655 = vmatprep.mubr.bf16.mxu0 0
      %1656 = vmatmul.mubr.bf16.gmra.mrb[0].mxu0 %v1612
      %v1657 = vpop.f32.mrb[0].mxu0
      %v1658 = vadd.f32 0.0, %v1657
      %v1659 = vpop.f32.mrb[0].mxu0
      %v1660 = vpop.f32.mrb[0].mxu0
      %v1661 = vadd.f32 0.0, %v1660
      %v1662 = vpop.f32.mrb[0].mxu0
      %1663 = vmatprep.mubr.bf16.mxu0 0
      %1664 = vmatmul.mubr.bf16.gmra.mrb[0].mxu0 %v1615
      %v1665 = vpop.f32.mrb[0].mxu0
      %v1666 = vadd.f32 0.0, %v1665
      %v1667 = vpop.f32.mrb[0].mxu0
      %v1668 = vpop.f32.mrb[0].mxu0
      %v1669 = vadd.f32 0.0, %v1668
      %v1670 = vpop.f32.mrb[0].mxu0
      %1671 = vmatprep.mubr.bf16.mxu0 0
      %1672 = vmatmul.mubr.bf16.gmra.mrb[0].mxu0 %v1618
      %v1673 = vpop.f32.mrb[0].mxu0
      %v1674 = vadd.f32 0.0, %v1673
      %v1675 = vpop.f32.mrb[0].mxu0
      %v1676 = vpop.f32.mrb[0].mxu0
      %v1677 = vadd.f32 0.0, %v1676
      %v1678 = vpop.f32.mrb[0].mxu0
      %1679 = vmatprep.mubr.bf16.mxu0 0
      %1680 = vmatmul.mubr.bf16.gmra.mrb[0].mxu0 %v1621
      %v1681 = vpop.f32.mrb[0].mxu0
      %v1682 = vadd.f32 0.0, %v1681
      %v1683 = vpop.f32.mrb[0].mxu0
      %v1684 = vpop.f32.mrb[0].mxu0
      %v1685 = vadd.f32 0.0, %v1684
      %v1686 = vpop.f32.mrb[0].mxu0
      %1687 = vdwg.mxu0
      %v1688 = vadd.f32 %v1454, %v1658
      %v1689 = vadd.f32 %v1457, %v1661
      %v1690 = vadd.f32 %v1462, %v1666
      %v1691 = vadd.f32 %v1465, %v1669
      %v1692 = vadd.f32 %v1470, %v1674
      %v1693 = vadd.f32 %v1473, %v1677
      %v1694 = vadd.f32 %v1478, %v1682
      %v1695 = vadd.f32 %v1481, %v1685
      %s1696 = scalar_lea.vmem %s4, 192
      %v1697 = vld [vmem:[%s1696] sm:$0xff]
      %v1698 = vld [vmem:[%s1696 + $0x8] sm:$0xff]
      %v1699 = vld [vmem:[%s1696 + $0x10] sm:$0xff]
      %v1700 = vld [vmem:[%s1696 + $0x18] sm:$0xff]
      %v1701 = vld [vmem:[%s1696 + $0x20] sm:$0xff]
      %v1702 = vld [vmem:[%s1696 + $0x28] sm:$0xff]
      %v1703 = vld [vmem:[%s1696 + $0x30] sm:$0xff]
      %v1704 = vld [vmem:[%s1696 + $0x38] sm:$0xff]
      %v1713 = vunpack.c.l.b16 %v1697
      %v1714 = vunpack.c.h.b16 %v1697
      %v1715 = vunpack.c.l.b16 %v1698
      %v1716 = vunpack.c.h.b16 %v1698
      %v1717 = vunpack.c.l.b16 %v1699
      %v1718 = vunpack.c.h.b16 %v1699
      %v1719 = vunpack.c.l.b16 %v1700
      %v1720 = vunpack.c.h.b16 %v1700
      %v1721 = vunpack.c.l.b16 %v1701
      %v1722 = vunpack.c.h.b16 %v1701
      %v1723 = vunpack.c.l.b16 %v1702
      %v1724 = vunpack.c.h.b16 %v1702
      %v1725 = vunpack.c.l.b16 %v1703
      %v1726 = vunpack.c.h.b16 %v1703
      %v1727 = vunpack.c.l.b16 %v1704
      %v1728 = vunpack.c.h.b16 %v1704
      %v1729 = vpack.c.b16 %v1715, %v1713
      %v1730 = vpack.c.b16 %v1716, %v1714
      %v1731 = vpack.c.b16 %v1719, %v1717
      %v1732 = vpack.c.b16 %v1720, %v1718
      %v1733 = vpack.c.b16 %v1723, %v1721
      %v1734 = vpack.c.b16 %v1724, %v1722
      %v1735 = vpack.c.b16 %v1727, %v1725
      %v1736 = vpack.c.b16 %v1728, %v1726
      %1745 = vmatprep.subr.bf16.mxu0 0
      %1746 = vmatpush1.bf16.msra.mxu0 %v1061
      %1747 = vmatprep.subr.bf16.mxu0 0
      %1748 = vmatpush1.bf16.msra.mxu0 %v1062
      %1749 = vmatprep.subr.bf16.mxu0 0
      %1750 = vmatpush1.bf16.msra.mxu0 %v1063
      %1751 = vmatprep.subr.bf16.mxu0 0
      %1752 = vmatpush1.bf16.msra.mxu0 %v1064
      %1753 = vmatprep.subr.bf16.mxu0 0
      %1754 = vmatpush1.bf16.msra.mxu0 %v1065
      %1755 = vmatprep.subr.bf16.mxu0 0
      %1756 = vmatpush1.bf16.msra.mxu0 %v1066
      %1757 = vmatprep.subr.bf16.mxu0 0
      %1758 = vmatpush1.bf16.msra.mxu0 %v1067
      %1759 = vmatprep.subr.bf16.mxu0 0
      %1760 = vmatpush1.bf16.msra.mxu0 %v1068
      %1761 = vmatprep.subr.bf16.mxu0 0
      %1762 = vmatpush1.bf16.msra.mxu0 %v1069
      %1763 = vmatprep.subr.bf16.mxu0 0
      %1764 = vmatpush1.bf16.msra.mxu0 %v1070
      %1765 = vmatprep.subr.bf16.mxu0 0
      %1766 = vmatpush1.bf16.msra.mxu0 %v1071
      %1767 = vmatprep.subr.bf16.mxu0 0
      %1768 = vmatpush1.bf16.msra.mxu0 %v1072
      %1769 = vmatprep.subr.bf16.mxu0 0
      %1770 = vmatpush1.bf16.msra.mxu0 %v1073
      %1771 = vmatprep.subr.bf16.mxu0 0
      %1772 = vmatpush1.bf16.msra.mxu0 %v1074
      %1773 = vmatprep.subr.bf16.mxu0 0
      %1774 = vmatpush1.bf16.msra.mxu0 %v1075
      %1775 = vmatprep.subr.bf16.mxu0 0
      %1776 = vmatpush1.bf16.msra.mxu0 %v1076
      %1777 = vmatprep.mubr.bf16.mxu0 %v1730
      %1778 = vmatmul.mubr.bf16.gmra.mrb[0].mxu0 %v1729
      %v1779 = vpop.f32.mrb[0].mxu0
      %v1780 = vadd.f32 0.0, %v1779
      %v1781 = vpop.f32.mrb[0].mxu0
      %v1782 = vpop.f32.mrb[0].mxu0
      %v1783 = vadd.f32 0.0, %v1782
      %v1784 = vpop.f32.mrb[0].mxu0
      %1785 = vmatprep.mubr.bf16.mxu0 %v1732
      %1786 = vmatmul.mubr.bf16.gmra.mrb[0].mxu0 %v1731
      %v1787 = vpop.f32.mrb[0].mxu0
      %v1788 = vadd.f32 0.0, %v1787
      %v1789 = vpop.f32.mrb[0].mxu0
      %v1790 = vpop.f32.mrb[0].mxu0
      %v1791 = vadd.f32 0.0, %v1790
      %v1792 = vpop.f32.mrb[0].mxu0
      %1793 = vmatprep.mubr.bf16.mxu0 %v1734
      %1794 = vmatmul.mubr.bf16.gmra.mrb[0].mxu0 %v1733
      %v1795 = vpop.f32.mrb[0].mxu0
      %v1796 = vadd.f32 0.0, %v1795
      %v1797 = vpop.f32.mrb[0].mxu0
      %v1798 = vpop.f32.mrb[0].mxu0
      %v1799 = vadd.f32 0.0, %v1798
      %v1800 = vpop.f32.mrb[0].mxu0
      %1801 = vmatprep.mubr.bf16.mxu0 %v1736
      %1802 = vmatmul.mubr.bf16.gmra.mrb[0].mxu0 %v1735
      %v1803 = vpop.f32.mrb[0].mxu0
      %v1804 = vadd.f32 0.0, %v1803
      %v1805 = vpop.f32.mrb[0].mxu0
      %v1806 = vpop.f32.mrb[0].mxu0
      %v1807 = vadd.f32 0.0, %v1806
      %v1808 = vpop.f32.mrb[0].mxu0
      %1809 = vdwg.mxu0
      %v1810 = vpack.c.bf16 %v1783, %v1780
      %v1811 = vpack.c.bf16 %v1791, %v1788
      %v1812 = vpack.c.bf16 %v1799, %v1796
      %v1813 = vpack.c.bf16 %v1807, %v1804
      %s1814 = scalar_lea.vmem %s5, 24
      %v1815 = vld [vmem:[%s1814] sm:$0xf]
      %v1816 = vld [vmem:[%s1814 + $0x4] sm:$0xf]
      %v1819 = vunpack.c.l.b16 %v1815
      %v1820 = vunpack.c.l.b16 %v1816
      %v1821 = vpack.c.b16 %v1820, %v1819
      %v1824 = vsel %vm1323, %v1810, 0
      %v1827 = vsel %vm1323, %v1811, 0
      %v1830 = vsel %vm1323, %v1812, 0
      %v1833 = vsel %vm1323, %v1813, 0
      %1835 = vmatprep.subr.bf16.mxu0 0
      %1836 = vmatpush1.bf16.msra.mxu0 %v1821
      %1837 = vmatprep.subr.bf16.mxu0 0
      %1838 = vmatpush1.bf16.msra.mxu0 0
      %1839 = vmatprep.subr.bf16.mxu0 0
      %1840 = vmatpush1.bf16.msra.mxu0 0
      %1841 = vmatprep.subr.bf16.mxu0 0
      %1842 = vmatpush1.bf16.msra.mxu0 0
      %1843 = vmatprep.subr.bf16.mxu0 0
      %1844 = vmatpush1.bf16.msra.mxu0 0
      %1845 = vmatprep.subr.bf16.mxu0 0
      %1846 = vmatpush1.bf16.msra.mxu0 0
      %1847 = vmatprep.subr.bf16.mxu0 0
      %1848 = vmatpush1.bf16.msra.mxu0 0
      %1849 = vmatprep.subr.bf16.mxu0 0
      %1850 = vmatpush1.bf16.msra.mxu0 0
      %1851 = vmatprep.subr.bf16.mxu0 0
      %1852 = vmatpush1.bf16.msra.mxu0 0
      %1853 = vmatprep.subr.bf16.mxu0 0
      %1854 = vmatpush1.bf16.msra.mxu0 0
      %1855 = vmatprep.subr.bf16.mxu0 0
      %1856 = vmatpush1.bf16.msra.mxu0 0
      %1857 = vmatprep.subr.bf16.mxu0 0
      %1858 = vmatpush1.bf16.msra.mxu0 0
      %1859 = vmatprep.subr.bf16.mxu0 0
      %1860 = vmatpush1.bf16.msra.mxu0 0
      %1861 = vmatprep.subr.bf16.mxu0 0
      %1862 = vmatpush1.bf16.msra.mxu0 0
      %1863 = vmatprep.subr.bf16.mxu0 0
      %1864 = vmatpush1.bf16.msra.mxu0 0
      %1865 = vmatprep.subr.bf16.mxu0 0
      %1866 = vmatpush1.bf16.msra.mxu0 0
      %1867 = vmatprep.mubr.bf16.mxu0 0
      %1868 = vmatmul.mubr.bf16.gmra.mrb[0].mxu0 %v1824
      %v1869 = vpop.f32.mrb[0].mxu0
      %v1870 = vadd.f32 0.0, %v1869
      %v1871 = vpop.f32.mrb[0].mxu0
      %v1872 = vpop.f32.mrb[0].mxu0
      %v1873 = vadd.f32 0.0, %v1872
      %v1874 = vpop.f32.mrb[0].mxu0
      %1875 = vmatprep.mubr.bf16.mxu0 0
      %1876 = vmatmul.mubr.bf16.gmra.mrb[0].mxu0 %v1827
      %v1877 = vpop.f32.mrb[0].mxu0
      %v1878 = vadd.f32 0.0, %v1877
      %v1879 = vpop.f32.mrb[0].mxu0
      %v1880 = vpop.f32.mrb[0].mxu0
      %v1881 = vadd.f32 0.0, %v1880
      %v1882 = vpop.f32.mrb[0].mxu0
      %1883 = vmatprep.mubr.bf16.mxu0 0
      %1884 = vmatmul.mubr.bf16.gmra.mrb[0].mxu0 %v1830
      %v1885 = vpop.f32.mrb[0].mxu0
      %v1886 = vadd.f32 0.0, %v1885
      %v1887 = vpop.f32.mrb[0].mxu0
      %v1888 = vpop.f32.mrb[0].mxu0
      %v1889 = vadd.f32 0.0, %v1888
      %v1890 = vpop.f32.mrb[0].mxu0
      %1891 = vmatprep.mubr.bf16.mxu0 0
      %1892 = vmatmul.mubr.bf16.gmra.mrb[0].mxu0 %v1833
      %v1893 = vpop.f32.mrb[0].mxu0
      %v1894 = vadd.f32 0.0, %v1893
      %v1895 = vpop.f32.mrb[0].mxu0
      %v1896 = vpop.f32.mrb[0].mxu0
      %v1897 = vadd.f32 0.0, %v1896
      %v1898 = vpop.f32.mrb[0].mxu0
      %1899 = vdwg.mxu0
      %v1900 = vadd.f32 %v1688, %v1870
      %v1901 = vadd.f32 %v1689, %v1873
      %v1902 = vadd.f32 %v1690, %v1878
      %v1903 = vadd.f32 %v1691, %v1881
      %v1904 = vadd.f32 %v1692, %v1886
      %v1905 = vadd.f32 %v1693, %v1889
      %v1906 = vadd.f32 %v1694, %v1894
      %v1907 = vadd.f32 %v1695, %v1897
      %s1908 = scalar_lea.vmem %s4, 256
      %v1909 = vld [vmem:[%s1908] sm:$0xff]
      %v1910 = vld [vmem:[%s1908 + $0x8] sm:$0xff]
      %v1911 = vld [vmem:[%s1908 + $0x10] sm:$0xff]
      %v1912 = vld [vmem:[%s1908 + $0x18] sm:$0xff]
      %v1913 = vld [vmem:[%s1908 + $0x20] sm:$0xff]
      %v1914 = vld [vmem:[%s1908 + $0x28] sm:$0xff]
      %v1915 = vld [vmem:[%s1908 + $0x30] sm:$0xff]
      %v1916 = vld [vmem:[%s1908 + $0x38] sm:$0xff]
      %v1925 = vunpack.c.l.b16 %v1909
      %v1926 = vunpack.c.h.b16 %v1909
      %v1927 = vunpack.c.l.b16 %v1910
      %v1928 = vunpack.c.h.b16 %v1910
      %v1929 = vunpack.c.l.b16 %v1911
      %v1930 = vunpack.c.h.b16 %v1911
      %v1931 = vunpack.c.l.b16 %v1912
      %v1932 = vunpack.c.h.b16 %v1912
      %v1933 = vunpack.c.l.b16 %v1913
      %v1934 = vunpack.c.h.b16 %v1913
      %v1935 = vunpack.c.l.b16 %v1914
      %v1936 = vunpack.c.h.b16 %v1914
      %v1937 = vunpack.c.l.b16 %v1915
      %v1938 = vunpack.c.h.b16 %v1915
      %v1939 = vunpack.c.l.b16 %v1916
      %v1940 = vunpack.c.h.b16 %v1916
      %v1941 = vpack.c.b16 %v1927, %v1925
      %v1942 = vpack.c.b16 %v1928, %v1926
      %v1943 = vpack.c.b16 %v1931, %v1929
      %v1944 = vpack.c.b16 %v1932, %v1930
      %v1945 = vpack.c.b16 %v1935, %v1933
      %v1946 = vpack.c.b16 %v1936, %v1934
      %v1947 = vpack.c.b16 %v1939, %v1937
      %v1948 = vpack.c.b16 %v1940, %v1938
      %1957 = vmatprep.subr.bf16.mxu0 0
      %1958 = vmatpush1.bf16.msra.mxu0 %v1061
      %1959 = vmatprep.subr.bf16.mxu0 0
      %1960 = vmatpush1.bf16.msra.mxu0 %v1062
      %1961 = vmatprep.subr.bf16.mxu0 0
      %1962 = vmatpush1.bf16.msra.mxu0 %v1063
      %1963 = vmatprep.subr.bf16.mxu0 0
      %1964 = vmatpush1.bf16.msra.mxu0 %v1064
      %1965 = vmatprep.subr.bf16.mxu0 0
      %1966 = vmatpush1.bf16.msra.mxu0 %v1065
      %1967 = vmatprep.subr.bf16.mxu0 0
      %1968 = vmatpush1.bf16.msra.mxu0 %v1066
      %1969 = vmatprep.subr.bf16.mxu0 0
      %1970 = vmatpush1.bf16.msra.mxu0 %v1067
      %1971 = vmatprep.subr.bf16.mxu0 0
      %1972 = vmatpush1.bf16.msra.mxu0 %v1068
      %1973 = vmatprep.subr.bf16.mxu0 0
      %1974 = vmatpush1.bf16.msra.mxu0 %v1069
      %1975 = vmatprep.subr.bf16.mxu0 0
      %1976 = vmatpush1.bf16.msra.mxu0 %v1070
      %1977 = vmatprep.subr.bf16.mxu0 0
      %1978 = vmatpush1.bf16.msra.mxu0 %v1071
      %1979 = vmatprep.subr.bf16.mxu0 0
      %1980 = vmatpush1.bf16.msra.mxu0 %v1072
      %1981 = vmatprep.subr.bf16.mxu0 0
      %1982 = vmatpush1.bf16.msra.mxu0 %v1073
      %1983 = vmatprep.subr.bf16.mxu0 0
      %1984 = vmatpush1.bf16.msra.mxu0 %v1074
      %1985 = vmatprep.subr.bf16.mxu0 0
      %1986 = vmatpush1.bf16.msra.mxu0 %v1075
      %1987 = vmatprep.subr.bf16.mxu0 0
      %1988 = vmatpush1.bf16.msra.mxu0 %v1076
      %1989 = vmatprep.mubr.bf16.mxu0 %v1942
      %1990 = vmatmul.mubr.bf16.gmra.mrb[0].mxu0 %v1941
      %v1991 = vpop.f32.mrb[0].mxu0
      %v1992 = vadd.f32 0.0, %v1991
      %v1993 = vpop.f32.mrb[0].mxu0
      %v1994 = vpop.f32.mrb[0].mxu0
      %v1995 = vadd.f32 0.0, %v1994
      %v1996 = vpop.f32.mrb[0].mxu0
      %1997 = vmatprep.mubr.bf16.mxu0 %v1944
      %1998 = vmatmul.mubr.bf16.gmra.mrb[0].mxu0 %v1943
      %v1999 = vpop.f32.mrb[0].mxu0
      %v2000 = vadd.f32 0.0, %v1999
      %v2001 = vpop.f32.mrb[0].mxu0
      %v2002 = vpop.f32.mrb[0].mxu0
      %v2003 = vadd.f32 0.0, %v2002
      %v2004 = vpop.f32.mrb[0].mxu0
      %2005 = vmatprep.mubr.bf16.mxu0 %v1946
      %2006 = vmatmul.mubr.bf16.gmra.mrb[0].mxu0 %v1945
      %v2007 = vpop.f32.mrb[0].mxu0
      %v2008 = vadd.f32 0.0, %v2007
      %v2009 = vpop.f32.mrb[0].mxu0
      %v2010 = vpop.f32.mrb[0].mxu0
      %v2011 = vadd.f32 0.0, %v2010
      %v2012 = vpop.f32.mrb[0].mxu0
      %2013 = vmatprep.mubr.bf16.mxu0 %v1948
      %2014 = vmatmul.mubr.bf16.gmra.mrb[0].mxu0 %v1947
      %v2015 = vpop.f32.mrb[0].mxu0
      %v2016 = vadd.f32 0.0, %v2015
      %v2017 = vpop.f32.mrb[0].mxu0
      %v2018 = vpop.f32.mrb[0].mxu0
      %v2019 = vadd.f32 0.0, %v2018
      %v2020 = vpop.f32.mrb[0].mxu0
      %2021 = vdwg.mxu0
      %v2022 = vpack.c.bf16 %v1995, %v1992
      %v2023 = vpack.c.bf16 %v2003, %v2000
      %v2024 = vpack.c.bf16 %v2011, %v2008
      %v2025 = vpack.c.bf16 %v2019, %v2016
      %s2026 = scalar_lea.vmem %s5, 32
      %v2027 = vld [vmem:[%s2026] sm:$0xf]
      %v2028 = vld [vmem:[%s2026 + $0x4] sm:$0xf]
      %v2031 = vunpack.c.l.b16 %v2027
      %v2032 = vunpack.c.l.b16 %v2028
      %v2033 = vpack.c.b16 %v2032, %v2031
      %v2036 = vsel %vm1323, %v2022, 0
      %v2039 = vsel %vm1323, %v2023, 0
      %v2042 = vsel %vm1323, %v2024, 0
      %v2045 = vsel %vm1323, %v2025, 0
      %2047 = vmatprep.subr.bf16.mxu0 0
      %2048 = vmatpush1.bf16.msra.mxu0 %v2033
      %2049 = vmatprep.subr.bf16.mxu0 0
      %2050 = vmatpush1.bf16.msra.mxu0 0
      %2051 = vmatprep.subr.bf16.mxu0 0
      %2052 = vmatpush1.bf16.msra.mxu0 0
      %2053 = vmatprep.subr.bf16.mxu0 0
      %2054 = vmatpush1.bf16.msra.mxu0 0
      %2055 = vmatprep.subr.bf16.mxu0 0
      %2056 = vmatpush1.bf16.msra.mxu0 0
      %2057 = vmatprep.subr.bf16.mxu0 0
      %2058 = vmatpush1.bf16.msra.mxu0 0
      %2059 = vmatprep.subr.bf16.mxu0 0
      %2060 = vmatpush1.bf16.msra.mxu0 0
      %2061 = vmatprep.subr.bf16.mxu0 0
      %2062 = vmatpush1.bf16.msra.mxu0 0
      %2063 = vmatprep.subr.bf16.mxu0 0
      %2064 = vmatpush1.bf16.msra.mxu0 0
      %2065 = vmatprep.subr.bf16.mxu0 0
      %2066 = vmatpush1.bf16.msra.mxu0 0
      %2067 = vmatprep.subr.bf16.mxu0 0
      %2068 = vmatpush1.bf16.msra.mxu0 0
      %2069 = vmatprep.subr.bf16.mxu0 0
      %2070 = vmatpush1.bf16.msra.mxu0 0
      %2071 = vmatprep.subr.bf16.mxu0 0
      %2072 = vmatpush1.bf16.msra.mxu0 0
      %2073 = vmatprep.subr.bf16.mxu0 0
      %2074 = vmatpush1.bf16.msra.mxu0 0
      %2075 = vmatprep.subr.bf16.mxu0 0
      %2076 = vmatpush1.bf16.msra.mxu0 0
      %2077 = vmatprep.subr.bf16.mxu0 0
      %2078 = vmatpush1.bf16.msra.mxu0 0
      %2079 = vmatprep.mubr.bf16.mxu0 0
      %2080 = vmatmul.mubr.bf16.gmra.mrb[0].mxu0 %v2036
      %v2081 = vpop.f32.mrb[0].mxu0
      %v2082 = vadd.f32 0.0, %v2081
      %v2083 = vpop.f32.mrb[0].mxu0
      %v2084 = vpop.f32.mrb[0].mxu0
      %v2085 = vadd.f32 0.0, %v2084
      %v2086 = vpop.f32.mrb[0].mxu0
      %2087 = vmatprep.mubr.bf16.mxu0 0
      %2088 = vmatmul.mubr.bf16.gmra.mrb[0].mxu0 %v2039
      %v2089 = vpop.f32.mrb[0].mxu0
      %v2090 = vadd.f32 0.0, %v2089
      %v2091 = vpop.f32.mrb[0].mxu0
      %v2092 = vpop.f32.mrb[0].mxu0
      %v2093 = vadd.f32 0.0, %v2092
      %v2094 = vpop.f32.mrb[0].mxu0
      %2095 = vmatprep.mubr.bf16.mxu0 0
      %2096 = vmatmul.mubr.bf16.gmra.mrb[0].mxu0 %v2042
      %v2097 = vpop.f32.mrb[0].mxu0
      %v2098 = vadd.f32 0.0, %v2097
      %v2099 = vpop.f32.mrb[0].mxu0
      %v2100 = vpop.f32.mrb[0].mxu0
      %v2101 = vadd.f32 0.0, %v2100
      %v2102 = vpop.f32.mrb[0].mxu0
      %2103 = vmatprep.mubr.bf16.mxu0 0
      %2104 = vmatmul.mubr.bf16.gmra.mrb[0].mxu0 %v2045
      %v2105 = vpop.f32.mrb[0].mxu0
      %v2106 = vadd.f32 0.0, %v2105
      %v2107 = vpop.f32.mrb[0].mxu0
      %v2108 = vpop.f32.mrb[0].mxu0
      %v2109 = vadd.f32 0.0, %v2108
      %v2110 = vpop.f32.mrb[0].mxu0
      %2111 = vdwg.mxu0
      %v2112 = vadd.f32 %v1900, %v2082
      %v2113 = vadd.f32 %v1901, %v2085
      %v2114 = vadd.f32 %v1902, %v2090
      %v2115 = vadd.f32 %v1903, %v2093
      %v2116 = vadd.f32 %v1904, %v2098
      %v2117 = vadd.f32 %v1905, %v2101
      %v2118 = vadd.f32 %v1906, %v2106
      %v2119 = vadd.f32 %v1907, %v2109
      %s2120 = scalar_lea.vmem %s4, 320
      %v2121 = vld [vmem:[%s2120] sm:$0xff]
      %v2122 = vld [vmem:[%s2120 + $0x8] sm:$0xff]
      %v2123 = vld [vmem:[%s2120 + $0x10] sm:$0xff]
      %v2124 = vld [vmem:[%s2120 + $0x18] sm:$0xff]
      %v2125 = vld [vmem:[%s2120 + $0x20] sm:$0xff]
      %v2126 = vld [vmem:[%s2120 + $0x28] sm:$0xff]
      %v2127 = vld [vmem:[%s2120 + $0x30] sm:$0xff]
      %v2128 = vld [vmem:[%s2120 + $0x38] sm:$0xff]
      %v2137 = vunpack.c.l.b16 %v2121
      %v2138 = vunpack.c.h.b16 %v2121
      %v2139 = vunpack.c.l.b16 %v2122
      %v2140 = vunpack.c.h.b16 %v2122
      %v2141 = vunpack.c.l.b16 %v2123
      %v2142 = vunpack.c.h.b16 %v2123
      %v2143 = vunpack.c.l.b16 %v2124
      %v2144 = vunpack.c.h.b16 %v2124
      %v2145 = vunpack.c.l.b16 %v2125
      %v2146 = vunpack.c.h.b16 %v2125
      %v2147 = vunpack.c.l.b16 %v2126
      %v2148 = vunpack.c.h.b16 %v2126
      %v2149 = vunpack.c.l.b16 %v2127
      %v2150 = vunpack.c.h.b16 %v2127
      %v2151 = vunpack.c.l.b16 %v2128
      %v2152 = vunpack.c.h.b16 %v2128
      %v2153 = vpack.c.b16 %v2139, %v2137
      %v2154 = vpack.c.b16 %v2140, %v2138
      %v2155 = vpack.c.b16 %v2143, %v2141
      %v2156 = vpack.c.b16 %v2144, %v2142
      %v2157 = vpack.c.b16 %v2147, %v2145
      %v2158 = vpack.c.b16 %v2148, %v2146
      %v2159 = vpack.c.b16 %v2151, %v2149
      %v2160 = vpack.c.b16 %v2152, %v2150
      %2169 = vmatprep.subr.bf16.mxu0 0
      %2170 = vmatpush1.bf16.msra.mxu0 %v1061
      %2171 = vmatprep.subr.bf16.mxu0 0
      %2172 = vmatpush1.bf16.msra.mxu0 %v1062
      %2173 = vmatprep.subr.bf16.mxu0 0
      %2174 = vmatpush1.bf16.msra.mxu0 %v1063
      %2175 = vmatprep.subr.bf16.mxu0 0
      %2176 = vmatpush1.bf16.msra.mxu0 %v1064
      %2177 = vmatprep.subr.bf16.mxu0 0
      %2178 = vmatpush1.bf16.msra.mxu0 %v1065
      %2179 = vmatprep.subr.bf16.mxu0 0
      %2180 = vmatpush1.bf16.msra.mxu0 %v1066
      %2181 = vmatprep.subr.bf16.mxu0 0
      %2182 = vmatpush1.bf16.msra.mxu0 %v1067
      %2183 = vmatprep.subr.bf16.mxu0 0
      %2184 = vmatpush1.bf16.msra.mxu0 %v1068
      %2185 = vmatprep.subr.bf16.mxu0 0
      %2186 = vmatpush1.bf16.msra.mxu0 %v1069
      %2187 = vmatprep.subr.bf16.mxu0 0
      %2188 = vmatpush1.bf16.msra.mxu0 %v1070
      %2189 = vmatprep.subr.bf16.mxu0 0
      %2190 = vmatpush1.bf16.msra.mxu0 %v1071
      %2191 = vmatprep.subr.bf16.mxu0 0
      %2192 = vmatpush1.bf16.msra.mxu0 %v1072
      %2193 = vmatprep.subr.bf16.mxu0 0
      %2194 = vmatpush1.bf16.msra.mxu0 %v1073
      %2195 = vmatprep.subr.bf16.mxu0 0
      %2196 = vmatpush1.bf16.msra.mxu0 %v1074
      %2197 = vmatprep.subr.bf16.mxu0 0
      %2198 = vmatpush1.bf16.msra.mxu0 %v1075
      %2199 = vmatprep.subr.bf16.mxu0 0
      %2200 = vmatpush1.bf16.msra.mxu0 %v1076
      %2201 = vmatprep.mubr.bf16.mxu0 %v2154
      %2202 = vmatmul.mubr.bf16.gmra.mrb[0].mxu0 %v2153
      %v2203 = vpop.f32.mrb[0].mxu0
      %v2204 = vadd.f32 0.0, %v2203
      %v2205 = vpop.f32.mrb[0].mxu0
      %v2206 = vpop.f32.mrb[0].mxu0
      %v2207 = vadd.f32 0.0, %v2206
      %v2208 = vpop.f32.mrb[0].mxu0
      %2209 = vmatprep.mubr.bf16.mxu0 %v2156
      %2210 = vmatmul.mubr.bf16.gmra.mrb[0].mxu0 %v2155
      %v2211 = vpop.f32.mrb[0].mxu0
      %v2212 = vadd.f32 0.0, %v2211
      %v2213 = vpop.f32.mrb[0].mxu0
      %v2214 = vpop.f32.mrb[0].mxu0
      %v2215 = vadd.f32 0.0, %v2214
      %v2216 = vpop.f32.mrb[0].mxu0
      %2217 = vmatprep.mubr.bf16.mxu0 %v2158
      %2218 = vmatmul.mubr.bf16.gmra.mrb[0].mxu0 %v2157
      %v2219 = vpop.f32.mrb[0].mxu0
      %v2220 = vadd.f32 0.0, %v2219
      %v2221 = vpop.f32.mrb[0].mxu0
      %v2222 = vpop.f32.mrb[0].mxu0
      %v2223 = vadd.f32 0.0, %v2222
      %v2224 = vpop.f32.mrb[0].mxu0
      %2225 = vmatprep.mubr.bf16.mxu0 %v2160
      %2226 = vmatmul.mubr.bf16.gmra.mrb[0].mxu0 %v2159
      %v2227 = vpop.f32.mrb[0].mxu0
      %v2228 = vadd.f32 0.0, %v2227
      %v2229 = vpop.f32.mrb[0].mxu0
      %v2230 = vpop.f32.mrb[0].mxu0
      %v2231 = vadd.f32 0.0, %v2230
      %v2232 = vpop.f32.mrb[0].mxu0
      %2233 = vdwg.mxu0
      %v2234 = vpack.c.bf16 %v2207, %v2204
      %v2235 = vpack.c.bf16 %v2215, %v2212
      %v2236 = vpack.c.bf16 %v2223, %v2220
      %v2237 = vpack.c.bf16 %v2231, %v2228
      %s2238 = scalar_lea.vmem %s5, 40
      %v2239 = vld [vmem:[%s2238] sm:$0xf]
      %v2240 = vld [vmem:[%s2238 + $0x4] sm:$0xf]
      %v2243 = vunpack.c.l.b16 %v2239
      %v2244 = vunpack.c.l.b16 %v2240
      %v2245 = vpack.c.b16 %v2244, %v2243
      %v2248 = vsel %vm1323, %v2234, 0
      %v2251 = vsel %vm1323, %v2235, 0
      %v2254 = vsel %vm1323, %v2236, 0
      %v2257 = vsel %vm1323, %v2237, 0
      %2259 = vmatprep.subr.bf16.mxu0 0
      %2260 = vmatpush1.bf16.msra.mxu0 %v2245
      %2261 = vmatprep.subr.bf16.mxu0 0
      %2262 = vmatpush1.bf16.msra.mxu0 0
      %2263 = vmatprep.subr.bf16.mxu0 0
      %2264 = vmatpush1.bf16.msra.mxu0 0
      %2265 = vmatprep.subr.bf16.mxu0 0
      %2266 = vmatpush1.bf16.msra.mxu0 0
      %2267 = vmatprep.subr.bf16.mxu0 0
      %2268 = vmatpush1.bf16.msra.mxu0 0
      %2269 = vmatprep.subr.bf16.mxu0 0
      %2270 = vmatpush1.bf16.msra.mxu0 0
      %2271 = vmatprep.subr.bf16.mxu0 0
      %2272 = vmatpush1.bf16.msra.mxu0 0
      %2273 = vmatprep.subr.bf16.mxu0 0
      %2274 = vmatpush1.bf16.msra.mxu0 0
      %2275 = vmatprep.subr.bf16.mxu0 0
      %2276 = vmatpush1.bf16.msra.mxu0 0
      %2277 = vmatprep.subr.bf16.mxu0 0
      %2278 = vmatpush1.bf16.msra.mxu0 0
      %2279 = vmatprep.subr.bf16.mxu0 0
      %2280 = vmatpush1.bf16.msra.mxu0 0
      %2281 = vmatprep.subr.bf16.mxu0 0
      %2282 = vmatpush1.bf16.msra.mxu0 0
      %2283 = vmatprep.subr.bf16.mxu0 0
      %2284 = vmatpush1.bf16.msra.mxu0 0
      %2285 = vmatprep.subr.bf16.mxu0 0
      %2286 = vmatpush1.bf16.msra.mxu0 0
      %2287 = vmatprep.subr.bf16.mxu0 0
      %2288 = vmatpush1.bf16.msra.mxu0 0
      %2289 = vmatprep.subr.bf16.mxu0 0
      %2290 = vmatpush1.bf16.msra.mxu0 0
      %2291 = vmatprep.mubr.bf16.mxu0 0
      %2292 = vmatmul.mubr.bf16.gmra.mrb[0].mxu0 %v2248
      %v2293 = vpop.f32.mrb[0].mxu0
      %v2294 = vadd.f32 0.0, %v2293
      %v2295 = vpop.f32.mrb[0].mxu0
      %v2296 = vpop.f32.mrb[0].mxu0
      %v2297 = vadd.f32 0.0, %v2296
      %v2298 = vpop.f32.mrb[0].mxu0
      %2299 = vmatprep.mubr.bf16.mxu0 0
      %2300 = vmatmul.mubr.bf16.gmra.mrb[0].mxu0 %v2251
      %v2301 = vpop.f32.mrb[0].mxu0
      %v2302 = vadd.f32 0.0, %v2301
      %v2303 = vpop.f32.mrb[0].mxu0
      %v2304 = vpop.f32.mrb[0].mxu0
      %v2305 = vadd.f32 0.0, %v2304
      %v2306 = vpop.f32.mrb[0].mxu0
      %2307 = vmatprep.mubr.bf16.mxu0 0
      %2308 = vmatmul.mubr.bf16.gmra.mrb[0].mxu0 %v2254
      %v2309 = vpop.f32.mrb[0].mxu0
      %v2310 = vadd.f32 0.0, %v2309
      %v2311 = vpop.f32.mrb[0].mxu0
      %v2312 = vpop.f32.mrb[0].mxu0
      %v2313 = vadd.f32 0.0, %v2312
      %v2314 = vpop.f32.mrb[0].mxu0
      %2315 = vmatprep.mubr.bf16.mxu0 0
      %2316 = vmatmul.mubr.bf16.gmra.mrb[0].mxu0 %v2257
      %v2317 = vpop.f32.mrb[0].mxu0
      %v2318 = vadd.f32 0.0, %v2317
      %v2319 = vpop.f32.mrb[0].mxu0
      %v2320 = vpop.f32.mrb[0].mxu0
      %v2321 = vadd.f32 0.0, %v2320
      %v2322 = vpop.f32.mrb[0].mxu0
      %2323 = vdwg.mxu0
      %v2324 = vadd.f32 %v2112, %v2294
      %v2325 = vadd.f32 %v2113, %v2297
      %v2326 = vadd.f32 %v2114, %v2302
      %v2327 = vadd.f32 %v2115, %v2305
      %v2328 = vadd.f32 %v2116, %v2310
      %v2329 = vadd.f32 %v2117, %v2313
      %v2330 = vadd.f32 %v2118, %v2318
      %v2331 = vadd.f32 %v2119, %v2321
      %s2332 = scalar_lea.vmem %s4, 384
      %v2333 = vld [vmem:[%s2332] sm:$0xff]
      %v2334 = vld [vmem:[%s2332 + $0x8] sm:$0xff]
      %v2335 = vld [vmem:[%s2332 + $0x10] sm:$0xff]
      %v2336 = vld [vmem:[%s2332 + $0x18] sm:$0xff]
      %v2337 = vld [vmem:[%s2332 + $0x20] sm:$0xff]
      %v2338 = vld [vmem:[%s2332 + $0x28] sm:$0xff]
      %v2339 = vld [vmem:[%s2332 + $0x30] sm:$0xff]
      %v2340 = vld [vmem:[%s2332 + $0x38] sm:$0xff]
      %v2349 = vunpack.c.l.b16 %v2333
      %v2350 = vunpack.c.h.b16 %v2333
      %v2351 = vunpack.c.l.b16 %v2334
      %v2352 = vunpack.c.h.b16 %v2334
      %v2353 = vunpack.c.l.b16 %v2335
      %v2354 = vunpack.c.h.b16 %v2335
      %v2355 = vunpack.c.l.b16 %v2336
      %v2356 = vunpack.c.h.b16 %v2336
      %v2357 = vunpack.c.l.b16 %v2337
      %v2358 = vunpack.c.h.b16 %v2337
      %v2359 = vunpack.c.l.b16 %v2338
      %v2360 = vunpack.c.h.b16 %v2338
      %v2361 = vunpack.c.l.b16 %v2339
      %v2362 = vunpack.c.h.b16 %v2339
      %v2363 = vunpack.c.l.b16 %v2340
      %v2364 = vunpack.c.h.b16 %v2340
      %v2365 = vpack.c.b16 %v2351, %v2349
      %v2366 = vpack.c.b16 %v2352, %v2350
      %v2367 = vpack.c.b16 %v2355, %v2353
      %v2368 = vpack.c.b16 %v2356, %v2354
      %v2369 = vpack.c.b16 %v2359, %v2357
      %v2370 = vpack.c.b16 %v2360, %v2358
      %v2371 = vpack.c.b16 %v2363, %v2361
      %v2372 = vpack.c.b16 %v2364, %v2362
      %2381 = vmatprep.subr.bf16.mxu0 0
      %2382 = vmatpush1.bf16.msra.mxu0 %v1061
      %2383 = vmatprep.subr.bf16.mxu0 0
      %2384 = vmatpush1.bf16.msra.mxu0 %v1062
      %2385 = vmatprep.subr.bf16.mxu0 0
      %2386 = vmatpush1.bf16.msra.mxu0 %v1063
      %2387 = vmatprep.subr.bf16.mxu0 0
      %2388 = vmatpush1.bf16.msra.mxu0 %v1064
      %2389 = vmatprep.subr.bf16.mxu0 0
      %2390 = vmatpush1.bf16.msra.mxu0 %v1065
      %2391 = vmatprep.subr.bf16.mxu0 0
      %2392 = vmatpush1.bf16.msra.mxu0 %v1066
      %2393 = vmatprep.subr.bf16.mxu0 0
      %2394 = vmatpush1.bf16.msra.mxu0 %v1067
      %2395 = vmatprep.subr.bf16.mxu0 0
      %2396 = vmatpush1.bf16.msra.mxu0 %v1068
      %2397 = vmatprep.subr.bf16.mxu0 0
      %2398 = vmatpush1.bf16.msra.mxu0 %v1069
      %2399 = vmatprep.subr.bf16.mxu0 0
      %2400 = vmatpush1.bf16.msra.mxu0 %v1070
      %2401 = vmatprep.subr.bf16.mxu0 0
      %2402 = vmatpush1.bf16.msra.mxu0 %v1071
      %2403 = vmatprep.subr.bf16.mxu0 0
      %2404 = vmatpush1.bf16.msra.mxu0 %v1072
      %2405 = vmatprep.subr.bf16.mxu0 0
      %2406 = vmatpush1.bf16.msra.mxu0 %v1073
      %2407 = vmatprep.subr.bf16.mxu0 0
      %2408 = vmatpush1.bf16.msra.mxu0 %v1074
      %2409 = vmatprep.subr.bf16.mxu0 0
      %2410 = vmatpush1.bf16.msra.mxu0 %v1075
      %2411 = vmatprep.subr.bf16.mxu0 0
      %2412 = vmatpush1.bf16.msra.mxu0 %v1076
      %2413 = vmatprep.mubr.bf16.mxu0 %v2366
      %2414 = vmatmul.mubr.bf16.gmra.mrb[0].mxu0 %v2365
      %v2415 = vpop.f32.mrb[0].mxu0
      %v2416 = vadd.f32 0.0, %v2415
      %v2417 = vpop.f32.mrb[0].mxu0
      %v2418 = vpop.f32.mrb[0].mxu0
      %v2419 = vadd.f32 0.0, %v2418
      %v2420 = vpop.f32.mrb[0].mxu0
      %2421 = vmatprep.mubr.bf16.mxu0 %v2368
      %2422 = vmatmul.mubr.bf16.gmra.mrb[0].mxu0 %v2367
      %v2423 = vpop.f32.mrb[0].mxu0
      %v2424 = vadd.f32 0.0, %v2423
      %v2425 = vpop.f32.mrb[0].mxu0
      %v2426 = vpop.f32.mrb[0].mxu0
      %v2427 = vadd.f32 0.0, %v2426
      %v2428 = vpop.f32.mrb[0].mxu0
      %2429 = vmatprep.mubr.bf16.mxu0 %v2370
      %2430 = vmatmul.mubr.bf16.gmra.mrb[0].mxu0 %v2369
      %v2431 = vpop.f32.mrb[0].mxu0
      %v2432 = vadd.f32 0.0, %v2431
      %v2433 = vpop.f32.mrb[0].mxu0
      %v2434 = vpop.f32.mrb[0].mxu0
      %v2435 = vadd.f32 0.0, %v2434
      %v2436 = vpop.f32.mrb[0].mxu0
      %2437 = vmatprep.mubr.bf16.mxu0 %v2372
      %2438 = vmatmul.mubr.bf16.gmra.mrb[0].mxu0 %v2371
      %v2439 = vpop.f32.mrb[0].mxu0
      %v2440 = vadd.f32 0.0, %v2439
      %v2441 = vpop.f32.mrb[0].mxu0
      %v2442 = vpop.f32.mrb[0].mxu0
      %v2443 = vadd.f32 0.0, %v2442
      %v2444 = vpop.f32.mrb[0].mxu0
      %2445 = vdwg.mxu0
      %v2446 = vpack.c.bf16 %v2419, %v2416
      %v2447 = vpack.c.bf16 %v2427, %v2424
      %v2448 = vpack.c.bf16 %v2435, %v2432
      %v2449 = vpack.c.bf16 %v2443, %v2440
      %s2450 = scalar_lea.vmem %s5, 48
      %v2451 = vld [vmem:[%s2450] sm:$0xf]
      %v2452 = vld [vmem:[%s2450 + $0x4] sm:$0xf]
      %v2455 = vunpack.c.l.b16 %v2451
      %v2456 = vunpack.c.l.b16 %v2452
      %v2457 = vpack.c.b16 %v2456, %v2455
      %v2460 = vsel %vm1323, %v2446, 0
      %v2463 = vsel %vm1323, %v2447, 0
      %v2466 = vsel %vm1323, %v2448, 0
      %v2469 = vsel %vm1323, %v2449, 0
      %2471 = vmatprep.subr.bf16.mxu0 0
      %2472 = vmatpush1.bf16.msra.mxu0 %v2457
      %2473 = vmatprep.subr.bf16.mxu0 0
      %2474 = vmatpush1.bf16.msra.mxu0 0
      %2475 = vmatprep.subr.bf16.mxu0 0
      %2476 = vmatpush1.bf16.msra.mxu0 0
      %2477 = vmatprep.subr.bf16.mxu0 0
      %2478 = vmatpush1.bf16.msra.mxu0 0
      %2479 = vmatprep.subr.bf16.mxu0 0
      %2480 = vmatpush1.bf16.msra.mxu0 0
      %2481 = vmatprep.subr.bf16.mxu0 0
      %2482 = vmatpush1.bf16.msra.mxu0 0
      %2483 = vmatprep.subr.bf16.mxu0 0
      %2484 = vmatpush1.bf16.msra.mxu0 0
      %2485 = vmatprep.subr.bf16.mxu0 0
      %2486 = vmatpush1.bf16.msra.mxu0 0
      %2487 = vmatprep.subr.bf16.mxu0 0
      %2488 = vmatpush1.bf16.msra.mxu0 0
      %2489 = vmatprep.subr.bf16.mxu0 0
      %2490 = vmatpush1.bf16.msra.mxu0 0
      %2491 = vmatprep.subr.bf16.mxu0 0
      %2492 = vmatpush1.bf16.msra.mxu0 0
      %2493 = vmatprep.subr.bf16.mxu0 0
      %2494 = vmatpush1.bf16.msra.mxu0 0
      %2495 = vmatprep.subr.bf16.mxu0 0
      %2496 = vmatpush1.bf16.msra.mxu0 0
      %2497 = vmatprep.subr.bf16.mxu0 0
      %2498 = vmatpush1.bf16.msra.mxu0 0
      %2499 = vmatprep.subr.bf16.mxu0 0
      %2500 = vmatpush1.bf16.msra.mxu0 0
      %2501 = vmatprep.subr.bf16.mxu0 0
      %2502 = vmatpush1.bf16.msra.mxu0 0
      %2503 = vmatprep.mubr.bf16.mxu0 0
      %2504 = vmatmul.mubr.bf16.gmra.mrb[0].mxu0 %v2460
      %v2505 = vpop.f32.mrb[0].mxu0
      %v2506 = vadd.f32 0.0, %v2505
      %v2507 = vpop.f32.mrb[0].mxu0
      %v2508 = vpop.f32.mrb[0].mxu0
      %v2509 = vadd.f32 0.0, %v2508
      %v2510 = vpop.f32.mrb[0].mxu0
      %2511 = vmatprep.mubr.bf16.mxu0 0
      %2512 = vmatmul.mubr.bf16.gmra.mrb[0].mxu0 %v2463
      %v2513 = vpop.f32.mrb[0].mxu0
      %v2514 = vadd.f32 0.0, %v2513
      %v2515 = vpop.f32.mrb[0].mxu0
      %v2516 = vpop.f32.mrb[0].mxu0
      %v2517 = vadd.f32 0.0, %v2516
      %v2518 = vpop.f32.mrb[0].mxu0
      %2519 = vmatprep.mubr.bf16.mxu0 0
      %2520 = vmatmul.mubr.bf16.gmra.mrb[0].mxu0 %v2466
      %v2521 = vpop.f32.mrb[0].mxu0
      %v2522 = vadd.f32 0.0, %v2521
      %v2523 = vpop.f32.mrb[0].mxu0
      %v2524 = vpop.f32.mrb[0].mxu0
      %v2525 = vadd.f32 0.0, %v2524
      %v2526 = vpop.f32.mrb[0].mxu0
      %2527 = vmatprep.mubr.bf16.mxu0 0
      %2528 = vmatmul.mubr.bf16.gmra.mrb[0].mxu0 %v2469
      %v2529 = vpop.f32.mrb[0].mxu0
      %v2530 = vadd.f32 0.0, %v2529
      %v2531 = vpop.f32.mrb[0].mxu0
      %v2532 = vpop.f32.mrb[0].mxu0
      %v2533 = vadd.f32 0.0, %v2532
      %v2534 = vpop.f32.mrb[0].mxu0
      %2535 = vdwg.mxu0
      %v2536 = vadd.f32 %v2324, %v2506
      %v2537 = vadd.f32 %v2325, %v2509
      %v2538 = vadd.f32 %v2326, %v2514
      %v2539 = vadd.f32 %v2327, %v2517
      %v2540 = vadd.f32 %v2328, %v2522
      %v2541 = vadd.f32 %v2329, %v2525
      %v2542 = vadd.f32 %v2330, %v2530
      %v2543 = vadd.f32 %v2331, %v2533
      %s2544 = scalar_lea.vmem %s4, 448
      %v2545 = vld [vmem:[%s2544] sm:$0xff]
      %v2546 = vld [vmem:[%s2544 + $0x8] sm:$0xff]
      %v2547 = vld [vmem:[%s2544 + $0x10] sm:$0xff]
      %v2548 = vld [vmem:[%s2544 + $0x18] sm:$0xff]
      %v2549 = vld [vmem:[%s2544 + $0x20] sm:$0xff]
      %v2550 = vld [vmem:[%s2544 + $0x28] sm:$0xff]
      %v2551 = vld [vmem:[%s2544 + $0x30] sm:$0xff]
      %v2552 = vld [vmem:[%s2544 + $0x38] sm:$0xff]
      %v2561 = vunpack.c.l.b16 %v2545
      %v2562 = vunpack.c.h.b16 %v2545
      %v2563 = vunpack.c.l.b16 %v2546
      %v2564 = vunpack.c.h.b16 %v2546
      %v2565 = vunpack.c.l.b16 %v2547
      %v2566 = vunpack.c.h.b16 %v2547
      %v2567 = vunpack.c.l.b16 %v2548
      %v2568 = vunpack.c.h.b16 %v2548
      %v2569 = vunpack.c.l.b16 %v2549
      %v2570 = vunpack.c.h.b16 %v2549
      %v2571 = vunpack.c.l.b16 %v2550
      %v2572 = vunpack.c.h.b16 %v2550
      %v2573 = vunpack.c.l.b16 %v2551
      %v2574 = vunpack.c.h.b16 %v2551
      %v2575 = vunpack.c.l.b16 %v2552
      %v2576 = vunpack.c.h.b16 %v2552
      %v2577 = vpack.c.b16 %v2563, %v2561
      %v2578 = vpack.c.b16 %v2564, %v2562
      %v2579 = vpack.c.b16 %v2567, %v2565
      %v2580 = vpack.c.b16 %v2568, %v2566
      %v2581 = vpack.c.b16 %v2571, %v2569
      %v2582 = vpack.c.b16 %v2572, %v2570
      %v2583 = vpack.c.b16 %v2575, %v2573
      %v2584 = vpack.c.b16 %v2576, %v2574
      %2593 = vmatprep.subr.bf16.mxu0 0
      %2594 = vmatpush1.bf16.msra.mxu0 %v1061
      %2595 = vmatprep.subr.bf16.mxu0 0
      %2596 = vmatpush1.bf16.msra.mxu0 %v1062
      %2597 = vmatprep.subr.bf16.mxu0 0
      %2598 = vmatpush1.bf16.msra.mxu0 %v1063
      %2599 = vmatprep.subr.bf16.mxu0 0
      %2600 = vmatpush1.bf16.msra.mxu0 %v1064
      %2601 = vmatprep.subr.bf16.mxu0 0
      %2602 = vmatpush1.bf16.msra.mxu0 %v1065
      %2603 = vmatprep.subr.bf16.mxu0 0
      %2604 = vmatpush1.bf16.msra.mxu0 %v1066
      %2605 = vmatprep.subr.bf16.mxu0 0
      %2606 = vmatpush1.bf16.msra.mxu0 %v1067
      %2607 = vmatprep.subr.bf16.mxu0 0
      %2608 = vmatpush1.bf16.msra.mxu0 %v1068
      %2609 = vmatprep.subr.bf16.mxu0 0
      %2610 = vmatpush1.bf16.msra.mxu0 %v1069
      %2611 = vmatprep.subr.bf16.mxu0 0
      %2612 = vmatpush1.bf16.msra.mxu0 %v1070
      %2613 = vmatprep.subr.bf16.mxu0 0
      %2614 = vmatpush1.bf16.msra.mxu0 %v1071
      %2615 = vmatprep.subr.bf16.mxu0 0
      %2616 = vmatpush1.bf16.msra.mxu0 %v1072
      %2617 = vmatprep.subr.bf16.mxu0 0
      %2618 = vmatpush1.bf16.msra.mxu0 %v1073
      %2619 = vmatprep.subr.bf16.mxu0 0
      %2620 = vmatpush1.bf16.msra.mxu0 %v1074
      %2621 = vmatprep.subr.bf16.mxu0 0
      %2622 = vmatpush1.bf16.msra.mxu0 %v1075
      %2623 = vmatprep.subr.bf16.mxu0 0
      %2624 = vmatpush1.bf16.msra.mxu0 %v1076
      %2625 = vmatprep.mubr.bf16.mxu0 %v2578
      %2626 = vmatmul.mubr.bf16.gmra.mrb[0].mxu0 %v2577
      %v2627 = vpop.f32.mrb[0].mxu0
      %v2628 = vadd.f32 0.0, %v2627
      %v2629 = vpop.f32.mrb[0].mxu0
      %v2630 = vpop.f32.mrb[0].mxu0
      %v2631 = vadd.f32 0.0, %v2630
      %v2632 = vpop.f32.mrb[0].mxu0
      %2633 = vmatprep.mubr.bf16.mxu0 %v2580
      %2634 = vmatmul.mubr.bf16.gmra.mrb[0].mxu0 %v2579
      %v2635 = vpop.f32.mrb[0].mxu0
      %v2636 = vadd.f32 0.0, %v2635
      %v2637 = vpop.f32.mrb[0].mxu0
      %v2638 = vpop.f32.mrb[0].mxu0
      %v2639 = vadd.f32 0.0, %v2638
      %v2640 = vpop.f32.mrb[0].mxu0
      %2641 = vmatprep.mubr.bf16.mxu0 %v2582
      %2642 = vmatmul.mubr.bf16.gmra.mrb[0].mxu0 %v2581
      %v2643 = vpop.f32.mrb[0].mxu0
      %v2644 = vadd.f32 0.0, %v2643
      %v2645 = vpop.f32.mrb[0].mxu0
      %v2646 = vpop.f32.mrb[0].mxu0
      %v2647 = vadd.f32 0.0, %v2646
      %v2648 = vpop.f32.mrb[0].mxu0
      %2649 = vmatprep.mubr.bf16.mxu0 %v2584
      %2650 = vmatmul.mubr.bf16.gmra.mrb[0].mxu0 %v2583
      %v2651 = vpop.f32.mrb[0].mxu0
      %v2652 = vadd.f32 0.0, %v2651
      %v2653 = vpop.f32.mrb[0].mxu0
      %v2654 = vpop.f32.mrb[0].mxu0
      %v2655 = vadd.f32 0.0, %v2654
      %v2656 = vpop.f32.mrb[0].mxu0
      %2657 = vdwg.mxu0
      %v2658 = vpack.c.bf16 %v2631, %v2628
      %v2659 = vpack.c.bf16 %v2639, %v2636
      %v2660 = vpack.c.bf16 %v2647, %v2644
      %v2661 = vpack.c.bf16 %v2655, %v2652
      %s2662 = scalar_lea.vmem %s5, 56
      %v2663 = vld [vmem:[%s2662] sm:$0xf]
      %v2664 = vld [vmem:[%s2662 + $0x4] sm:$0xf]
      %v2667 = vunpack.c.l.b16 %v2663
      %v2668 = vunpack.c.l.b16 %v2664
      %v2669 = vpack.c.b16 %v2668, %v2667
      %v2672 = vsel %vm1323, %v2658, 0
      %v2675 = vsel %vm1323, %v2659, 0
      %v2678 = vsel %vm1323, %v2660, 0
      %v2681 = vsel %vm1323, %v2661, 0
      %2683 = vmatprep.subr.bf16.mxu0 0
      %2684 = vmatpush1.bf16.msra.mxu0 %v2669
      %2685 = vmatprep.subr.bf16.mxu0 0
      %2686 = vmatpush1.bf16.msra.mxu0 0
      %2687 = vmatprep.subr.bf16.mxu0 0
      %2688 = vmatpush1.bf16.msra.mxu0 0
      %2689 = vmatprep.subr.bf16.mxu0 0
      %2690 = vmatpush1.bf16.msra.mxu0 0
      %2691 = vmatprep.subr.bf16.mxu0 0
      %2692 = vmatpush1.bf16.msra.mxu0 0
      %2693 = vmatprep.subr.bf16.mxu0 0
      %2694 = vmatpush1.bf16.msra.mxu0 0
      %2695 = vmatprep.subr.bf16.mxu0 0
      %2696 = vmatpush1.bf16.msra.mxu0 0
      %2697 = vmatprep.subr.bf16.mxu0 0
      %2698 = vmatpush1.bf16.msra.mxu0 0
      %2699 = vmatprep.subr.bf16.mxu0 0
      %2700 = vmatpush1.bf16.msra.mxu0 0
      %2701 = vmatprep.subr.bf16.mxu0 0
      %2702 = vmatpush1.bf16.msra.mxu0 0
      %2703 = vmatprep.subr.bf16.mxu0 0
      %2704 = vmatpush1.bf16.msra.mxu0 0
      %2705 = vmatprep.subr.bf16.mxu0 0
      %2706 = vmatpush1.bf16.msra.mxu0 0
      %2707 = vmatprep.subr.bf16.mxu0 0
      %2708 = vmatpush1.bf16.msra.mxu0 0
      %2709 = vmatprep.subr.bf16.mxu0 0
      %2710 = vmatpush1.bf16.msra.mxu0 0
      %2711 = vmatprep.subr.bf16.mxu0 0
      %2712 = vmatpush1.bf16.msra.mxu0 0
      %2713 = vmatprep.subr.bf16.mxu0 0
      %2714 = vmatpush1.bf16.msra.mxu0 0
      %2715 = vmatprep.mubr.bf16.mxu0 0
      %2716 = vmatmul.mubr.bf16.gmra.mrb[0].mxu0 %v2672
      %v2717 = vpop.f32.mrb[0].mxu0
      %v2718 = vadd.f32 0.0, %v2717
      %v2719 = vpop.f32.mrb[0].mxu0
      %v2720 = vpop.f32.mrb[0].mxu0
      %v2721 = vadd.f32 0.0, %v2720
      %v2722 = vpop.f32.mrb[0].mxu0
      %2723 = vmatprep.mubr.bf16.mxu0 0
      %2724 = vmatmul.mubr.bf16.gmra.mrb[0].mxu0 %v2675
      %v2725 = vpop.f32.mrb[0].mxu0
      %v2726 = vadd.f32 0.0, %v2725
      %v2727 = vpop.f32.mrb[0].mxu0
      %v2728 = vpop.f32.mrb[0].mxu0
      %v2729 = vadd.f32 0.0, %v2728
      %v2730 = vpop.f32.mrb[0].mxu0
      %2731 = vmatprep.mubr.bf16.mxu0 0
      %2732 = vmatmul.mubr.bf16.gmra.mrb[0].mxu0 %v2678
      %v2733 = vpop.f32.mrb[0].mxu0
      %v2734 = vadd.f32 0.0, %v2733
      %v2735 = vpop.f32.mrb[0].mxu0
      %v2736 = vpop.f32.mrb[0].mxu0
      %v2737 = vadd.f32 0.0, %v2736
      %v2738 = vpop.f32.mrb[0].mxu0
      %2739 = vmatprep.mubr.bf16.mxu0 0
      %2740 = vmatmul.mubr.bf16.gmra.mrb[0].mxu0 %v2681
      %v2741 = vpop.f32.mrb[0].mxu0
      %v2742 = vadd.f32 0.0, %v2741
      %v2743 = vpop.f32.mrb[0].mxu0
      %v2744 = vpop.f32.mrb[0].mxu0
      %v2745 = vadd.f32 0.0, %v2744
      %v2746 = vpop.f32.mrb[0].mxu0
      %2747 = vdwg.mxu0
      %v2748 = vadd.f32 %v2536, %v2718
      %v2749 = vadd.f32 %v2537, %v2721
      %v2750 = vadd.f32 %v2538, %v2726
      %v2751 = vadd.f32 %v2539, %v2729
      %v2752 = vadd.f32 %v2540, %v2734
      %v2753 = vadd.f32 %v2541, %v2737
      %v2754 = vadd.f32 %v2542, %v2742
      %v2755 = vadd.f32 %v2543, %v2745
      %s2756 = scalar_lea.vmem %s4, 512
      %v2757 = vld [vmem:[%s2756] sm:$0xff]
      %v2758 = vld [vmem:[%s2756 + $0x8] sm:$0xff]
      %v2759 = vld [vmem:[%s2756 + $0x10] sm:$0xff]
      %v2760 = vld [vmem:[%s2756 + $0x18] sm:$0xff]
      %v2761 = vld [vmem:[%s2756 + $0x20] sm:$0xff]
      %v2762 = vld [vmem:[%s2756 + $0x28] sm:$0xff]
      %v2763 = vld [vmem:[%s2756 + $0x30] sm:$0xff]
      %v2764 = vld [vmem:[%s2756 + $0x38] sm:$0xff]
      %v2773 = vunpack.c.l.b16 %v2757
      %v2774 = vunpack.c.h.b16 %v2757
      %v2775 = vunpack.c.l.b16 %v2758
      %v2776 = vunpack.c.h.b16 %v2758
      %v2777 = vunpack.c.l.b16 %v2759
      %v2778 = vunpack.c.h.b16 %v2759
      %v2779 = vunpack.c.l.b16 %v2760
      %v2780 = vunpack.c.h.b16 %v2760
      %v2781 = vunpack.c.l.b16 %v2761
      %v2782 = vunpack.c.h.b16 %v2761
      %v2783 = vunpack.c.l.b16 %v2762
      %v2784 = vunpack.c.h.b16 %v2762
      %v2785 = vunpack.c.l.b16 %v2763
      %v2786 = vunpack.c.h.b16 %v2763
      %v2787 = vunpack.c.l.b16 %v2764
      %v2788 = vunpack.c.h.b16 %v2764
      %v2789 = vpack.c.b16 %v2775, %v2773
      %v2790 = vpack.c.b16 %v2776, %v2774
      %v2791 = vpack.c.b16 %v2779, %v2777
      %v2792 = vpack.c.b16 %v2780, %v2778
      %v2793 = vpack.c.b16 %v2783, %v2781
      %v2794 = vpack.c.b16 %v2784, %v2782
      %v2795 = vpack.c.b16 %v2787, %v2785
      %v2796 = vpack.c.b16 %v2788, %v2786
      %2805 = vmatprep.subr.bf16.mxu0 0
      %2806 = vmatpush1.bf16.msra.mxu0 %v1061
      %2807 = vmatprep.subr.bf16.mxu0 0
      %2808 = vmatpush1.bf16.msra.mxu0 %v1062
      %2809 = vmatprep.subr.bf16.mxu0 0
      %2810 = vmatpush1.bf16.msra.mxu0 %v1063
      %2811 = vmatprep.subr.bf16.mxu0 0
      %2812 = vmatpush1.bf16.msra.mxu0 %v1064
      %2813 = vmatprep.subr.bf16.mxu0 0
      %2814 = vmatpush1.bf16.msra.mxu0 %v1065
      %2815 = vmatprep.subr.bf16.mxu0 0
      %2816 = vmatpush1.bf16.msra.mxu0 %v1066
      %2817 = vmatprep.subr.bf16.mxu0 0
      %2818 = vmatpush1.bf16.msra.mxu0 %v1067
      %2819 = vmatprep.subr.bf16.mxu0 0
      %2820 = vmatpush1.bf16.msra.mxu0 %v1068
      %2821 = vmatprep.subr.bf16.mxu0 0
      %2822 = vmatpush1.bf16.msra.mxu0 %v1069
      %2823 = vmatprep.subr.bf16.mxu0 0
      %2824 = vmatpush1.bf16.msra.mxu0 %v1070
      %2825 = vmatprep.subr.bf16.mxu0 0
      %2826 = vmatpush1.bf16.msra.mxu0 %v1071
      %2827 = vmatprep.subr.bf16.mxu0 0
      %2828 = vmatpush1.bf16.msra.mxu0 %v1072
      %2829 = vmatprep.subr.bf16.mxu0 0
      %2830 = vmatpush1.bf16.msra.mxu0 %v1073
      %2831 = vmatprep.subr.bf16.mxu0 0
      %2832 = vmatpush1.bf16.msra.mxu0 %v1074
      %2833 = vmatprep.subr.bf16.mxu0 0
      %2834 = vmatpush1.bf16.msra.mxu0 %v1075
      %2835 = vmatprep.subr.bf16.mxu0 0
      %2836 = vmatpush1.bf16.msra.mxu0 %v1076
      %2837 = vmatprep.mubr.bf16.mxu0 %v2790
      %2838 = vmatmul.mubr.bf16.gmra.mrb[0].mxu0 %v2789
      %v2839 = vpop.f32.mrb[0].mxu0
      %v2840 = vadd.f32 0.0, %v2839
      %v2841 = vpop.f32.mrb[0].mxu0
      %v2842 = vpop.f32.mrb[0].mxu0
      %v2843 = vadd.f32 0.0, %v2842
      %v2844 = vpop.f32.mrb[0].mxu0
      %2845 = vmatprep.mubr.bf16.mxu0 %v2792
      %2846 = vmatmul.mubr.bf16.gmra.mrb[0].mxu0 %v2791
      %v2847 = vpop.f32.mrb[0].mxu0
      %v2848 = vadd.f32 0.0, %v2847
      %v2849 = vpop.f32.mrb[0].mxu0
      %v2850 = vpop.f32.mrb[0].mxu0
      %v2851 = vadd.f32 0.0, %v2850
      %v2852 = vpop.f32.mrb[0].mxu0
      %2853 = vmatprep.mubr.bf16.mxu0 %v2794
      %2854 = vmatmul.mubr.bf16.gmra.mrb[0].mxu0 %v2793
      %v2855 = vpop.f32.mrb[0].mxu0
      %v2856 = vadd.f32 0.0, %v2855
      %v2857 = vpop.f32.mrb[0].mxu0
      %v2858 = vpop.f32.mrb[0].mxu0
      %v2859 = vadd.f32 0.0, %v2858
      %v2860 = vpop.f32.mrb[0].mxu0
      %2861 = vmatprep.mubr.bf16.mxu0 %v2796
      %2862 = vmatmul.mubr.bf16.gmra.mrb[0].mxu0 %v2795
      %v2863 = vpop.f32.mrb[0].mxu0
      %v2864 = vadd.f32 0.0, %v2863
      %v2865 = vpop.f32.mrb[0].mxu0
      %v2866 = vpop.f32.mrb[0].mxu0
      %v2867 = vadd.f32 0.0, %v2866
      %v2868 = vpop.f32.mrb[0].mxu0
      %2869 = vdwg.mxu0
      %v2870 = vpack.c.bf16 %v2843, %v2840
      %v2871 = vpack.c.bf16 %v2851, %v2848
      %v2872 = vpack.c.bf16 %v2859, %v2856
      %v2873 = vpack.c.bf16 %v2867, %v2864
      %s2874 = scalar_lea.vmem %s5, 64
      %v2875 = vld [vmem:[%s2874] sm:$0xf]
      %v2876 = vld [vmem:[%s2874 + $0x4] sm:$0xf]
      %v2879 = vunpack.c.l.b16 %v2875
      %v2880 = vunpack.c.l.b16 %v2876
      %v2881 = vpack.c.b16 %v2880, %v2879
      %v2884 = vsel %vm1323, %v2870, 0
      %v2887 = vsel %vm1323, %v2871, 0
      %v2890 = vsel %vm1323, %v2872, 0
      %v2893 = vsel %vm1323, %v2873, 0
      %2895 = vmatprep.subr.bf16.mxu0 0
      %2896 = vmatpush1.bf16.msra.mxu0 %v2881
      %2897 = vmatprep.subr.bf16.mxu0 0
      %2898 = vmatpush1.bf16.msra.mxu0 0
      %2899 = vmatprep.subr.bf16.mxu0 0
      %2900 = vmatpush1.bf16.msra.mxu0 0
      %2901 = vmatprep.subr.bf16.mxu0 0
      %2902 = vmatpush1.bf16.msra.mxu0 0
      %2903 = vmatprep.subr.bf16.mxu0 0
      %2904 = vmatpush1.bf16.msra.mxu0 0
      %2905 = vmatprep.subr.bf16.mxu0 0
      %2906 = vmatpush1.bf16.msra.mxu0 0
      %2907 = vmatprep.subr.bf16.mxu0 0
      %2908 = vmatpush1.bf16.msra.mxu0 0
      %2909 = vmatprep.subr.bf16.mxu0 0
      %2910 = vmatpush1.bf16.msra.mxu0 0
      %2911 = vmatprep.subr.bf16.mxu0 0
      %2912 = vmatpush1.bf16.msra.mxu0 0
      %2913 = vmatprep.subr.bf16.mxu0 0
      %2914 = vmatpush1.bf16.msra.mxu0 0
      %2915 = vmatprep.subr.bf16.mxu0 0
      %2916 = vmatpush1.bf16.msra.mxu0 0
      %2917 = vmatprep.subr.bf16.mxu0 0
      %2918 = vmatpush1.bf16.msra.mxu0 0
      %2919 = vmatprep.subr.bf16.mxu0 0
      %2920 = vmatpush1.bf16.msra.mxu0 0
      %2921 = vmatprep.subr.bf16.mxu0 0
      %2922 = vmatpush1.bf16.msra.mxu0 0
      %2923 = vmatprep.subr.bf16.mxu0 0
      %2924 = vmatpush1.bf16.msra.mxu0 0
      %2925 = vmatprep.subr.bf16.mxu0 0
      %2926 = vmatpush1.bf16.msra.mxu0 0
      %2927 = vmatprep.mubr.bf16.mxu0 0
      %2928 = vmatmul.mubr.bf16.gmra.mrb[0].mxu0 %v2884
      %v2929 = vpop.f32.mrb[0].mxu0
      %v2930 = vadd.f32 0.0, %v2929
      %v2931 = vpop.f32.mrb[0].mxu0
      %v2932 = vpop.f32.mrb[0].mxu0
      %v2933 = vadd.f32 0.0, %v2932
      %v2934 = vpop.f32.mrb[0].mxu0
      %2935 = vmatprep.mubr.bf16.mxu0 0
      %2936 = vmatmul.mubr.bf16.gmra.mrb[0].mxu0 %v2887
      %v2937 = vpop.f32.mrb[0].mxu0
      %v2938 = vadd.f32 0.0, %v2937
      %v2939 = vpop.f32.mrb[0].mxu0
      %v2940 = vpop.f32.mrb[0].mxu0
      %v2941 = vadd.f32 0.0, %v2940
      %v2942 = vpop.f32.mrb[0].mxu0
      %2943 = vmatprep.mubr.bf16.mxu0 0
      %2944 = vmatmul.mubr.bf16.gmra.mrb[0].mxu0 %v2890
      %v2945 = vpop.f32.mrb[0].mxu0
      %v2946 = vadd.f32 0.0, %v2945
      %v2947 = vpop.f32.mrb[0].mxu0
      %v2948 = vpop.f32.mrb[0].mxu0
      %v2949 = vadd.f32 0.0, %v2948
      %v2950 = vpop.f32.mrb[0].mxu0
      %2951 = vmatprep.mubr.bf16.mxu0 0
      %2952 = vmatmul.mubr.bf16.gmra.mrb[0].mxu0 %v2893
      %v2953 = vpop.f32.mrb[0].mxu0
      %v2954 = vadd.f32 0.0, %v2953
      %v2955 = vpop.f32.mrb[0].mxu0
      %v2956 = vpop.f32.mrb[0].mxu0
      %v2957 = vadd.f32 0.0, %v2956
      %v2958 = vpop.f32.mrb[0].mxu0
      %2959 = vdwg.mxu0
      %v2960 = vadd.f32 %v2748, %v2930
      %v2961 = vadd.f32 %v2749, %v2933
      %v2962 = vadd.f32 %v2750, %v2938
      %v2963 = vadd.f32 %v2751, %v2941
      %v2964 = vadd.f32 %v2752, %v2946
      %v2965 = vadd.f32 %v2753, %v2949
      %v2966 = vadd.f32 %v2754, %v2954
      %v2967 = vadd.f32 %v2755, %v2957
      %v2968 = vld [vmem:[%s6] sm:$0x1]
      %v2969 = vld [vmem:[%s7] sm:$0x1]
      %v2971 = vlaneseq
      %v2972 = vshrl.u32 %v2971, 7
      %v2973 = vsub.s32 0, %v2972
      %v2974 = vrot.slane %v2968, %v2973
      %v2976 = vadd.f32 %v2960, %v2974
      %v2977 = vadd.f32 %v2961, %v2974
      %v2978 = vadd.f32 %v2962, %v2974
      %v2979 = vadd.f32 %v2963, %v2974
      %v2980 = vadd.f32 %v2964, %v2974
      %v2981 = vadd.f32 %v2965, %v2974
      %v2982 = vadd.f32 %v2966, %v2974
      %v2983 = vadd.f32 %v2967, %v2974
      %vm2984 = vcmp.gt.f32.partialorder %v2976, 0.0
      %vm2985 = vcmp.gt.f32.partialorder %v2977, 0.0
      %vm2986 = vcmp.gt.f32.partialorder %v2978, 0.0
      %vm2987 = vcmp.gt.f32.partialorder %v2979, 0.0
      %vm2988 = vcmp.gt.f32.partialorder %v2980, 0.0
      %vm2989 = vcmp.gt.f32.partialorder %v2981, 0.0
      %vm2990 = vcmp.gt.f32.partialorder %v2982, 0.0
      %vm2991 = vcmp.gt.f32.partialorder %v2983, 0.0
      %v2992 = vmul.f32 %v2976, 0.2
      %v2993 = vmul.f32 %v2977, 0.2
      %v2994 = vmul.f32 %v2978, 0.2
      %v2995 = vmul.f32 %v2979, 0.2
      %v2996 = vmul.f32 %v2980, 0.2
      %v2997 = vmul.f32 %v2981, 0.2
      %v2998 = vmul.f32 %v2982, 0.2
      %v2999 = vmul.f32 %v2983, 0.2
      %v3000 = vsel %vm2984, %v2976, %v2992
      %v3001 = vsel %vm2985, %v2977, %v2993
      %v3002 = vsel %vm2986, %v2978, %v2994
      %v3003 = vsel %vm2987, %v2979, %v2995
      %v3004 = vsel %vm2988, %v2980, %v2996
      %v3005 = vsel %vm2989, %v2981, %v2997
      %v3006 = vsel %vm2990, %v2982, %v2998
      %v3007 = vsel %vm2991, %v2983, %v2999
      %v3009 = vlaneseq
      %v3010 = vshrl.u32 %v3009, 7
      %v3011 = vsub.s32 0, %v3010
      %v3012 = vrot.slane %v2969, %v3011
      %v3014 = vadd.f32 %v3000, %v3012
      %v3015 = vadd.f32 %v3001, %v3012
      %v3016 = vadd.f32 %v3002, %v3012
      %v3017 = vadd.f32 %v3003, %v3012
      %v3018 = vadd.f32 %v3004, %v3012
      %v3019 = vadd.f32 %v3005, %v3012
      %v3020 = vadd.f32 %v3006, %v3012
      %v3021 = vadd.f32 %v3007, %v3012
      %v3022 = vpack.c.bf16 %v3015, %v3014
      %v3023 = vpack.c.bf16 %v3017, %v3016
      %v3024 = vpack.c.bf16 %v3019, %v3018
      %v3025 = vpack.c.bf16 %v3021, %v3020
      %v3026 = vld [vmem:[%s8] sm:$0xf]
      %v3027 = vld [vmem:[%s8 + $0x4] sm:$0xf]
      %v3030 = vunpack.c.l.b16 %v3026
      %v3031 = vunpack.c.l.b16 %v3027
      %v3032 = vpack.c.b16 %v3031, %v3030
      %vm3033 = vcmask 523264
      %v3035 = vsel %vm3033, %v3032, 0
      %3037 = vmatprep.subr.bf16.mxu0 0
      %3038 = vmatpush1.bf16.msra.mxu0 %v3022
      %3039 = vmatprep.subr.bf16.mxu0 0
      %3040 = vmatpush1.bf16.msra.mxu0 %v3023
      %3041 = vmatprep.subr.bf16.mxu0 0
      %3042 = vmatpush1.bf16.msra.mxu0 %v3024
      %3043 = vmatprep.subr.bf16.mxu0 0
      %3044 = vmatpush1.bf16.msra.mxu0 %v3025
      %3045 = vmatprep.subr.bf16.mxu0 0
      %3046 = vmatpush1.bf16.msra.mxu0 0
      %3047 = vmatprep.subr.bf16.mxu0 0
      %3048 = vmatpush1.bf16.msra.mxu0 0
      %3049 = vmatprep.subr.bf16.mxu0 0
      %3050 = vmatpush1.bf16.msra.mxu0 0
      %3051 = vmatprep.subr.bf16.mxu0 0
      %3052 = vmatpush1.bf16.msra.mxu0 0
      %3053 = vmatprep.subr.bf16.mxu0 0
      %3054 = vmatpush1.bf16.msra.mxu0 0
      %3055 = vmatprep.subr.bf16.mxu0 0
      %3056 = vmatpush1.bf16.msra.mxu0 0
      %3057 = vmatprep.subr.bf16.mxu0 0
      %3058 = vmatpush1.bf16.msra.mxu0 0
      %3059 = vmatprep.subr.bf16.mxu0 0
      %3060 = vmatpush1.bf16.msra.mxu0 0
      %3061 = vmatprep.subr.bf16.mxu0 0
      %3062 = vmatpush1.bf16.msra.mxu0 0
      %3063 = vmatprep.subr.bf16.mxu0 0
      %3064 = vmatpush1.bf16.msra.mxu0 0
      %3065 = vmatprep.subr.bf16.mxu0 0
      %3066 = vmatpush1.bf16.msra.mxu0 0
      %3067 = vmatprep.subr.bf16.mxu0 0
      %3068 = vmatpush1.bf16.msra.mxu0 0
      %3069 = vmatprep.mubr.bf16.mxu0 0
      %3070 = vmatmul.mubr.bf16.gmra.mrb[0].mxu0 %v3035
      %v3071 = vpop.f32.mrb[0].mxu0
      %v3072 = vadd.f32 0.0, %v3071
      %v3073 = vpop.f32.mrb[0].mxu0
      %v3074 = vpop.f32.mrb[0].mxu0
      %v3075 = vadd.f32 0.0, %v3074
      %v3076 = vpop.f32.mrb[0].mxu0
      %3077 = vdwg.mxu0
      %v3078 = vpack.c.bf16 %v3075, %v3072
      %v3079 = vld [vmem:[%s9] sm:$0xf]
      %v3080 = vld [vmem:[%s9 + $0x4] sm:$0xf]
      %v3081 = vld [vmem:[%s9 + $0x8] sm:$0xf]
      %v3082 = vld [vmem:[%s9 + $0xc] sm:$0xf]
      %s3083 = scalar_lea.vmem %s8, 8
      %v3084 = vld [vmem:[%s3083] sm:$0xf]
      %v3085 = vld [vmem:[%s3083 + $0x4] sm:$0xf]
      %v3088 = vunpack.c.l.b16 %v3084
      %v3089 = vunpack.c.l.b16 %v3085
      %v3090 = vpack.c.b16 %v3089, %v3088
      %v3092 = vsel %vm3033, %v3090, 0
      %3094 = vmatprep.subr.bf16.mxu0 0
      %3095 = vmatpush1.bf16.msra.mxu0 %v3022
      %3096 = vmatprep.subr.bf16.mxu0 0
      %3097 = vmatpush1.bf16.msra.mxu0 %v3023
      %3098 = vmatprep.subr.bf16.mxu0 0
      %3099 = vmatpush1.bf16.msra.mxu0 %v3024
      %3100 = vmatprep.subr.bf16.mxu0 0
      %3101 = vmatpush1.bf16.msra.mxu0 %v3025
      %3102 = vmatprep.subr.bf16.mxu0 0
      %3103 = vmatpush1.bf16.msra.mxu0 0
      %3104 = vmatprep.subr.bf16.mxu0 0
      %3105 = vmatpush1.bf16.msra.mxu0 0
      %3106 = vmatprep.subr.bf16.mxu0 0
      %3107 = vmatpush1.bf16.msra.mxu0 0
      %3108 = vmatprep.subr.bf16.mxu0 0
      %3109 = vmatpush1.bf16.msra.mxu0 0
      %3110 = vmatprep.subr.bf16.mxu0 0
      %3111 = vmatpush1.bf16.msra.mxu0 0
      %3112 = vmatprep.subr.bf16.mxu0 0
      %3113 = vmatpush1.bf16.msra.mxu0 0
      %3114 = vmatprep.subr.bf16.mxu0 0
      %3115 = vmatpush1.bf16.msra.mxu0 0
      %3116 = vmatprep.subr.bf16.mxu0 0
      %3117 = vmatpush1.bf16.msra.mxu0 0
      %3118 = vmatprep.subr.bf16.mxu0 0
      %3119 = vmatpush1.bf16.msra.mxu0 0
      %3120 = vmatprep.subr.bf16.mxu0 0
      %3121 = vmatpush1.bf16.msra.mxu0 0
      %3122 = vmatprep.subr.bf16.mxu0 0
      %3123 = vmatpush1.bf16.msra.mxu0 0
      %3124 = vmatprep.subr.bf16.mxu0 0
      %3125 = vmatpush1.bf16.msra.mxu0 0
      %3126 = vmatprep.mubr.bf16.mxu0 0
      %3127 = vmatmul.mubr.bf16.gmra.mrb[0].mxu0 %v3092
      %v3128 = vpop.f32.mrb[0].mxu0
      %v3129 = vadd.f32 0.0, %v3128
      %v3130 = vpop.f32.mrb[0].mxu0
      %v3131 = vpop.f32.mrb[0].mxu0
      %v3132 = vadd.f32 0.0, %v3131
      %v3133 = vpop.f32.mrb[0].mxu0
      %3134 = vdwg.mxu0
      %v3135 = vpack.c.bf16 %v3132, %v3129
      %s3136 = scalar_lea.vmem %s9, 16
      %v3137 = vld [vmem:[%s3136] sm:$0xf]
      %v3138 = vld [vmem:[%s3136 + $0x4] sm:$0xf]
      %v3139 = vld [vmem:[%s3136 + $0x8] sm:$0xf]
      %v3140 = vld [vmem:[%s3136 + $0xc] sm:$0xf]
      %v3145 = vunpack.c.l.b16 %v3137
      %v3146 = vunpack.c.l.b16 %v3138
      %v3147 = vunpack.c.l.b16 %v3139
      %v3148 = vunpack.c.l.b16 %v3140
      %v3149 = vpack.c.b16 %v3146, %v3145
      %v3150 = vpack.c.b16 %v3148, %v3147
      %vm3153 = vcmask 261120
      %v3155 = vsel %vm3153, %v3135, 0
      %3157 = vmatprep.subr.bf16.mxu0 0
      %3158 = vmatpush1.bf16.msra.mxu0 %v3149
      %3159 = vmatprep.subr.bf16.mxu0 0
      %3160 = vmatpush1.bf16.msra.mxu0 %v3150
      %3161 = vmatprep.subr.bf16.mxu0 0
      %3162 = vmatpush1.bf16.msra.mxu0 0
      %3163 = vmatprep.subr.bf16.mxu0 0
      %3164 = vmatpush1.bf16.msra.mxu0 0
      %3165 = vmatprep.subr.bf16.mxu0 0
      %3166 = vmatpush1.bf16.msra.mxu0 0
      %3167 = vmatprep.subr.bf16.mxu0 0
      %3168 = vmatpush1.bf16.msra.mxu0 0
      %3169 = vmatprep.subr.bf16.mxu0 0
      %3170 = vmatpush1.bf16.msra.mxu0 0
      %3171 = vmatprep.subr.bf16.mxu0 0
      %3172 = vmatpush1.bf16.msra.mxu0 0
      %3173 = vmatprep.subr.bf16.mxu0 0
      %3174 = vmatpush1.bf16.msra.mxu0 0
      %3175 = vmatprep.subr.bf16.mxu0 0
      %3176 = vmatpush1.bf16.msra.mxu0 0
      %3177 = vmatprep.subr.bf16.mxu0 0
      %3178 = vmatpush1.bf16.msra.mxu0 0
      %3179 = vmatprep.subr.bf16.mxu0 0
      %3180 = vmatpush1.bf16.msra.mxu0 0
      %3181 = vmatprep.subr.bf16.mxu0 0
      %3182 = vmatpush1.bf16.msra.mxu0 0
      %3183 = vmatprep.subr.bf16.mxu0 0
      %3184 = vmatpush1.bf16.msra.mxu0 0
      %3185 = vmatprep.subr.bf16.mxu0 0
      %3186 = vmatpush1.bf16.msra.mxu0 0
      %3187 = vmatprep.subr.bf16.mxu0 0
      %3188 = vmatpush1.bf16.msra.mxu0 0
      %3189 = vmatprep.mubr.bf16.mxu0 0
      %3190 = vmatmul.mubr.bf16.gmra.mrb[0].mxu0 %v3155
      %v3191 = vpop.f32.mrb[0].mxu0
      %v3192 = vadd.f32 0.0, %v3191
      %v3193 = vpop.f32.mrb[0].mxu0
      %v3194 = vpop.f32.mrb[0].mxu0
      %v3195 = vadd.f32 0.0, %v3194
      %v3196 = vpop.f32.mrb[0].mxu0
      %3197 = vdwg.mxu0
      %v3202 = vunpack.c.l.b16 %v3079
      %v3203 = vunpack.c.l.b16 %v3080
      %v3204 = vunpack.c.l.b16 %v3081
      %v3205 = vunpack.c.l.b16 %v3082
      %v3206 = vpack.c.b16 %v3203, %v3202
      %v3207 = vpack.c.b16 %v3205, %v3204
      %v3211 = vsel %vm3153, %v3078, 0
      %3213 = vmatprep.subr.bf16.mxu0 0
      %3214 = vmatpush1.bf16.msra.mxu0 %v3206
      %3215 = vmatprep.subr.bf16.mxu0 0
      %3216 = vmatpush1.bf16.msra.mxu0 %v3207
      %3217 = vmatprep.subr.bf16.mxu0 0
      %3218 = vmatpush1.bf16.msra.mxu0 0
      %3219 = vmatprep.subr.bf16.mxu0 0
      %3220 = vmatpush1.bf16.msra.mxu0 0
      %3221 = vmatprep.subr.bf16.mxu0 0
      %3222 = vmatpush1.bf16.msra.mxu0 0
      %3223 = vmatprep.subr.bf16.mxu0 0
      %3224 = vmatpush1.bf16.msra.mxu0 0
      %3225 = vmatprep.subr.bf16.mxu0 0
      %3226 = vmatpush1.bf16.msra.mxu0 0
      %3227 = vmatprep.subr.bf16.mxu0 0
      %3228 = vmatpush1.bf16.msra.mxu0 0
      %3229 = vmatprep.subr.bf16.mxu0 0
      %3230 = vmatpush1.bf16.msra.mxu0 0
      %3231 = vmatprep.subr.bf16.mxu0 0
      %3232 = vmatpush1.bf16.msra.mxu0 0
      %3233 = vmatprep.subr.bf16.mxu0 0
      %3234 = vmatpush1.bf16.msra.mxu0 0
      %3235 = vmatprep.subr.bf16.mxu0 0
      %3236 = vmatpush1.bf16.msra.mxu0 0
      %3237 = vmatprep.subr.bf16.mxu0 0
      %3238 = vmatpush1.bf16.msra.mxu0 0
      %3239 = vmatprep.subr.bf16.mxu0 0
      %3240 = vmatpush1.bf16.msra.mxu0 0
      %3241 = vmatprep.subr.bf16.mxu0 0
      %3242 = vmatpush1.bf16.msra.mxu0 0
      %3243 = vmatprep.subr.bf16.mxu0 0
      %3244 = vmatpush1.bf16.msra.mxu0 0
      %3245 = vmatprep.mubr.bf16.mxu0 0
      %3246 = vmatmul.mubr.bf16.gmra.mrb[0].mxu0 %v3211
      %v3247 = vpop.f32.mrb[0].mxu0
      %v3248 = vadd.f32 %v3192, %v3247
      %v3249 = vpop.f32.mrb[0].mxu0
      %v3250 = vpop.f32.mrb[0].mxu0
      %v3251 = vadd.f32 %v3195, %v3250
      %v3252 = vpop.f32.mrb[0].mxu0
      %3253 = vdwg.mxu0
      %s3254 = scalar_lea.vmem %s8, 16
      %v3255 = vld [vmem:[%s3254] sm:$0xf]
      %v3256 = vld [vmem:[%s3254 + $0x4] sm:$0xf]
      %v3259 = vunpack.c.l.b16 %v3255
      %v3260 = vunpack.c.l.b16 %v3256
      %v3261 = vpack.c.b16 %v3260, %v3259
      %v3263 = vsel %vm3033, %v3261, 0
      %3265 = vmatprep.subr.bf16.mxu0 0
      %3266 = vmatpush1.bf16.msra.mxu0 %v3022
      %3267 = vmatprep.subr.bf16.mxu0 0
      %3268 = vmatpush1.bf16.msra.mxu0 %v3023
      %3269 = vmatprep.subr.bf16.mxu0 0
      %3270 = vmatpush1.bf16.msra.mxu0 %v3024
      %3271 = vmatprep.subr.bf16.mxu0 0
      %3272 = vmatpush1.bf16.msra.mxu0 %v3025
      %3273 = vmatprep.subr.bf16.mxu0 0
      %3274 = vmatpush1.bf16.msra.mxu0 0
      %3275 = vmatprep.subr.bf16.mxu0 0
      %3276 = vmatpush1.bf16.msra.mxu0 0
      %3277 = vmatprep.subr.bf16.mxu0 0
      %3278 = vmatpush1.bf16.msra.mxu0 0
      %3279 = vmatprep.subr.bf16.mxu0 0
      %3280 = vmatpush1.bf16.msra.mxu0 0
      %3281 = vmatprep.subr.bf16.mxu0 0
      %3282 = vmatpush1.bf16.msra.mxu0 0
      %3283 = vmatprep.subr.bf16.mxu0 0
      %3284 = vmatpush1.bf16.msra.mxu0 0
      %3285 = vmatprep.subr.bf16.mxu0 0
      %3286 = vmatpush1.bf16.msra.mxu0 0
      %3287 = vmatprep.subr.bf16.mxu0 0
      %3288 = vmatpush1.bf16.msra.mxu0 0
      %3289 = vmatprep.subr.bf16.mxu0 0
      %3290 = vmatpush1.bf16.msra.mxu0 0
      %3291 = vmatprep.subr.bf16.mxu0 0
      %3292 = vmatpush1.bf16.msra.mxu0 0
      %3293 = vmatprep.subr.bf16.mxu0 0
      %3294 = vmatpush1.bf16.msra.mxu0 0
      %3295 = vmatprep.subr.bf16.mxu0 0
      %3296 = vmatpush1.bf16.msra.mxu0 0
      %3297 = vmatprep.mubr.bf16.mxu0 0
      %3298 = vmatmul.mubr.bf16.gmra.mrb[0].mxu0 %v3263
      %v3299 = vpop.f32.mrb[0].mxu0
      %v3300 = vadd.f32 0.0, %v3299
      %v3301 = vpop.f32.mrb[0].mxu0
      %v3302 = vpop.f32.mrb[0].mxu0
      %v3303 = vadd.f32 0.0, %v3302
      %v3304 = vpop.f32.mrb[0].mxu0
      %3305 = vdwg.mxu0
      %v3306 = vpack.c.bf16 %v3303, %v3300
      %s3307 = scalar_lea.vmem %s9, 32
      %v3308 = vld [vmem:[%s3307] sm:$0xf]
      %v3309 = vld [vmem:[%s3307 + $0x4] sm:$0xf]
      %v3310 = vld [vmem:[%s3307 + $0x8] sm:$0xf]
      %v3311 = vld [vmem:[%s3307 + $0xc] sm:$0xf]
      %v3316 = vunpack.c.l.b16 %v3308
      %v3317 = vunpack.c.l.b16 %v3309
      %v3318 = vunpack.c.l.b16 %v3310
      %v3319 = vunpack.c.l.b16 %v3311
      %v3320 = vpack.c.b16 %v3317, %v3316
      %v3321 = vpack.c.b16 %v3319, %v3318
      %v3325 = vsel %vm3153, %v3306, 0
      %3327 = vmatprep.subr.bf16.mxu0 0
      %3328 = vmatpush1.bf16.msra.mxu0 %v3320
      %3329 = vmatprep.subr.bf16.mxu0 0
      %3330 = vmatpush1.bf16.msra.mxu0 %v3321
      %3331 = vmatprep.subr.bf16.mxu0 0
      %3332 = vmatpush1.bf16.msra.mxu0 0
      %3333 = vmatprep.subr.bf16.mxu0 0
      %3334 = vmatpush1.bf16.msra.mxu0 0
      %3335 = vmatprep.subr.bf16.mxu0 0
      %3336 = vmatpush1.bf16.msra.mxu0 0
      %3337 = vmatprep.subr.bf16.mxu0 0
      %3338 = vmatpush1.bf16.msra.mxu0 0
      %3339 = vmatprep.subr.bf16.mxu0 0
      %3340 = vmatpush1.bf16.msra.mxu0 0
      %3341 = vmatprep.subr.bf16.mxu0 0
      %3342 = vmatpush1.bf16.msra.mxu0 0
      %3343 = vmatprep.subr.bf16.mxu0 0
      %3344 = vmatpush1.bf16.msra.mxu0 0
      %3345 = vmatprep.subr.bf16.mxu0 0
      %3346 = vmatpush1.bf16.msra.mxu0 0
      %3347 = vmatprep.subr.bf16.mxu0 0
      %3348 = vmatpush1.bf16.msra.mxu0 0
      %3349 = vmatprep.subr.bf16.mxu0 0
      %3350 = vmatpush1.bf16.msra.mxu0 0
      %3351 = vmatprep.subr.bf16.mxu0 0
      %3352 = vmatpush1.bf16.msra.mxu0 0
      %3353 = vmatprep.subr.bf16.mxu0 0
      %3354 = vmatpush1.bf16.msra.mxu0 0
      %3355 = vmatprep.subr.bf16.mxu0 0
      %3356 = vmatpush1.bf16.msra.mxu0 0
      %3357 = vmatprep.subr.bf16.mxu0 0
      %3358 = vmatpush1.bf16.msra.mxu0 0
      %3359 = vmatprep.mubr.bf16.mxu0 0
      %3360 = vmatmul.mubr.bf16.gmra.mrb[0].mxu0 %v3325
      %v3361 = vpop.f32.mrb[0].mxu0
      %v3362 = vadd.f32 0.0, %v3361
      %v3363 = vpop.f32.mrb[0].mxu0
      %v3364 = vpop.f32.mrb[0].mxu0
      %v3365 = vadd.f32 0.0, %v3364
      %v3366 = vpop.f32.mrb[0].mxu0
      %3367 = vdwg.mxu0
      %v3368 = vadd.f32 %v3248, %v3362
      %v3369 = vadd.f32 %v3251, %v3365
      %s3370 = scalar_lea.vmem %s8, 24
      %v3371 = vld [vmem:[%s3370] sm:$0xf]
      %v3372 = vld [vmem:[%s3370 + $0x4] sm:$0xf]
      %v3375 = vunpack.c.l.b16 %v3371
      %v3376 = vunpack.c.l.b16 %v3372
      %v3377 = vpack.c.b16 %v3376, %v3375
      %v3379 = vsel %vm3033, %v3377, 0
      %3381 = vmatprep.subr.bf16.mxu0 0
      %3382 = vmatpush1.bf16.msra.mxu0 %v3022
      %3383 = vmatprep.subr.bf16.mxu0 0
      %3384 = vmatpush1.bf16.msra.mxu0 %v3023
      %3385 = vmatprep.subr.bf16.mxu0 0
      %3386 = vmatpush1.bf16.msra.mxu0 %v3024
      %3387 = vmatprep.subr.bf16.mxu0 0
      %3388 = vmatpush1.bf16.msra.mxu0 %v3025
      %3389 = vmatprep.subr.bf16.mxu0 0
      %3390 = vmatpush1.bf16.msra.mxu0 0
      %3391 = vmatprep.subr.bf16.mxu0 0
      %3392 = vmatpush1.bf16.msra.mxu0 0
      %3393 = vmatprep.subr.bf16.mxu0 0
      %3394 = vmatpush1.bf16.msra.mxu0 0
      %3395 = vmatprep.subr.bf16.mxu0 0
      %3396 = vmatpush1.bf16.msra.mxu0 0
      %3397 = vmatprep.subr.bf16.mxu0 0
      %3398 = vmatpush1.bf16.msra.mxu0 0
      %3399 = vmatprep.subr.bf16.mxu0 0
      %3400 = vmatpush1.bf16.msra.mxu0 0
      %3401 = vmatprep.subr.bf16.mxu0 0
      %3402 = vmatpush1.bf16.msra.mxu0 0
      %3403 = vmatprep.subr.bf16.mxu0 0
      %3404 = vmatpush1.bf16.msra.mxu0 0
      %3405 = vmatprep.subr.bf16.mxu0 0
      %3406 = vmatpush1.bf16.msra.mxu0 0
      %3407 = vmatprep.subr.bf16.mxu0 0
      %3408 = vmatpush1.bf16.msra.mxu0 0
      %3409 = vmatprep.subr.bf16.mxu0 0
      %3410 = vmatpush1.bf16.msra.mxu0 0
      %3411 = vmatprep.subr.bf16.mxu0 0
      %3412 = vmatpush1.bf16.msra.mxu0 0
      %3413 = vmatprep.mubr.bf16.mxu0 0
      %3414 = vmatmul.mubr.bf16.gmra.mrb[0].mxu0 %v3379
      %v3415 = vpop.f32.mrb[0].mxu0
      %v3416 = vadd.f32 0.0, %v3415
      %v3417 = vpop.f32.mrb[0].mxu0
      %v3418 = vpop.f32.mrb[0].mxu0
      %v3419 = vadd.f32 0.0, %v3418
      %v3420 = vpop.f32.mrb[0].mxu0
      %3421 = vdwg.mxu0
      %v3422 = vpack.c.bf16 %v3419, %v3416
      %s3423 = scalar_lea.vmem %s9, 48
      %v3424 = vld [vmem:[%s3423] sm:$0xf]
      %v3425 = vld [vmem:[%s3423 + $0x4] sm:$0xf]
      %v3426 = vld [vmem:[%s3423 + $0x8] sm:$0xf]
      %v3427 = vld [vmem:[%s3423 + $0xc] sm:$0xf]
      %v3432 = vunpack.c.l.b16 %v3424
      %v3433 = vunpack.c.l.b16 %v3425
      %v3434 = vunpack.c.l.b16 %v3426
      %v3435 = vunpack.c.l.b16 %v3427
      %v3436 = vpack.c.b16 %v3433, %v3432
      %v3437 = vpack.c.b16 %v3435, %v3434
      %v3441 = vsel %vm3153, %v3422, 0
      %3443 = vmatprep.subr.bf16.mxu0 0
      %3444 = vmatpush1.bf16.msra.mxu0 %v3436
      %3445 = vmatprep.subr.bf16.mxu0 0
      %3446 = vmatpush1.bf16.msra.mxu0 %v3437
      %3447 = vmatprep.subr.bf16.mxu0 0
      %3448 = vmatpush1.bf16.msra.mxu0 0
      %3449 = vmatprep.subr.bf16.mxu0 0
      %3450 = vmatpush1.bf16.msra.mxu0 0
      %3451 = vmatprep.subr.bf16.mxu0 0
      %3452 = vmatpush1.bf16.msra.mxu0 0
      %3453 = vmatprep.subr.bf16.mxu0 0
      %3454 = vmatpush1.bf16.msra.mxu0 0
      %3455 = vmatprep.subr.bf16.mxu0 0
      %3456 = vmatpush1.bf16.msra.mxu0 0
      %3457 = vmatprep.subr.bf16.mxu0 0
      %3458 = vmatpush1.bf16.msra.mxu0 0
      %3459 = vmatprep.subr.bf16.mxu0 0
      %3460 = vmatpush1.bf16.msra.mxu0 0
      %3461 = vmatprep.subr.bf16.mxu0 0
      %3462 = vmatpush1.bf16.msra.mxu0 0
      %3463 = vmatprep.subr.bf16.mxu0 0
      %3464 = vmatpush1.bf16.msra.mxu0 0
      %3465 = vmatprep.subr.bf16.mxu0 0
      %3466 = vmatpush1.bf16.msra.mxu0 0
      %3467 = vmatprep.subr.bf16.mxu0 0
      %3468 = vmatpush1.bf16.msra.mxu0 0
      %3469 = vmatprep.subr.bf16.mxu0 0
      %3470 = vmatpush1.bf16.msra.mxu0 0
      %3471 = vmatprep.subr.bf16.mxu0 0
      %3472 = vmatpush1.bf16.msra.mxu0 0
      %3473 = vmatprep.subr.bf16.mxu0 0
      %3474 = vmatpush1.bf16.msra.mxu0 0
      %3475 = vmatprep.mubr.bf16.mxu0 0
      %3476 = vmatmul.mubr.bf16.gmra.mrb[0].mxu0 %v3441
      %v3477 = vpop.f32.mrb[0].mxu0
      %v3478 = vadd.f32 0.0, %v3477
      %v3479 = vpop.f32.mrb[0].mxu0
      %v3480 = vpop.f32.mrb[0].mxu0
      %v3481 = vadd.f32 0.0, %v3480
      %v3482 = vpop.f32.mrb[0].mxu0
      %3483 = vdwg.mxu0
      %v3484 = vadd.f32 %v3368, %v3478
      %v3485 = vadd.f32 %v3369, %v3481
      %s3486 = scalar_lea.vmem %s8, 32
      %v3487 = vld [vmem:[%s3486] sm:$0xf]
      %v3488 = vld [vmem:[%s3486 + $0x4] sm:$0xf]
      %v3491 = vunpack.c.l.b16 %v3487
      %v3492 = vunpack.c.l.b16 %v3488
      %v3493 = vpack.c.b16 %v3492, %v3491
      %v3495 = vsel %vm3033, %v3493, 0
      %3497 = vmatprep.subr.bf16.mxu0 0
      %3498 = vmatpush1.bf16.msra.mxu0 %v3022
      %3499 = vmatprep.subr.bf16.mxu0 0
      %3500 = vmatpush1.bf16.msra.mxu0 %v3023
      %3501 = vmatprep.subr.bf16.mxu0 0
      %3502 = vmatpush1.bf16.msra.mxu0 %v3024
      %3503 = vmatprep.subr.bf16.mxu0 0
      %3504 = vmatpush1.bf16.msra.mxu0 %v3025
      %3505 = vmatprep.subr.bf16.mxu0 0
      %3506 = vmatpush1.bf16.msra.mxu0 0
      %3507 = vmatprep.subr.bf16.mxu0 0
      %3508 = vmatpush1.bf16.msra.mxu0 0
      %3509 = vmatprep.subr.bf16.mxu0 0
      %3510 = vmatpush1.bf16.msra.mxu0 0
      %3511 = vmatprep.subr.bf16.mxu0 0
      %3512 = vmatpush1.bf16.msra.mxu0 0
      %3513 = vmatprep.subr.bf16.mxu0 0
      %3514 = vmatpush1.bf16.msra.mxu0 0
      %3515 = vmatprep.subr.bf16.mxu0 0
      %3516 = vmatpush1.bf16.msra.mxu0 0
      %3517 = vmatprep.subr.bf16.mxu0 0
      %3518 = vmatpush1.bf16.msra.mxu0 0
      %3519 = vmatprep.subr.bf16.mxu0 0
      %3520 = vmatpush1.bf16.msra.mxu0 0
      %3521 = vmatprep.subr.bf16.mxu0 0
      %3522 = vmatpush1.bf16.msra.mxu0 0
      %3523 = vmatprep.subr.bf16.mxu0 0
      %3524 = vmatpush1.bf16.msra.mxu0 0
      %3525 = vmatprep.subr.bf16.mxu0 0
      %3526 = vmatpush1.bf16.msra.mxu0 0
      %3527 = vmatprep.subr.bf16.mxu0 0
      %3528 = vmatpush1.bf16.msra.mxu0 0
      %3529 = vmatprep.mubr.bf16.mxu0 0
      %3530 = vmatmul.mubr.bf16.gmra.mrb[0].mxu0 %v3495
      %v3531 = vpop.f32.mrb[0].mxu0
      %v3532 = vadd.f32 0.0, %v3531
      %v3533 = vpop.f32.mrb[0].mxu0
      %v3534 = vpop.f32.mrb[0].mxu0
      %v3535 = vadd.f32 0.0, %v3534
      %v3536 = vpop.f32.mrb[0].mxu0
      %3537 = vdwg.mxu0
      %v3538 = vpack.c.bf16 %v3535, %v3532
      %s3539 = scalar_lea.vmem %s9, 64
      %v3540 = vld [vmem:[%s3539] sm:$0xf]
      %v3541 = vld [vmem:[%s3539 + $0x4] sm:$0xf]
      %v3542 = vld [vmem:[%s3539 + $0x8] sm:$0xf]
      %v3543 = vld [vmem:[%s3539 + $0xc] sm:$0xf]
      %v3548 = vunpack.c.l.b16 %v3540
      %v3549 = vunpack.c.l.b16 %v3541
      %v3550 = vunpack.c.l.b16 %v3542
      %v3551 = vunpack.c.l.b16 %v3543
      %v3552 = vpack.c.b16 %v3549, %v3548
      %v3553 = vpack.c.b16 %v3551, %v3550
      %v3557 = vsel %vm3153, %v3538, 0
      %3559 = vmatprep.subr.bf16.mxu0 0
      %3560 = vmatpush1.bf16.msra.mxu0 %v3552
      %3561 = vmatprep.subr.bf16.mxu0 0
      %3562 = vmatpush1.bf16.msra.mxu0 %v3553
      %3563 = vmatprep.subr.bf16.mxu0 0
      %3564 = vmatpush1.bf16.msra.mxu0 0
      %3565 = vmatprep.subr.bf16.mxu0 0
      %3566 = vmatpush1.bf16.msra.mxu0 0
      %3567 = vmatprep.subr.bf16.mxu0 0
      %3568 = vmatpush1.bf16.msra.mxu0 0
      %3569 = vmatprep.subr.bf16.mxu0 0
      %3570 = vmatpush1.bf16.msra.mxu0 0
      %3571 = vmatprep.subr.bf16.mxu0 0
      %3572 = vmatpush1.bf16.msra.mxu0 0
      %3573 = vmatprep.subr.bf16.mxu0 0
      %3574 = vmatpush1.bf16.msra.mxu0 0
      %3575 = vmatprep.subr.bf16.mxu0 0
      %3576 = vmatpush1.bf16.msra.mxu0 0
      %3577 = vmatprep.subr.bf16.mxu0 0
      %3578 = vmatpush1.bf16.msra.mxu0 0
      %3579 = vmatprep.subr.bf16.mxu0 0
      %3580 = vmatpush1.bf16.msra.mxu0 0
      %3581 = vmatprep.subr.bf16.mxu0 0
      %3582 = vmatpush1.bf16.msra.mxu0 0
      %3583 = vmatprep.subr.bf16.mxu0 0
      %3584 = vmatpush1.bf16.msra.mxu0 0
      %3585 = vmatprep.subr.bf16.mxu0 0
      %3586 = vmatpush1.bf16.msra.mxu0 0
      %3587 = vmatprep.subr.bf16.mxu0 0
      %3588 = vmatpush1.bf16.msra.mxu0 0
      %3589 = vmatprep.subr.bf16.mxu0 0
      %3590 = vmatpush1.bf16.msra.mxu0 0
      %3591 = vmatprep.mubr.bf16.mxu0 0
      %3592 = vmatmul.mubr.bf16.gmra.mrb[0].mxu0 %v3557
      %v3593 = vpop.f32.mrb[0].mxu0
      %v3594 = vadd.f32 0.0, %v3593
      %v3595 = vpop.f32.mrb[0].mxu0
      %v3596 = vpop.f32.mrb[0].mxu0
      %v3597 = vadd.f32 0.0, %v3596
      %v3598 = vpop.f32.mrb[0].mxu0
      %3599 = vdwg.mxu0
      %v3600 = vadd.f32 %v3484, %v3594
      %v3601 = vadd.f32 %v3485, %v3597
      %s3602 = scalar_lea.vmem %s8, 40
      %v3603 = vld [vmem:[%s3602] sm:$0xf]
      %v3604 = vld [vmem:[%s3602 + $0x4] sm:$0xf]
      %v3607 = vunpack.c.l.b16 %v3603
      %v3608 = vunpack.c.l.b16 %v3604
      %v3609 = vpack.c.b16 %v3608, %v3607
      %v3611 = vsel %vm3033, %v3609, 0
      %3613 = vmatprep.subr.bf16.mxu0 0
      %3614 = vmatpush1.bf16.msra.mxu0 %v3022
      %3615 = vmatprep.subr.bf16.mxu0 0
      %3616 = vmatpush1.bf16.msra.mxu0 %v3023
      %3617 = vmatprep.subr.bf16.mxu0 0
      %3618 = vmatpush1.bf16.msra.mxu0 %v3024
      %3619 = vmatprep.subr.bf16.mxu0 0
      %3620 = vmatpush1.bf16.msra.mxu0 %v3025
      %3621 = vmatprep.subr.bf16.mxu0 0
      %3622 = vmatpush1.bf16.msra.mxu0 0
      %3623 = vmatprep.subr.bf16.mxu0 0
      %3624 = vmatpush1.bf16.msra.mxu0 0
      %3625 = vmatprep.subr.bf16.mxu0 0
      %3626 = vmatpush1.bf16.msra.mxu0 0
      %3627 = vmatprep.subr.bf16.mxu0 0
      %3628 = vmatpush1.bf16.msra.mxu0 0
      %3629 = vmatprep.subr.bf16.mxu0 0
      %3630 = vmatpush1.bf16.msra.mxu0 0
      %3631 = vmatprep.subr.bf16.mxu0 0
      %3632 = vmatpush1.bf16.msra.mxu0 0
      %3633 = vmatprep.subr.bf16.mxu0 0
      %3634 = vmatpush1.bf16.msra.mxu0 0
      %3635 = vmatprep.subr.bf16.mxu0 0
      %3636 = vmatpush1.bf16.msra.mxu0 0
      %3637 = vmatprep.subr.bf16.mxu0 0
      %3638 = vmatpush1.bf16.msra.mxu0 0
      %3639 = vmatprep.subr.bf16.mxu0 0
      %3640 = vmatpush1.bf16.msra.mxu0 0
      %3641 = vmatprep.subr.bf16.mxu0 0
      %3642 = vmatpush1.bf16.msra.mxu0 0
      %3643 = vmatprep.subr.bf16.mxu0 0
      %3644 = vmatpush1.bf16.msra.mxu0 0
      %3645 = vmatprep.mubr.bf16.mxu0 0
      %3646 = vmatmul.mubr.bf16.gmra.mrb[0].mxu0 %v3611
      %v3647 = vpop.f32.mrb[0].mxu0
      %v3648 = vadd.f32 0.0, %v3647
      %v3649 = vpop.f32.mrb[0].mxu0
      %v3650 = vpop.f32.mrb[0].mxu0
      %v3651 = vadd.f32 0.0, %v3650
      %v3652 = vpop.f32.mrb[0].mxu0
      %3653 = vdwg.mxu0
      %v3654 = vpack.c.bf16 %v3651, %v3648
      %s3655 = scalar_lea.vmem %s9, 80
      %v3656 = vld [vmem:[%s3655] sm:$0xf]
      %v3657 = vld [vmem:[%s3655 + $0x4] sm:$0xf]
      %v3658 = vld [vmem:[%s3655 + $0x8] sm:$0xf]
      %v3659 = vld [vmem:[%s3655 + $0xc] sm:$0xf]
      %v3664 = vunpack.c.l.b16 %v3656
      %v3665 = vunpack.c.l.b16 %v3657
      %v3666 = vunpack.c.l.b16 %v3658
      %v3667 = vunpack.c.l.b16 %v3659
      %v3668 = vpack.c.b16 %v3665, %v3664
      %v3669 = vpack.c.b16 %v3667, %v3666
      %v3673 = vsel %vm3153, %v3654, 0
      %3675 = vmatprep.subr.bf16.mxu0 0
      %3676 = vmatpush1.bf16.msra.mxu0 %v3668
      %3677 = vmatprep.subr.bf16.mxu0 0
      %3678 = vmatpush1.bf16.msra.mxu0 %v3669
      %3679 = vmatprep.subr.bf16.mxu0 0
      %3680 = vmatpush1.bf16.msra.mxu0 0
      %3681 = vmatprep.subr.bf16.mxu0 0
      %3682 = vmatpush1.bf16.msra.mxu0 0
      %3683 = vmatprep.subr.bf16.mxu0 0
      %3684 = vmatpush1.bf16.msra.mxu0 0
      %3685 = vmatprep.subr.bf16.mxu0 0
      %3686 = vmatpush1.bf16.msra.mxu0 0
      %3687 = vmatprep.subr.bf16.mxu0 0
      %3688 = vmatpush1.bf16.msra.mxu0 0
      %3689 = vmatprep.subr.bf16.mxu0 0
      %3690 = vmatpush1.bf16.msra.mxu0 0
      %3691 = vmatprep.subr.bf16.mxu0 0
      %3692 = vmatpush1.bf16.msra.mxu0 0
      %3693 = vmatprep.subr.bf16.mxu0 0
      %3694 = vmatpush1.bf16.msra.mxu0 0
      %3695 = vmatprep.subr.bf16.mxu0 0
      %3696 = vmatpush1.bf16.msra.mxu0 0
      %3697 = vmatprep.subr.bf16.mxu0 0
      %3698 = vmatpush1.bf16.msra.mxu0 0
      %3699 = vmatprep.subr.bf16.mxu0 0
      %3700 = vmatpush1.bf16.msra.mxu0 0
      %3701 = vmatprep.subr.bf16.mxu0 0
      %3702 = vmatpush1.bf16.msra.mxu0 0
      %3703 = vmatprep.subr.bf16.mxu0 0
      %3704 = vmatpush1.bf16.msra.mxu0 0
      %3705 = vmatprep.subr.bf16.mxu0 0
      %3706 = vmatpush1.bf16.msra.mxu0 0
      %3707 = vmatprep.mubr.bf16.mxu0 0
      %3708 = vmatmul.mubr.bf16.gmra.mrb[0].mxu0 %v3673
      %v3709 = vpop.f32.mrb[0].mxu0
      %v3710 = vadd.f32 0.0, %v3709
      %v3711 = vpop.f32.mrb[0].mxu0
      %v3712 = vpop.f32.mrb[0].mxu0
      %v3713 = vadd.f32 0.0, %v3712
      %v3714 = vpop.f32.mrb[0].mxu0
      %3715 = vdwg.mxu0
      %v3716 = vadd.f32 %v3600, %v3710
      %v3717 = vadd.f32 %v3601, %v3713
      %s3718 = scalar_lea.vmem %s8, 48
      %v3719 = vld [vmem:[%s3718] sm:$0xf]
      %v3720 = vld [vmem:[%s3718 + $0x4] sm:$0xf]
      %v3723 = vunpack.c.l.b16 %v3719
      %v3724 = vunpack.c.l.b16 %v3720
      %v3725 = vpack.c.b16 %v3724, %v3723
      %v3727 = vsel %vm3033, %v3725, 0
      %3729 = vmatprep.subr.bf16.mxu0 0
      %3730 = vmatpush1.bf16.msra.mxu0 %v3022
      %3731 = vmatprep.subr.bf16.mxu0 0
      %3732 = vmatpush1.bf16.msra.mxu0 %v3023
      %3733 = vmatprep.subr.bf16.mxu0 0
      %3734 = vmatpush1.bf16.msra.mxu0 %v3024
      %3735 = vmatprep.subr.bf16.mxu0 0
      %3736 = vmatpush1.bf16.msra.mxu0 %v3025
      %3737 = vmatprep.subr.bf16.mxu0 0
      %3738 = vmatpush1.bf16.msra.mxu0 0
      %3739 = vmatprep.subr.bf16.mxu0 0
      %3740 = vmatpush1.bf16.msra.mxu0 0
      %3741 = vmatprep.subr.bf16.mxu0 0
      %3742 = vmatpush1.bf16.msra.mxu0 0
      %3743 = vmatprep.subr.bf16.mxu0 0
      %3744 = vmatpush1.bf16.msra.mxu0 0
      %3745 = vmatprep.subr.bf16.mxu0 0
      %3746 = vmatpush1.bf16.msra.mxu0 0
      %3747 = vmatprep.subr.bf16.mxu0 0
      %3748 = vmatpush1.bf16.msra.mxu0 0
      %3749 = vmatprep.subr.bf16.mxu0 0
      %3750 = vmatpush1.bf16.msra.mxu0 0
      %3751 = vmatprep.subr.bf16.mxu0 0
      %3752 = vmatpush1.bf16.msra.mxu0 0
      %3753 = vmatprep.subr.bf16.mxu0 0
      %3754 = vmatpush1.bf16.msra.mxu0 0
      %3755 = vmatprep.subr.bf16.mxu0 0
      %3756 = vmatpush1.bf16.msra.mxu0 0
      %3757 = vmatprep.subr.bf16.mxu0 0
      %3758 = vmatpush1.bf16.msra.mxu0 0
      %3759 = vmatprep.subr.bf16.mxu0 0
      %3760 = vmatpush1.bf16.msra.mxu0 0
      %3761 = vmatprep.mubr.bf16.mxu0 0
      %3762 = vmatmul.mubr.bf16.gmra.mrb[0].mxu0 %v3727
      %v3763 = vpop.f32.mrb[0].mxu0
      %v3764 = vadd.f32 0.0, %v3763
      %v3765 = vpop.f32.mrb[0].mxu0
      %v3766 = vpop.f32.mrb[0].mxu0
      %v3767 = vadd.f32 0.0, %v3766
      %v3768 = vpop.f32.mrb[0].mxu0
      %3769 = vdwg.mxu0
      %v3770 = vpack.c.bf16 %v3767, %v3764
      %s3771 = scalar_lea.vmem %s9, 96
      %v3772 = vld [vmem:[%s3771] sm:$0xf]
      %v3773 = vld [vmem:[%s3771 + $0x4] sm:$0xf]
      %v3774 = vld [vmem:[%s3771 + $0x8] sm:$0xf]
      %v3775 = vld [vmem:[%s3771 + $0xc] sm:$0xf]
      %v3780 = vunpack.c.l.b16 %v3772
      %v3781 = vunpack.c.l.b16 %v3773
      %v3782 = vunpack.c.l.b16 %v3774
      %v3783 = vunpack.c.l.b16 %v3775
      %v3784 = vpack.c.b16 %v3781, %v3780
      %v3785 = vpack.c.b16 %v3783, %v3782
      %v3789 = vsel %vm3153, %v3770, 0
      %3791 = vmatprep.subr.bf16.mxu0 0
      %3792 = vmatpush1.bf16.msra.mxu0 %v3784
      %3793 = vmatprep.subr.bf16.mxu0 0
      %3794 = vmatpush1.bf16.msra.mxu0 %v3785
      %3795 = vmatprep.subr.bf16.mxu0 0
      %3796 = vmatpush1.bf16.msra.mxu0 0
      %3797 = vmatprep.subr.bf16.mxu0 0
      %3798 = vmatpush1.bf16.msra.mxu0 0
      %3799 = vmatprep.subr.bf16.mxu0 0
      %3800 = vmatpush1.bf16.msra.mxu0 0
      %3801 = vmatprep.subr.bf16.mxu0 0
      %3802 = vmatpush1.bf16.msra.mxu0 0
      %3803 = vmatprep.subr.bf16.mxu0 0
      %3804 = vmatpush1.bf16.msra.mxu0 0
      %3805 = vmatprep.subr.bf16.mxu0 0
      %3806 = vmatpush1.bf16.msra.mxu0 0
      %3807 = vmatprep.subr.bf16.mxu0 0
      %3808 = vmatpush1.bf16.msra.mxu0 0
      %3809 = vmatprep.subr.bf16.mxu0 0
      %3810 = vmatpush1.bf16.msra.mxu0 0
      %3811 = vmatprep.subr.bf16.mxu0 0
      %3812 = vmatpush1.bf16.msra.mxu0 0
      %3813 = vmatprep.subr.bf16.mxu0 0
      %3814 = vmatpush1.bf16.msra.mxu0 0
      %3815 = vmatprep.subr.bf16.mxu0 0
      %3816 = vmatpush1.bf16.msra.mxu0 0
      %3817 = vmatprep.subr.bf16.mxu0 0
      %3818 = vmatpush1.bf16.msra.mxu0 0
      %3819 = vmatprep.subr.bf16.mxu0 0
      %3820 = vmatpush1.bf16.msra.mxu0 0
      %3821 = vmatprep.subr.bf16.mxu0 0
      %3822 = vmatpush1.bf16.msra.mxu0 0
      %3823 = vmatprep.mubr.bf16.mxu0 0
      %3824 = vmatmul.mubr.bf16.gmra.mrb[0].mxu0 %v3789
      %v3825 = vpop.f32.mrb[0].mxu0
      %v3826 = vadd.f32 0.0, %v3825
      %v3827 = vpop.f32.mrb[0].mxu0
      %v3828 = vpop.f32.mrb[0].mxu0
      %v3829 = vadd.f32 0.0, %v3828
      %v3830 = vpop.f32.mrb[0].mxu0
      %3831 = vdwg.mxu0
      %v3832 = vadd.f32 %v3716, %v3826
      %v3833 = vadd.f32 %v3717, %v3829
      %s3834 = scalar_lea.vmem %s8, 56
      %v3835 = vld [vmem:[%s3834] sm:$0xf]
      %v3836 = vld [vmem:[%s3834 + $0x4] sm:$0xf]
      %v3839 = vunpack.c.l.b16 %v3835
      %v3840 = vunpack.c.l.b16 %v3836
      %v3841 = vpack.c.b16 %v3840, %v3839
      %v3843 = vsel %vm3033, %v3841, 0
      %3845 = vmatprep.subr.bf16.mxu0 0
      %3846 = vmatpush1.bf16.msra.mxu0 %v3022
      %3847 = vmatprep.subr.bf16.mxu0 0
      %3848 = vmatpush1.bf16.msra.mxu0 %v3023
      %3849 = vmatprep.subr.bf16.mxu0 0
      %3850 = vmatpush1.bf16.msra.mxu0 %v3024
      %3851 = vmatprep.subr.bf16.mxu0 0
      %3852 = vmatpush1.bf16.msra.mxu0 %v3025
      %3853 = vmatprep.subr.bf16.mxu0 0
      %3854 = vmatpush1.bf16.msra.mxu0 0
      %3855 = vmatprep.subr.bf16.mxu0 0
      %3856 = vmatpush1.bf16.msra.mxu0 0
      %3857 = vmatprep.subr.bf16.mxu0 0
      %3858 = vmatpush1.bf16.msra.mxu0 0
      %3859 = vmatprep.subr.bf16.mxu0 0
      %3860 = vmatpush1.bf16.msra.mxu0 0
      %3861 = vmatprep.subr.bf16.mxu0 0
      %3862 = vmatpush1.bf16.msra.mxu0 0
      %3863 = vmatprep.subr.bf16.mxu0 0
      %3864 = vmatpush1.bf16.msra.mxu0 0
      %3865 = vmatprep.subr.bf16.mxu0 0
      %3866 = vmatpush1.bf16.msra.mxu0 0
      %3867 = vmatprep.subr.bf16.mxu0 0
      %3868 = vmatpush1.bf16.msra.mxu0 0
      %3869 = vmatprep.subr.bf16.mxu0 0
      %3870 = vmatpush1.bf16.msra.mxu0 0
      %3871 = vmatprep.subr.bf16.mxu0 0
      %3872 = vmatpush1.bf16.msra.mxu0 0
      %3873 = vmatprep.subr.bf16.mxu0 0
      %3874 = vmatpush1.bf16.msra.mxu0 0
      %3875 = vmatprep.subr.bf16.mxu0 0
      %3876 = vmatpush1.bf16.msra.mxu0 0
      %3877 = vmatprep.mubr.bf16.mxu0 0
      %3878 = vmatmul.mubr.bf16.gmra.mrb[0].mxu0 %v3843
      %v3879 = vpop.f32.mrb[0].mxu0
      %v3880 = vadd.f32 0.0, %v3879
      %v3881 = vpop.f32.mrb[0].mxu0
      %v3882 = vpop.f32.mrb[0].mxu0
      %v3883 = vadd.f32 0.0, %v3882
      %v3884 = vpop.f32.mrb[0].mxu0
      %3885 = vdwg.mxu0
      %v3886 = vpack.c.bf16 %v3883, %v3880
      %s3887 = scalar_lea.vmem %s9, 112
      %v3888 = vld [vmem:[%s3887] sm:$0xf]
      %v3889 = vld [vmem:[%s3887 + $0x4] sm:$0xf]
      %v3890 = vld [vmem:[%s3887 + $0x8] sm:$0xf]
      %v3891 = vld [vmem:[%s3887 + $0xc] sm:$0xf]
      %v3896 = vunpack.c.l.b16 %v3888
      %v3897 = vunpack.c.l.b16 %v3889
      %v3898 = vunpack.c.l.b16 %v3890
      %v3899 = vunpack.c.l.b16 %v3891
      %v3900 = vpack.c.b16 %v3897, %v3896
      %v3901 = vpack.c.b16 %v3899, %v3898
      %v3905 = vsel %vm3153, %v3886, 0
      %3907 = vmatprep.subr.bf16.mxu0 0
      %3908 = vmatpush1.bf16.msra.mxu0 %v3900
      %3909 = vmatprep.subr.bf16.mxu0 0
      %3910 = vmatpush1.bf16.msra.mxu0 %v3901
      %3911 = vmatprep.subr.bf16.mxu0 0
      %3912 = vmatpush1.bf16.msra.mxu0 0
      %3913 = vmatprep.subr.bf16.mxu0 0
      %3914 = vmatpush1.bf16.msra.mxu0 0
      %3915 = vmatprep.subr.bf16.mxu0 0
      %3916 = vmatpush1.bf16.msra.mxu0 0
      %3917 = vmatprep.subr.bf16.mxu0 0
      %3918 = vmatpush1.bf16.msra.mxu0 0
      %3919 = vmatprep.subr.bf16.mxu0 0
      %3920 = vmatpush1.bf16.msra.mxu0 0
      %3921 = vmatprep.subr.bf16.mxu0 0
      %3922 = vmatpush1.bf16.msra.mxu0 0
      %3923 = vmatprep.subr.bf16.mxu0 0
      %3924 = vmatpush1.bf16.msra.mxu0 0
      %3925 = vmatprep.subr.bf16.mxu0 0
      %3926 = vmatpush1.bf16.msra.mxu0 0
      %3927 = vmatprep.subr.bf16.mxu0 0
      %3928 = vmatpush1.bf16.msra.mxu0 0
      %3929 = vmatprep.subr.bf16.mxu0 0
      %3930 = vmatpush1.bf16.msra.mxu0 0
      %3931 = vmatprep.subr.bf16.mxu0 0
      %3932 = vmatpush1.bf16.msra.mxu0 0
      %3933 = vmatprep.subr.bf16.mxu0 0
      %3934 = vmatpush1.bf16.msra.mxu0 0
      %3935 = vmatprep.subr.bf16.mxu0 0
      %3936 = vmatpush1.bf16.msra.mxu0 0
      %3937 = vmatprep.subr.bf16.mxu0 0
      %3938 = vmatpush1.bf16.msra.mxu0 0
      %3939 = vmatprep.mubr.bf16.mxu0 0
      %3940 = vmatmul.mubr.bf16.gmra.mrb[0].mxu0 %v3905
      %v3941 = vpop.f32.mrb[0].mxu0
      %v3942 = vadd.f32 0.0, %v3941
      %v3943 = vpop.f32.mrb[0].mxu0
      %v3944 = vpop.f32.mrb[0].mxu0
      %v3945 = vadd.f32 0.0, %v3944
      %v3946 = vpop.f32.mrb[0].mxu0
      %3947 = vdwg.mxu0
      %v3948 = vadd.f32 %v3832, %v3942
      %v3949 = vadd.f32 %v3833, %v3945
      %s3950 = scalar_lea.vmem %s8, 64
      %v3951 = vld [vmem:[%s3950] sm:$0xf]
      %v3952 = vld [vmem:[%s3950 + $0x4] sm:$0xf]
      %v3955 = vunpack.c.l.b16 %v3951
      %v3956 = vunpack.c.l.b16 %v3952
      %v3957 = vpack.c.b16 %v3956, %v3955
      %v3959 = vsel %vm3033, %v3957, 0
      %3961 = vmatprep.subr.bf16.mxu0 0
      %3962 = vmatpush1.bf16.msra.mxu0 %v3022
      %3963 = vmatprep.subr.bf16.mxu0 0
      %3964 = vmatpush1.bf16.msra.mxu0 %v3023
      %3965 = vmatprep.subr.bf16.mxu0 0
      %3966 = vmatpush1.bf16.msra.mxu0 %v3024
      %3967 = vmatprep.subr.bf16.mxu0 0
      %3968 = vmatpush1.bf16.msra.mxu0 %v3025
      %3969 = vmatprep.subr.bf16.mxu0 0
      %3970 = vmatpush1.bf16.msra.mxu0 0
      %3971 = vmatprep.subr.bf16.mxu0 0
      %3972 = vmatpush1.bf16.msra.mxu0 0
      %3973 = vmatprep.subr.bf16.mxu0 0
      %3974 = vmatpush1.bf16.msra.mxu0 0
      %3975 = vmatprep.subr.bf16.mxu0 0
      %3976 = vmatpush1.bf16.msra.mxu0 0
      %3977 = vmatprep.subr.bf16.mxu0 0
      %3978 = vmatpush1.bf16.msra.mxu0 0
      %3979 = vmatprep.subr.bf16.mxu0 0
      %3980 = vmatpush1.bf16.msra.mxu0 0
      %3981 = vmatprep.subr.bf16.mxu0 0
      %3982 = vmatpush1.bf16.msra.mxu0 0
      %3983 = vmatprep.subr.bf16.mxu0 0
      %3984 = vmatpush1.bf16.msra.mxu0 0
      %3985 = vmatprep.subr.bf16.mxu0 0
      %3986 = vmatpush1.bf16.msra.mxu0 0
      %3987 = vmatprep.subr.bf16.mxu0 0
      %3988 = vmatpush1.bf16.msra.mxu0 0
      %3989 = vmatprep.subr.bf16.mxu0 0
      %3990 = vmatpush1.bf16.msra.mxu0 0
      %3991 = vmatprep.subr.bf16.mxu0 0
      %3992 = vmatpush1.bf16.msra.mxu0 0
      %3993 = vmatprep.mubr.bf16.mxu0 0
      %3994 = vmatmul.mubr.bf16.gmra.mrb[0].mxu0 %v3959
      %v3995 = vpop.f32.mrb[0].mxu0
      %v3996 = vadd.f32 0.0, %v3995
      %v3997 = vpop.f32.mrb[0].mxu0
      %v3998 = vpop.f32.mrb[0].mxu0
      %v3999 = vadd.f32 0.0, %v3998
      %v4000 = vpop.f32.mrb[0].mxu0
      %4001 = vdwg.mxu0
      %v4002 = vpack.c.bf16 %v3999, %v3996
      %s4003 = scalar_lea.vmem %s9, 128
      %v4004 = vld [vmem:[%s4003] sm:$0xf]
      %v4005 = vld [vmem:[%s4003 + $0x4] sm:$0xf]
      %v4006 = vld [vmem:[%s4003 + $0x8] sm:$0xf]
      %v4007 = vld [vmem:[%s4003 + $0xc] sm:$0xf]
      %v4012 = vunpack.c.l.b16 %v4004
      %v4013 = vunpack.c.l.b16 %v4005
      %v4014 = vunpack.c.l.b16 %v4006
      %v4015 = vunpack.c.l.b16 %v4007
      %v4016 = vpack.c.b16 %v4013, %v4012
      %v4017 = vpack.c.b16 %v4015, %v4014
      %v4021 = vsel %vm3153, %v4002, 0
      %4023 = vmatprep.subr.bf16.mxu0 0
      %4024 = vmatpush1.bf16.msra.mxu0 %v4016
      %4025 = vmatprep.subr.bf16.mxu0 0
      %4026 = vmatpush1.bf16.msra.mxu0 %v4017
      %4027 = vmatprep.subr.bf16.mxu0 0
      %4028 = vmatpush1.bf16.msra.mxu0 0
      %4029 = vmatprep.subr.bf16.mxu0 0
      %4030 = vmatpush1.bf16.msra.mxu0 0
      %4031 = vmatprep.subr.bf16.mxu0 0
      %4032 = vmatpush1.bf16.msra.mxu0 0
      %4033 = vmatprep.subr.bf16.mxu0 0
      %4034 = vmatpush1.bf16.msra.mxu0 0
      %4035 = vmatprep.subr.bf16.mxu0 0
      %4036 = vmatpush1.bf16.msra.mxu0 0
      %4037 = vmatprep.subr.bf16.mxu0 0
      %4038 = vmatpush1.bf16.msra.mxu0 0
      %4039 = vmatprep.subr.bf16.mxu0 0
      %4040 = vmatpush1.bf16.msra.mxu0 0
      %4041 = vmatprep.subr.bf16.mxu0 0
      %4042 = vmatpush1.bf16.msra.mxu0 0
      %4043 = vmatprep.subr.bf16.mxu0 0
      %4044 = vmatpush1.bf16.msra.mxu0 0
      %4045 = vmatprep.subr.bf16.mxu0 0
      %4046 = vmatpush1.bf16.msra.mxu0 0
      %4047 = vmatprep.subr.bf16.mxu0 0
      %4048 = vmatpush1.bf16.msra.mxu0 0
      %4049 = vmatprep.subr.bf16.mxu0 0
      %4050 = vmatpush1.bf16.msra.mxu0 0
      %4051 = vmatprep.subr.bf16.mxu0 0
      %4052 = vmatpush1.bf16.msra.mxu0 0
      %4053 = vmatprep.subr.bf16.mxu0 0
      %4054 = vmatpush1.bf16.msra.mxu0 0
      %4055 = vmatprep.mubr.bf16.mxu0 0
      %4056 = vmatmul.mubr.bf16.gmra.mrb[0].mxu0 %v4021
      %v4057 = vpop.f32.mrb[0].mxu0
      %v4058 = vadd.f32 0.0, %v4057
      %v4059 = vpop.f32.mrb[0].mxu0
      %v4060 = vpop.f32.mrb[0].mxu0
      %v4061 = vadd.f32 0.0, %v4060
      %v4062 = vpop.f32.mrb[0].mxu0
      %4063 = vdwg.mxu0
      %v4064 = vadd.f32 %v3948, %v4058
      %v4065 = vadd.f32 %v3949, %v4061
      %v4066 = vld [vmem:[%s10] sm:$0x1]
      %v4067 = vld [vmem:[%s11] sm:$0x1]
      %v4069 = vlaneseq
      %v4070 = vshrl.u32 %v4069, 7
      %v4071 = vsub.s32 0, %v4070
      %v4072 = vrot.slane %v4066, %v4071
      %v4074 = vadd.f32 %v4064, %v4072
      %v4075 = vadd.f32 %v4065, %v4072
      %vm4076 = vcmp.gt.f32.partialorder %v4074, 0.0
      %vm4077 = vcmp.gt.f32.partialorder %v4075, 0.0
      %v4078 = vmul.f32 %v4074, 0.2
      %v4079 = vmul.f32 %v4075, 0.2
      %v4080 = vsel %vm4076, %v4074, %v4078
      %v4081 = vsel %vm4077, %v4075, %v4079
      %v4083 = vlaneseq
      %v4084 = vshrl.u32 %v4083, 7
      %v4085 = vsub.s32 0, %v4084
      %v4086 = vrot.slane %v4067, %v4085
      %v4088 = vadd.f32 %v4080, %v4086
      %v4089 = vadd.f32 %v4081, %v4086
      %v4090 = vpack.c.bf16 %v4089, %v4088
      %v4091 = vld [vmem:[%s12] sm:$0x3]
      %v4093 = vsel %vm1323, %v4091, 0
      %4095 = vmatprep.subr.bf16.mxu0 0
      %4096 = vmatpush1.bf16.msra.mxu0 %v4090
      %4097 = vmatprep.subr.bf16.mxu0 0
      %4098 = vmatpush1.bf16.msra.mxu0 0
      %4099 = vmatprep.subr.bf16.mxu0 0
      %4100 = vmatpush1.bf16.msra.mxu0 0
      %4101 = vmatprep.subr.bf16.mxu0 0
      %4102 = vmatpush1.bf16.msra.mxu0 0
      %4103 = vmatprep.subr.bf16.mxu0 0
      %4104 = vmatpush1.bf16.msra.mxu0 0
      %4105 = vmatprep.subr.bf16.mxu0 0
      %4106 = vmatpush1.bf16.msra.mxu0 0
      %4107 = vmatprep.subr.bf16.mxu0 0
      %4108 = vmatpush1.bf16.msra.mxu0 0
      %4109 = vmatprep.subr.bf16.mxu0 0
      %4110 = vmatpush1.bf16.msra.mxu0 0
      %4111 = vmatprep.subr.bf16.mxu0 0
      %4112 = vmatpush1.bf16.msra.mxu0 0
      %4113 = vmatprep.subr.bf16.mxu0 0
      %4114 = vmatpush1.bf16.msra.mxu0 0
      %4115 = vmatprep.subr.bf16.mxu0 0
      %4116 = vmatpush1.bf16.msra.mxu0 0
      %4117 = vmatprep.subr.bf16.mxu0 0
      %4118 = vmatpush1.bf16.msra.mxu0 0
      %4119 = vmatprep.subr.bf16.mxu0 0
      %4120 = vmatpush1.bf16.msra.mxu0 0
      %4121 = vmatprep.subr.bf16.mxu0 0
      %4122 = vmatpush1.bf16.msra.mxu0 0
      %4123 = vmatprep.subr.bf16.mxu0 0
      %4124 = vmatpush1.bf16.msra.mxu0 0
      %4125 = vmatprep.subr.bf16.mxu0 0
      %4126 = vmatpush1.bf16.msra.mxu0 0
      %4127 = vmatprep.mubr.bf16.mxu0 0
      %4128 = vmatmul.mubr.bf16.gmra.mrb[0].mxu0 %v4093
      %v4129 = vpop.f32.mrb[0].mxu0
      %v4130 = vadd.f32 0.0, %v4129
      %v4131 = vpop.f32.mrb[0].mxu0
      %v4132 = vpop.f32.mrb[0].mxu0
      %v4133 = vpop.f32.mrb[0].mxu0
      %4134 = vdwg.mxu0
      %v4135 = vpack.c.bf16 %v4130, %v4130
      %v4136 = vld [vmem:[%s13] sm:$0xf]
      %v4137 = vld [vmem:[%s13 + $0x4] sm:$0xf]
      %v4138 = vld [vmem:[%s13 + $0x8] sm:$0xf]
      %v4139 = vld [vmem:[%s13 + $0xc] sm:$0xf]
      %v4140 = vld [vmem:[%s13 + $0x10] sm:$0xf]
      %v4141 = vld [vmem:[%s13 + $0x14] sm:$0xf]
      %v4142 = vld [vmem:[%s13 + $0x18] sm:$0xf]
      %v4143 = vld [vmem:[%s13 + $0x1c] sm:$0xf]
      %s4144 = scalar_lea.vmem %s12, 2
      %v4145 = vld [vmem:[%s4144] sm:$0x3]
      %v4147 = vsel %vm1323, %v4145, 0
      %4149 = vmatprep.subr.bf16.mxu0 0
      %4150 = vmatpush1.bf16.msra.mxu0 %v4090
      %4151 = vmatprep.subr.bf16.mxu0 0
      %4152 = vmatpush1.bf16.msra.mxu0 0
      %4153 = vmatprep.subr.bf16.mxu0 0
      %4154 = vmatpush1.bf16.msra.mxu0 0
      %4155 = vmatprep.subr.bf16.mxu0 0
      %4156 = vmatpush1.bf16.msra.mxu0 0
      %4157 = vmatprep.subr.bf16.mxu0 0
      %4158 = vmatpush1.bf16.msra.mxu0 0
      %4159 = vmatprep.subr.bf16.mxu0 0
      %4160 = vmatpush1.bf16.msra.mxu0 0
      %4161 = vmatprep.subr.bf16.mxu0 0
      %4162 = vmatpush1.bf16.msra.mxu0 0
      %4163 = vmatprep.subr.bf16.mxu0 0
      %4164 = vmatpush1.bf16.msra.mxu0 0
      %4165 = vmatprep.subr.bf16.mxu0 0
      %4166 = vmatpush1.bf16.msra.mxu0 0
      %4167 = vmatprep.subr.bf16.mxu0 0
      %4168 = vmatpush1.bf16.msra.mxu0 0
      %4169 = vmatprep.subr.bf16.mxu0 0
      %4170 = vmatpush1.bf16.msra.mxu0 0
      %4171 = vmatprep.subr.bf16.mxu0 0
      %4172 = vmatpush1.bf16.msra.mxu0 0
      %4173 = vmatprep.subr.bf16.mxu0 0
      %4174 = vmatpush1.bf16.msra.mxu0 0
      %4175 = vmatprep.subr.bf16.mxu0 0
      %4176 = vmatpush1.bf16.msra.mxu0 0
      %4177 = vmatprep.subr.bf16.mxu0 0
      %4178 = vmatpush1.bf16.msra.mxu0 0
      %4179 = vmatprep.subr.bf16.mxu0 0
      %4180 = vmatpush1.bf16.msra.mxu0 0
      %4181 = vmatprep.mubr.bf16.mxu0 0
      %4182 = vmatmul.mubr.bf16.gmra.mrb[0].mxu0 %v4147
      %v4183 = vpop.f32.mrb[0].mxu0
      %v4184 = vadd.f32 0.0, %v4183
      %v4185 = vpop.f32.mrb[0].mxu0
      %v4186 = vpop.f32.mrb[0].mxu0
      %v4187 = vpop.f32.mrb[0].mxu0
      %4188 = vdwg.mxu0
      %v4189 = vpack.c.bf16 %v4184, %v4184
      %s4190 = scalar_lea.vmem %s13, 32
      %v4191 = vld [vmem:[%s4190] sm:$0xf]
      %v4192 = vld [vmem:[%s4190 + $0x4] sm:$0xf]
      %v4193 = vld [vmem:[%s4190 + $0x8] sm:$0xf]
      %v4194 = vld [vmem:[%s4190 + $0xc] sm:$0xf]
      %v4195 = vld [vmem:[%s4190 + $0x10] sm:$0xf]
      %v4196 = vld [vmem:[%s4190 + $0x14] sm:$0xf]
      %v4197 = vld [vmem:[%s4190 + $0x18] sm:$0xf]
      %v4198 = vld [vmem:[%s4190 + $0x1c] sm:$0xf]
      %v4207 = vunpack.c.l.b16 %v4191
      %v4208 = vunpack.c.l.b16 %v4192
      %v4209 = vunpack.c.l.b16 %v4193
      %v4210 = vunpack.c.l.b16 %v4194
      %v4211 = vunpack.c.l.b16 %v4195
      %v4212 = vunpack.c.l.b16 %v4196
      %v4213 = vunpack.c.l.b16 %v4197
      %v4214 = vunpack.c.l.b16 %v4198
      %v4215 = vpack.c.b16 %v4208, %v4207
      %v4216 = vpack.c.b16 %v4210, %v4209
      %v4217 = vpack.c.b16 %v4212, %v4211
      %v4218 = vpack.c.b16 %v4214, %v4213
      %v4224 = vsel %vm3033, %v4189, 0
      %4226 = vmatprep.subr.bf16.mxu0 0
      %4227 = vmatpush1.bf16.msra.mxu0 %v4215
      %4228 = vmatprep.subr.bf16.mxu0 0
      %4229 = vmatpush1.bf16.msra.mxu0 %v4216
      %4230 = vmatprep.subr.bf16.mxu0 0
      %4231 = vmatpush1.bf16.msra.mxu0 %v4217
      %4232 = vmatprep.subr.bf16.mxu0 0
      %4233 = vmatpush1.bf16.msra.mxu0 %v4218
      %4234 = vmatprep.subr.bf16.mxu0 0
      %4235 = vmatpush1.bf16.msra.mxu0 0
      %4236 = vmatprep.subr.bf16.mxu0 0
      %4237 = vmatpush1.bf16.msra.mxu0 0
      %4238 = vmatprep.subr.bf16.mxu0 0
      %4239 = vmatpush1.bf16.msra.mxu0 0
      %4240 = vmatprep.subr.bf16.mxu0 0
      %4241 = vmatpush1.bf16.msra.mxu0 0
      %4242 = vmatprep.subr.bf16.mxu0 0
      %4243 = vmatpush1.bf16.msra.mxu0 0
      %4244 = vmatprep.subr.bf16.mxu0 0
      %4245 = vmatpush1.bf16.msra.mxu0 0
      %4246 = vmatprep.subr.bf16.mxu0 0
      %4247 = vmatpush1.bf16.msra.mxu0 0
      %4248 = vmatprep.subr.bf16.mxu0 0
      %4249 = vmatpush1.bf16.msra.mxu0 0
      %4250 = vmatprep.subr.bf16.mxu0 0
      %4251 = vmatpush1.bf16.msra.mxu0 0
      %4252 = vmatprep.subr.bf16.mxu0 0
      %4253 = vmatpush1.bf16.msra.mxu0 0
      %4254 = vmatprep.subr.bf16.mxu0 0
      %4255 = vmatpush1.bf16.msra.mxu0 0
      %4256 = vmatprep.subr.bf16.mxu0 0
      %4257 = vmatpush1.bf16.msra.mxu0 0
      %4258 = vmatprep.mubr.bf16.mxu0 0
      %4259 = vmatmul.mubr.bf16.gmra.mrb[0].mxu0 %v4224
      %v4260 = vpop.f32.mrb[0].mxu0
      %v4261 = vadd.f32 0.0, %v4260
      %v4262 = vpop.f32.mrb[0].mxu0
      %v4263 = vpop.f32.mrb[0].mxu0
      %v4264 = vpop.f32.mrb[0].mxu0
      %4265 = vdwg.mxu0
      %v4274 = vunpack.c.l.b16 %v4136
      %v4275 = vunpack.c.l.b16 %v4137
      %v4276 = vunpack.c.l.b16 %v4138
      %v4277 = vunpack.c.l.b16 %v4139
      %v4278 = vunpack.c.l.b16 %v4140
      %v4279 = vunpack.c.l.b16 %v4141
      %v4280 = vunpack.c.l.b16 %v4142
      %v4281 = vunpack.c.l.b16 %v4143
      %v4282 = vpack.c.b16 %v4275, %v4274
      %v4283 = vpack.c.b16 %v4277, %v4276
      %v4284 = vpack.c.b16 %v4279, %v4278
      %v4285 = vpack.c.b16 %v4281, %v4280
      %v4291 = vsel %vm3033, %v4135, 0
      %4293 = vmatprep.subr.bf16.mxu0 0
      %4294 = vmatpush1.bf16.msra.mxu0 %v4282
      %4295 = vmatprep.subr.bf16.mxu0 0
      %4296 = vmatpush1.bf16.msra.mxu0 %v4283
      %4297 = vmatprep.subr.bf16.mxu0 0
      %4298 = vmatpush1.bf16.msra.mxu0 %v4284
      %4299 = vmatprep.subr.bf16.mxu0 0
      %4300 = vmatpush1.bf16.msra.mxu0 %v4285
      %4301 = vmatprep.subr.bf16.mxu0 0
      %4302 = vmatpush1.bf16.msra.mxu0 0
      %4303 = vmatprep.subr.bf16.mxu0 0
      %4304 = vmatpush1.bf16.msra.mxu0 0
      %4305 = vmatprep.subr.bf16.mxu0 0
      %4306 = vmatpush1.bf16.msra.mxu0 0
      %4307 = vmatprep.subr.bf16.mxu0 0
      %4308 = vmatpush1.bf16.msra.mxu0 0
      %4309 = vmatprep.subr.bf16.mxu0 0
      %4310 = vmatpush1.bf16.msra.mxu0 0
      %4311 = vmatprep.subr.bf16.mxu0 0
      %4312 = vmatpush1.bf16.msra.mxu0 0
      %4313 = vmatprep.subr.bf16.mxu0 0
      %4314 = vmatpush1.bf16.msra.mxu0 0
      %4315 = vmatprep.subr.bf16.mxu0 0
      %4316 = vmatpush1.bf16.msra.mxu0 0
      %4317 = vmatprep.subr.bf16.mxu0 0
      %4318 = vmatpush1.bf16.msra.mxu0 0
      %4319 = vmatprep.subr.bf16.mxu0 0
      %4320 = vmatpush1.bf16.msra.mxu0 0
      %4321 = vmatprep.subr.bf16.mxu0 0
      %4322 = vmatpush1.bf16.msra.mxu0 0
      %4323 = vmatprep.subr.bf16.mxu0 0
      %4324 = vmatpush1.bf16.msra.mxu0 0
      %4325 = vmatprep.mubr.bf16.mxu0 0
      %4326 = vmatmul.mubr.bf16.gmra.mrb[0].mxu0 %v4291
      %v4327 = vpop.f32.mrb[0].mxu0
      %v4328 = vadd.f32 %v4261, %v4327
      %v4329 = vpop.f32.mrb[0].mxu0
      %v4330 = vpop.f32.mrb[0].mxu0
      %v4331 = vpop.f32.mrb[0].mxu0
      %4332 = vdwg.mxu0
      %s4333 = scalar_lea.vmem %s12, 4
      %v4334 = vld [vmem:[%s4333] sm:$0x3]
      %v4336 = vsel %vm1323, %v4334, 0
      %4338 = vmatprep.subr.bf16.mxu0 0
      %4339 = vmatpush1.bf16.msra.mxu0 %v4090
      %4340 = vmatprep.subr.bf16.mxu0 0
      %4341 = vmatpush1.bf16.msra.mxu0 0
      %4342 = vmatprep.subr.bf16.mxu0 0
      %4343 = vmatpush1.bf16.msra.mxu0 0
      %4344 = vmatprep.subr.bf16.mxu0 0
      %4345 = vmatpush1.bf16.msra.mxu0 0
      %4346 = vmatprep.subr.bf16.mxu0 0
      %4347 = vmatpush1.bf16.msra.mxu0 0
      %4348 = vmatprep.subr.bf16.mxu0 0
      %4349 = vmatpush1.bf16.msra.mxu0 0
      %4350 = vmatprep.subr.bf16.mxu0 0
      %4351 = vmatpush1.bf16.msra.mxu0 0
      %4352 = vmatprep.subr.bf16.mxu0 0
      %4353 = vmatpush1.bf16.msra.mxu0 0
      %4354 = vmatprep.subr.bf16.mxu0 0
      %4355 = vmatpush1.bf16.msra.mxu0 0
      %4356 = vmatprep.subr.bf16.mxu0 0
      %4357 = vmatpush1.bf16.msra.mxu0 0
      %4358 = vmatprep.subr.bf16.mxu0 0
      %4359 = vmatpush1.bf16.msra.mxu0 0
      %4360 = vmatprep.subr.bf16.mxu0 0
      %4361 = vmatpush1.bf16.msra.mxu0 0
      %4362 = vmatprep.subr.bf16.mxu0 0
      %4363 = vmatpush1.bf16.msra.mxu0 0
      %4364 = vmatprep.subr.bf16.mxu0 0
      %4365 = vmatpush1.bf16.msra.mxu0 0
      %4366 = vmatprep.subr.bf16.mxu0 0
      %4367 = vmatpush1.bf16.msra.mxu0 0
      %4368 = vmatprep.subr.bf16.mxu0 0
      %4369 = vmatpush1.bf16.msra.mxu0 0
      %4370 = vmatprep.mubr.bf16.mxu0 0
      %4371 = vmatmul.mubr.bf16.gmra.mrb[0].mxu0 %v4336
      %v4372 = vpop.f32.mrb[0].mxu0
      %v4373 = vadd.f32 0.0, %v4372
      %v4374 = vpop.f32.mrb[0].mxu0
      %v4375 = vpop.f32.mrb[0].mxu0
      %v4376 = vpop.f32.mrb[0].mxu0
      %4377 = vdwg.mxu0
      %v4378 = vpack.c.bf16 %v4373, %v4373
      %s4379 = scalar_lea.vmem %s13, 64
      %v4380 = vld [vmem:[%s4379] sm:$0xf]
      %v4381 = vld [vmem:[%s4379 + $0x4] sm:$0xf]
      %v4382 = vld [vmem:[%s4379 + $0x8] sm:$0xf]
      %v4383 = vld [vmem:[%s4379 + $0xc] sm:$0xf]
      %v4384 = vld [vmem:[%s4379 + $0x10] sm:$0xf]
      %v4385 = vld [vmem:[%s4379 + $0x14] sm:$0xf]
      %v4386 = vld [vmem:[%s4379 + $0x18] sm:$0xf]
      %v4387 = vld [vmem:[%s4379 + $0x1c] sm:$0xf]
      %v4396 = vunpack.c.l.b16 %v4380
      %v4397 = vunpack.c.l.b16 %v4381
      %v4398 = vunpack.c.l.b16 %v4382
      %v4399 = vunpack.c.l.b16 %v4383
      %v4400 = vunpack.c.l.b16 %v4384
      %v4401 = vunpack.c.l.b16 %v4385
      %v4402 = vunpack.c.l.b16 %v4386
      %v4403 = vunpack.c.l.b16 %v4387
      %v4404 = vpack.c.b16 %v4397, %v4396
      %v4405 = vpack.c.b16 %v4399, %v4398
      %v4406 = vpack.c.b16 %v4401, %v4400
      %v4407 = vpack.c.b16 %v4403, %v4402
      %v4413 = vsel %vm3033, %v4378, 0
      %4415 = vmatprep.subr.bf16.mxu0 0
      %4416 = vmatpush1.bf16.msra.mxu0 %v4404
      %4417 = vmatprep.subr.bf16.mxu0 0
      %4418 = vmatpush1.bf16.msra.mxu0 %v4405
      %4419 = vmatprep.subr.bf16.mxu0 0
      %4420 = vmatpush1.bf16.msra.mxu0 %v4406
      %4421 = vmatprep.subr.bf16.mxu0 0
      %4422 = vmatpush1.bf16.msra.mxu0 %v4407
      %4423 = vmatprep.subr.bf16.mxu0 0
      %4424 = vmatpush1.bf16.msra.mxu0 0
      %4425 = vmatprep.subr.bf16.mxu0 0
      %4426 = vmatpush1.bf16.msra.mxu0 0
      %4427 = vmatprep.subr.bf16.mxu0 0
      %4428 = vmatpush1.bf16.msra.mxu0 0
      %4429 = vmatprep.subr.bf16.mxu0 0
      %4430 = vmatpush1.bf16.msra.mxu0 0
      %4431 = vmatprep.subr.bf16.mxu0 0
      %4432 = vmatpush1.bf16.msra.mxu0 0
      %4433 = vmatprep.subr.bf16.mxu0 0
      %4434 = vmatpush1.bf16.msra.mxu0 0
      %4435 = vmatprep.subr.bf16.mxu0 0
      %4436 = vmatpush1.bf16.msra.mxu0 0
      %4437 = vmatprep.subr.bf16.mxu0 0
      %4438 = vmatpush1.bf16.msra.mxu0 0
      %4439 = vmatprep.subr.bf16.mxu0 0
      %4440 = vmatpush1.bf16.msra.mxu0 0
      %4441 = vmatprep.subr.bf16.mxu0 0
      %4442 = vmatpush1.bf16.msra.mxu0 0
      %4443 = vmatprep.subr.bf16.mxu0 0
      %4444 = vmatpush1.bf16.msra.mxu0 0
      %4445 = vmatprep.subr.bf16.mxu0 0
      %4446 = vmatpush1.bf16.msra.mxu0 0
      %4447 = vmatprep.mubr.bf16.mxu0 0
      %4448 = vmatmul.mubr.bf16.gmra.mrb[0].mxu0 %v4413
      %v4449 = vpop.f32.mrb[0].mxu0
      %v4450 = vadd.f32 0.0, %v4449
      %v4451 = vpop.f32.mrb[0].mxu0
      %v4452 = vpop.f32.mrb[0].mxu0
      %v4453 = vpop.f32.mrb[0].mxu0
      %4454 = vdwg.mxu0
      %v4455 = vadd.f32 %v4328, %v4450
      %s4456 = scalar_lea.vmem %s12, 6
      %v4457 = vld [vmem:[%s4456] sm:$0x3]
      %v4459 = vsel %vm1323, %v4457, 0
      %4461 = vmatprep.subr.bf16.mxu0 0
      %4462 = vmatpush1.bf16.msra.mxu0 %v4090
      %4463 = vmatprep.subr.bf16.mxu0 0
      %4464 = vmatpush1.bf16.msra.mxu0 0
      %4465 = vmatprep.subr.bf16.mxu0 0
      %4466 = vmatpush1.bf16.msra.mxu0 0
      %4467 = vmatprep.subr.bf16.mxu0 0
      %4468 = vmatpush1.bf16.msra.mxu0 0
      %4469 = vmatprep.subr.bf16.mxu0 0
      %4470 = vmatpush1.bf16.msra.mxu0 0
      %4471 = vmatprep.subr.bf16.mxu0 0
      %4472 = vmatpush1.bf16.msra.mxu0 0
      %4473 = vmatprep.subr.bf16.mxu0 0
      %4474 = vmatpush1.bf16.msra.mxu0 0
      %4475 = vmatprep.subr.bf16.mxu0 0
      %4476 = vmatpush1.bf16.msra.mxu0 0
      %4477 = vmatprep.subr.bf16.mxu0 0
      %4478 = vmatpush1.bf16.msra.mxu0 0
      %4479 = vmatprep.subr.bf16.mxu0 0
      %4480 = vmatpush1.bf16.msra.mxu0 0
      %4481 = vmatprep.subr.bf16.mxu0 0
      %4482 = vmatpush1.bf16.msra.mxu0 0
      %4483 = vmatprep.subr.bf16.mxu0 0
      %4484 = vmatpush1.bf16.msra.mxu0 0
      %4485 = vmatprep.subr.bf16.mxu0 0
      %4486 = vmatpush1.bf16.msra.mxu0 0
      %4487 = vmatprep.subr.bf16.mxu0 0
      %4488 = vmatpush1.bf16.msra.mxu0 0
      %4489 = vmatprep.subr.bf16.mxu0 0
      %4490 = vmatpush1.bf16.msra.mxu0 0
      %4491 = vmatprep.subr.bf16.mxu0 0
      %4492 = vmatpush1.bf16.msra.mxu0 0
      %4493 = vmatprep.mubr.bf16.mxu0 0
      %4494 = vmatmul.mubr.bf16.gmra.mrb[0].mxu0 %v4459
      %v4495 = vpop.f32.mrb[0].mxu0
      %v4496 = vadd.f32 0.0, %v4495
      %v4497 = vpop.f32.mrb[0].mxu0
      %v4498 = vpop.f32.mrb[0].mxu0
      %v4499 = vpop.f32.mrb[0].mxu0
      %4500 = vdwg.mxu0
      %v4501 = vpack.c.bf16 %v4496, %v4496
      %s4502 = scalar_lea.vmem %s13, 96
      %v4503 = vld [vmem:[%s4502] sm:$0xf]
      %v4504 = vld [vmem:[%s4502 + $0x4] sm:$0xf]
      %v4505 = vld [vmem:[%s4502 + $0x8] sm:$0xf]
      %v4506 = vld [vmem:[%s4502 + $0xc] sm:$0xf]
      %v4507 = vld [vmem:[%s4502 + $0x10] sm:$0xf]
      %v4508 = vld [vmem:[%s4502 + $0x14] sm:$0xf]
      %v4509 = vld [vmem:[%s4502 + $0x18] sm:$0xf]
      %v4510 = vld [vmem:[%s4502 + $0x1c] sm:$0xf]
      %v4519 = vunpack.c.l.b16 %v4503
      %v4520 = vunpack.c.l.b16 %v4504
      %v4521 = vunpack.c.l.b16 %v4505
      %v4522 = vunpack.c.l.b16 %v4506
      %v4523 = vunpack.c.l.b16 %v4507
      %v4524 = vunpack.c.l.b16 %v4508
      %v4525 = vunpack.c.l.b16 %v4509
      %v4526 = vunpack.c.l.b16 %v4510
      %v4527 = vpack.c.b16 %v4520, %v4519
      %v4528 = vpack.c.b16 %v4522, %v4521
      %v4529 = vpack.c.b16 %v4524, %v4523
      %v4530 = vpack.c.b16 %v4526, %v4525
      %v4536 = vsel %vm3033, %v4501, 0
      %4538 = vmatprep.subr.bf16.mxu0 0
      %4539 = vmatpush1.bf16.msra.mxu0 %v4527
      %4540 = vmatprep.subr.bf16.mxu0 0
      %4541 = vmatpush1.bf16.msra.mxu0 %v4528
      %4542 = vmatprep.subr.bf16.mxu0 0
      %4543 = vmatpush1.bf16.msra.mxu0 %v4529
      %4544 = vmatprep.subr.bf16.mxu0 0
      %4545 = vmatpush1.bf16.msra.mxu0 %v4530
      %4546 = vmatprep.subr.bf16.mxu0 0
      %4547 = vmatpush1.bf16.msra.mxu0 0
      %4548 = vmatprep.subr.bf16.mxu0 0
      %4549 = vmatpush1.bf16.msra.mxu0 0
      %4550 = vmatprep.subr.bf16.mxu0 0
      %4551 = vmatpush1.bf16.msra.mxu0 0
      %4552 = vmatprep.subr.bf16.mxu0 0
      %4553 = vmatpush1.bf16.msra.mxu0 0
      %4554 = vmatprep.subr.bf16.mxu0 0
      %4555 = vmatpush1.bf16.msra.mxu0 0
      %4556 = vmatprep.subr.bf16.mxu0 0
      %4557 = vmatpush1.bf16.msra.mxu0 0
      %4558 = vmatprep.subr.bf16.mxu0 0
      %4559 = vmatpush1.bf16.msra.mxu0 0
      %4560 = vmatprep.subr.bf16.mxu0 0
      %4561 = vmatpush1.bf16.msra.mxu0 0
      %4562 = vmatprep.subr.bf16.mxu0 0
      %4563 = vmatpush1.bf16.msra.mxu0 0
      %4564 = vmatprep.subr.bf16.mxu0 0
      %4565 = vmatpush1.bf16.msra.mxu0 0
      %4566 = vmatprep.subr.bf16.mxu0 0
      %4567 = vmatpush1.bf16.msra.mxu0 0
      %4568 = vmatprep.subr.bf16.mxu0 0
      %4569 = vmatpush1.bf16.msra.mxu0 0
      %4570 = vmatprep.mubr.bf16.mxu0 0
      %4571 = vmatmul.mubr.bf16.gmra.mrb[0].mxu0 %v4536
      %v4572 = vpop.f32.mrb[0].mxu0
      %v4573 = vadd.f32 0.0, %v4572
      %v4574 = vpop.f32.mrb[0].mxu0
      %v4575 = vpop.f32.mrb[0].mxu0
      %v4576 = vpop.f32.mrb[0].mxu0
      %4577 = vdwg.mxu0
      %v4578 = vadd.f32 %v4455, %v4573
      %s4579 = scalar_lea.vmem %s12, 8
      %v4580 = vld [vmem:[%s4579] sm:$0x3]
      %v4582 = vsel %vm1323, %v4580, 0
      %4584 = vmatprep.subr.bf16.mxu0 0
      %4585 = vmatpush1.bf16.msra.mxu0 %v4090
      %4586 = vmatprep.subr.bf16.mxu0 0
      %4587 = vmatpush1.bf16.msra.mxu0 0
      %4588 = vmatprep.subr.bf16.mxu0 0
      %4589 = vmatpush1.bf16.msra.mxu0 0
      %4590 = vmatprep.subr.bf16.mxu0 0
      %4591 = vmatpush1.bf16.msra.mxu0 0
      %4592 = vmatprep.subr.bf16.mxu0 0
      %4593 = vmatpush1.bf16.msra.mxu0 0
      %4594 = vmatprep.subr.bf16.mxu0 0
      %4595 = vmatpush1.bf16.msra.mxu0 0
      %4596 = vmatprep.subr.bf16.mxu0 0
      %4597 = vmatpush1.bf16.msra.mxu0 0
      %4598 = vmatprep.subr.bf16.mxu0 0
      %4599 = vmatpush1.bf16.msra.mxu0 0
      %4600 = vmatprep.subr.bf16.mxu0 0
      %4601 = vmatpush1.bf16.msra.mxu0 0
      %4602 = vmatprep.subr.bf16.mxu0 0
      %4603 = vmatpush1.bf16.msra.mxu0 0
      %4604 = vmatprep.subr.bf16.mxu0 0
      %4605 = vmatpush1.bf16.msra.mxu0 0
      %4606 = vmatprep.subr.bf16.mxu0 0
      %4607 = vmatpush1.bf16.msra.mxu0 0
      %4608 = vmatprep.subr.bf16.mxu0 0
      %4609 = vmatpush1.bf16.msra.mxu0 0
      %4610 = vmatprep.subr.bf16.mxu0 0
      %4611 = vmatpush1.bf16.msra.mxu0 0
      %4612 = vmatprep.subr.bf16.mxu0 0
      %4613 = vmatpush1.bf16.msra.mxu0 0
      %4614 = vmatprep.subr.bf16.mxu0 0
      %4615 = vmatpush1.bf16.msra.mxu0 0
      %4616 = vmatprep.mubr.bf16.mxu0 0
      %4617 = vmatmul.mubr.bf16.gmra.mrb[0].mxu0 %v4582
      %v4618 = vpop.f32.mrb[0].mxu0
      %v4619 = vadd.f32 0.0, %v4618
      %v4620 = vpop.f32.mrb[0].mxu0
      %v4621 = vpop.f32.mrb[0].mxu0
      %v4622 = vpop.f32.mrb[0].mxu0
      %4623 = vdwg.mxu0
      %v4624 = vpack.c.bf16 %v4619, %v4619
      %s4625 = scalar_lea.vmem %s13, 128
      %v4626 = vld [vmem:[%s4625] sm:$0xf]
      %v4627 = vld [vmem:[%s4625 + $0x4] sm:$0xf]
      %v4628 = vld [vmem:[%s4625 + $0x8] sm:$0xf]
      %v4629 = vld [vmem:[%s4625 + $0xc] sm:$0xf]
      %v4630 = vld [vmem:[%s4625 + $0x10] sm:$0xf]
      %v4631 = vld [vmem:[%s4625 + $0x14] sm:$0xf]
      %v4632 = vld [vmem:[%s4625 + $0x18] sm:$0xf]
      %v4633 = vld [vmem:[%s4625 + $0x1c] sm:$0xf]
      %v4642 = vunpack.c.l.b16 %v4626
      %v4643 = vunpack.c.l.b16 %v4627
      %v4644 = vunpack.c.l.b16 %v4628
      %v4645 = vunpack.c.l.b16 %v4629
      %v4646 = vunpack.c.l.b16 %v4630
      %v4647 = vunpack.c.l.b16 %v4631
      %v4648 = vunpack.c.l.b16 %v4632
      %v4649 = vunpack.c.l.b16 %v4633
      %v4650 = vpack.c.b16 %v4643, %v4642
      %v4651 = vpack.c.b16 %v4645, %v4644
      %v4652 = vpack.c.b16 %v4647, %v4646
      %v4653 = vpack.c.b16 %v4649, %v4648
      %v4659 = vsel %vm3033, %v4624, 0
      %4661 = vmatprep.subr.bf16.mxu0 0
      %4662 = vmatpush1.bf16.msra.mxu0 %v4650
      %4663 = vmatprep.subr.bf16.mxu0 0
      %4664 = vmatpush1.bf16.msra.mxu0 %v4651
      %4665 = vmatprep.subr.bf16.mxu0 0
      %4666 = vmatpush1.bf16.msra.mxu0 %v4652
      %4667 = vmatprep.subr.bf16.mxu0 0
      %4668 = vmatpush1.bf16.msra.mxu0 %v4653
      %4669 = vmatprep.subr.bf16.mxu0 0
      %4670 = vmatpush1.bf16.msra.mxu0 0
      %4671 = vmatprep.subr.bf16.mxu0 0
      %4672 = vmatpush1.bf16.msra.mxu0 0
      %4673 = vmatprep.subr.bf16.mxu0 0
      %4674 = vmatpush1.bf16.msra.mxu0 0
      %4675 = vmatprep.subr.bf16.mxu0 0
      %4676 = vmatpush1.bf16.msra.mxu0 0
      %4677 = vmatprep.subr.bf16.mxu0 0
      %4678 = vmatpush1.bf16.msra.mxu0 0
      %4679 = vmatprep.subr.bf16.mxu0 0
      %4680 = vmatpush1.bf16.msra.mxu0 0
      %4681 = vmatprep.subr.bf16.mxu0 0
      %4682 = vmatpush1.bf16.msra.mxu0 0
      %4683 = vmatprep.subr.bf16.mxu0 0
      %4684 = vmatpush1.bf16.msra.mxu0 0
      %4685 = vmatprep.subr.bf16.mxu0 0
      %4686 = vmatpush1.bf16.msra.mxu0 0
      %4687 = vmatprep.subr.bf16.mxu0 0
      %4688 = vmatpush1.bf16.msra.mxu0 0
      %4689 = vmatprep.subr.bf16.mxu0 0
      %4690 = vmatpush1.bf16.msra.mxu0 0
      %4691 = vmatprep.subr.bf16.mxu0 0
      %4692 = vmatpush1.bf16.msra.mxu0 0
      %4693 = vmatprep.mubr.bf16.mxu0 0
      %4694 = vmatmul.mubr.bf16.gmra.mrb[0].mxu0 %v4659
      %v4695 = vpop.f32.mrb[0].mxu0
      %v4696 = vadd.f32 0.0, %v4695
      %v4697 = vpop.f32.mrb[0].mxu0
      %v4698 = vpop.f32.mrb[0].mxu0
      %v4699 = vpop.f32.mrb[0].mxu0
      %4700 = vdwg.mxu0
      %v4701 = vadd.f32 %v4578, %v4696
      %s4702 = scalar_lea.vmem %s12, 10
      %v4703 = vld [vmem:[%s4702] sm:$0x3]
      %v4705 = vsel %vm1323, %v4703, 0
      %4707 = vmatprep.subr.bf16.mxu0 0
      %4708 = vmatpush1.bf16.msra.mxu0 %v4090
      %4709 = vmatprep.subr.bf16.mxu0 0
      %4710 = vmatpush1.bf16.msra.mxu0 0
      %4711 = vmatprep.subr.bf16.mxu0 0
      %4712 = vmatpush1.bf16.msra.mxu0 0
      %4713 = vmatprep.subr.bf16.mxu0 0
      %4714 = vmatpush1.bf16.msra.mxu0 0
      %4715 = vmatprep.subr.bf16.mxu0 0
      %4716 = vmatpush1.bf16.msra.mxu0 0
      %4717 = vmatprep.subr.bf16.mxu0 0
      %4718 = vmatpush1.bf16.msra.mxu0 0
      %4719 = vmatprep.subr.bf16.mxu0 0
      %4720 = vmatpush1.bf16.msra.mxu0 0
      %4721 = vmatprep.subr.bf16.mxu0 0
      %4722 = vmatpush1.bf16.msra.mxu0 0
      %4723 = vmatprep.subr.bf16.mxu0 0
      %4724 = vmatpush1.bf16.msra.mxu0 0
      %4725 = vmatprep.subr.bf16.mxu0 0
      %4726 = vmatpush1.bf16.msra.mxu0 0
      %4727 = vmatprep.subr.bf16.mxu0 0
      %4728 = vmatpush1.bf16.msra.mxu0 0
      %4729 = vmatprep.subr.bf16.mxu0 0
      %4730 = vmatpush1.bf16.msra.mxu0 0
      %4731 = vmatprep.subr.bf16.mxu0 0
      %4732 = vmatpush1.bf16.msra.mxu0 0
      %4733 = vmatprep.subr.bf16.mxu0 0
      %4734 = vmatpush1.bf16.msra.mxu0 0
      %4735 = vmatprep.subr.bf16.mxu0 0
      %4736 = vmatpush1.bf16.msra.mxu0 0
      %4737 = vmatprep.subr.bf16.mxu0 0
      %4738 = vmatpush1.bf16.msra.mxu0 0
      %4739 = vmatprep.mubr.bf16.mxu0 0
      %4740 = vmatmul.mubr.bf16.gmra.mrb[0].mxu0 %v4705
      %v4741 = vpop.f32.mrb[0].mxu0
      %v4742 = vadd.f32 0.0, %v4741
      %v4743 = vpop.f32.mrb[0].mxu0
      %v4744 = vpop.f32.mrb[0].mxu0
      %v4745 = vpop.f32.mrb[0].mxu0
      %4746 = vdwg.mxu0
      %v4747 = vpack.c.bf16 %v4742, %v4742
      %s4748 = scalar_lea.vmem %s13, 160
      %v4749 = vld [vmem:[%s4748] sm:$0xf]
      %v4750 = vld [vmem:[%s4748 + $0x4] sm:$0xf]
      %v4751 = vld [vmem:[%s4748 + $0x8] sm:$0xf]
      %v4752 = vld [vmem:[%s4748 + $0xc] sm:$0xf]
      %v4753 = vld [vmem:[%s4748 + $0x10] sm:$0xf]
      %v4754 = vld [vmem:[%s4748 + $0x14] sm:$0xf]
      %v4755 = vld [vmem:[%s4748 + $0x18] sm:$0xf]
      %v4756 = vld [vmem:[%s4748 + $0x1c] sm:$0xf]
      %v4765 = vunpack.c.l.b16 %v4749
      %v4766 = vunpack.c.l.b16 %v4750
      %v4767 = vunpack.c.l.b16 %v4751
      %v4768 = vunpack.c.l.b16 %v4752
      %v4769 = vunpack.c.l.b16 %v4753
      %v4770 = vunpack.c.l.b16 %v4754
      %v4771 = vunpack.c.l.b16 %v4755
      %v4772 = vunpack.c.l.b16 %v4756
      %v4773 = vpack.c.b16 %v4766, %v4765
      %v4774 = vpack.c.b16 %v4768, %v4767
      %v4775 = vpack.c.b16 %v4770, %v4769
      %v4776 = vpack.c.b16 %v4772, %v4771
      %v4782 = vsel %vm3033, %v4747, 0
      %4784 = vmatprep.subr.bf16.mxu0 0
      %4785 = vmatpush1.bf16.msra.mxu0 %v4773
      %4786 = vmatprep.subr.bf16.mxu0 0
      %4787 = vmatpush1.bf16.msra.mxu0 %v4774
      %4788 = vmatprep.subr.bf16.mxu0 0
      %4789 = vmatpush1.bf16.msra.mxu0 %v4775
      %4790 = vmatprep.subr.bf16.mxu0 0
      %4791 = vmatpush1.bf16.msra.mxu0 %v4776
      %4792 = vmatprep.subr.bf16.mxu0 0
      %4793 = vmatpush1.bf16.msra.mxu0 0
      %4794 = vmatprep.subr.bf16.mxu0 0
      %4795 = vmatpush1.bf16.msra.mxu0 0
      %4796 = vmatprep.subr.bf16.mxu0 0
      %4797 = vmatpush1.bf16.msra.mxu0 0
      %4798 = vmatprep.subr.bf16.mxu0 0
      %4799 = vmatpush1.bf16.msra.mxu0 0
      %4800 = vmatprep.subr.bf16.mxu0 0
      %4801 = vmatpush1.bf16.msra.mxu0 0
      %4802 = vmatprep.subr.bf16.mxu0 0
      %4803 = vmatpush1.bf16.msra.mxu0 0
      %4804 = vmatprep.subr.bf16.mxu0 0
      %4805 = vmatpush1.bf16.msra.mxu0 0
      %4806 = vmatprep.subr.bf16.mxu0 0
      %4807 = vmatpush1.bf16.msra.mxu0 0
      %4808 = vmatprep.subr.bf16.mxu0 0
      %4809 = vmatpush1.bf16.msra.mxu0 0
      %4810 = vmatprep.subr.bf16.mxu0 0
      %4811 = vmatpush1.bf16.msra.mxu0 0
      %4812 = vmatprep.subr.bf16.mxu0 0
      %4813 = vmatpush1.bf16.msra.mxu0 0
      %4814 = vmatprep.subr.bf16.mxu0 0
      %4815 = vmatpush1.bf16.msra.mxu0 0
      %4816 = vmatprep.mubr.bf16.mxu0 0
      %4817 = vmatmul.mubr.bf16.gmra.mrb[0].mxu0 %v4782
      %v4818 = vpop.f32.mrb[0].mxu0
      %v4819 = vadd.f32 0.0, %v4818
      %v4820 = vpop.f32.mrb[0].mxu0
      %v4821 = vpop.f32.mrb[0].mxu0
      %v4822 = vpop.f32.mrb[0].mxu0
      %4823 = vdwg.mxu0
      %v4824 = vadd.f32 %v4701, %v4819
      %s4825 = scalar_lea.vmem %s12, 12
      %v4826 = vld [vmem:[%s4825] sm:$0x3]
      %v4828 = vsel %vm1323, %v4826, 0
      %4830 = vmatprep.subr.bf16.mxu0 0
      %4831 = vmatpush1.bf16.msra.mxu0 %v4090
      %4832 = vmatprep.subr.bf16.mxu0 0
      %4833 = vmatpush1.bf16.msra.mxu0 0
      %4834 = vmatprep.subr.bf16.mxu0 0
      %4835 = vmatpush1.bf16.msra.mxu0 0
      %4836 = vmatprep.subr.bf16.mxu0 0
      %4837 = vmatpush1.bf16.msra.mxu0 0
      %4838 = vmatprep.subr.bf16.mxu0 0
      %4839 = vmatpush1.bf16.msra.mxu0 0
      %4840 = vmatprep.subr.bf16.mxu0 0
      %4841 = vmatpush1.bf16.msra.mxu0 0
      %4842 = vmatprep.subr.bf16.mxu0 0
      %4843 = vmatpush1.bf16.msra.mxu0 0
      %4844 = vmatprep.subr.bf16.mxu0 0
      %4845 = vmatpush1.bf16.msra.mxu0 0
      %4846 = vmatprep.subr.bf16.mxu0 0
      %4847 = vmatpush1.bf16.msra.mxu0 0
      %4848 = vmatprep.subr.bf16.mxu0 0
      %4849 = vmatpush1.bf16.msra.mxu0 0
      %4850 = vmatprep.subr.bf16.mxu0 0
      %4851 = vmatpush1.bf16.msra.mxu0 0
      %4852 = vmatprep.subr.bf16.mxu0 0
      %4853 = vmatpush1.bf16.msra.mxu0 0
      %4854 = vmatprep.subr.bf16.mxu0 0
      %4855 = vmatpush1.bf16.msra.mxu0 0
      %4856 = vmatprep.subr.bf16.mxu0 0
      %4857 = vmatpush1.bf16.msra.mxu0 0
      %4858 = vmatprep.subr.bf16.mxu0 0
      %4859 = vmatpush1.bf16.msra.mxu0 0
      %4860 = vmatprep.subr.bf16.mxu0 0
      %4861 = vmatpush1.bf16.msra.mxu0 0
      %4862 = vmatprep.mubr.bf16.mxu0 0
      %4863 = vmatmul.mubr.bf16.gmra.mrb[0].mxu0 %v4828
      %v4864 = vpop.f32.mrb[0].mxu0
      %v4865 = vadd.f32 0.0, %v4864
      %v4866 = vpop.f32.mrb[0].mxu0
      %v4867 = vpop.f32.mrb[0].mxu0
      %v4868 = vpop.f32.mrb[0].mxu0
      %4869 = vdwg.mxu0
      %v4870 = vpack.c.bf16 %v4865, %v4865
      %s4871 = scalar_lea.vmem %s13, 192
      %v4872 = vld [vmem:[%s4871] sm:$0xf]
      %v4873 = vld [vmem:[%s4871 + $0x4] sm:$0xf]
      %v4874 = vld [vmem:[%s4871 + $0x8] sm:$0xf]
      %v4875 = vld [vmem:[%s4871 + $0xc] sm:$0xf]
      %v4876 = vld [vmem:[%s4871 + $0x10] sm:$0xf]
      %v4877 = vld [vmem:[%s4871 + $0x14] sm:$0xf]
      %v4878 = vld [vmem:[%s4871 + $0x18] sm:$0xf]
      %v4879 = vld [vmem:[%s4871 + $0x1c] sm:$0xf]
      %v4888 = vunpack.c.l.b16 %v4872
      %v4889 = vunpack.c.l.b16 %v4873
      %v4890 = vunpack.c.l.b16 %v4874
      %v4891 = vunpack.c.l.b16 %v4875
      %v4892 = vunpack.c.l.b16 %v4876
      %v4893 = vunpack.c.l.b16 %v4877
      %v4894 = vunpack.c.l.b16 %v4878
      %v4895 = vunpack.c.l.b16 %v4879
      %v4896 = vpack.c.b16 %v4889, %v4888
      %v4897 = vpack.c.b16 %v4891, %v4890
      %v4898 = vpack.c.b16 %v4893, %v4892
      %v4899 = vpack.c.b16 %v4895, %v4894
      %v4905 = vsel %vm3033, %v4870, 0
      %4907 = vmatprep.subr.bf16.mxu0 0
      %4908 = vmatpush1.bf16.msra.mxu0 %v4896
      %4909 = vmatprep.subr.bf16.mxu0 0
      %4910 = vmatpush1.bf16.msra.mxu0 %v4897
      %4911 = vmatprep.subr.bf16.mxu0 0
      %4912 = vmatpush1.bf16.msra.mxu0 %v4898
      %4913 = vmatprep.subr.bf16.mxu0 0
      %4914 = vmatpush1.bf16.msra.mxu0 %v4899
      %4915 = vmatprep.subr.bf16.mxu0 0
      %4916 = vmatpush1.bf16.msra.mxu0 0
      %4917 = vmatprep.subr.bf16.mxu0 0
      %4918 = vmatpush1.bf16.msra.mxu0 0
      %4919 = vmatprep.subr.bf16.mxu0 0
      %4920 = vmatpush1.bf16.msra.mxu0 0
      %4921 = vmatprep.subr.bf16.mxu0 0
      %4922 = vmatpush1.bf16.msra.mxu0 0
      %4923 = vmatprep.subr.bf16.mxu0 0
      %4924 = vmatpush1.bf16.msra.mxu0 0
      %4925 = vmatprep.subr.bf16.mxu0 0
      %4926 = vmatpush1.bf16.msra.mxu0 0
      %4927 = vmatprep.subr.bf16.mxu0 0
      %4928 = vmatpush1.bf16.msra.mxu0 0
      %4929 = vmatprep.subr.bf16.mxu0 0
      %4930 = vmatpush1.bf16.msra.mxu0 0
      %4931 = vmatprep.subr.bf16.mxu0 0
      %4932 = vmatpush1.bf16.msra.mxu0 0
      %4933 = vmatprep.subr.bf16.mxu0 0
      %4934 = vmatpush1.bf16.msra.mxu0 0
      %4935 = vmatprep.subr.bf16.mxu0 0
      %4936 = vmatpush1.bf16.msra.mxu0 0
      %4937 = vmatprep.subr.bf16.mxu0 0
      %4938 = vmatpush1.bf16.msra.mxu0 0
      %4939 = vmatprep.mubr.bf16.mxu0 0
      %4940 = vmatmul.mubr.bf16.gmra.mrb[0].mxu0 %v4905
      %v4941 = vpop.f32.mrb[0].mxu0
      %v4942 = vadd.f32 0.0, %v4941
      %v4943 = vpop.f32.mrb[0].mxu0
      %v4944 = vpop.f32.mrb[0].mxu0
      %v4945 = vpop.f32.mrb[0].mxu0
      %4946 = vdwg.mxu0
      %v4947 = vadd.f32 %v4824, %v4942
      %s4948 = scalar_lea.vmem %s12, 14
      %v4949 = vld [vmem:[%s4948] sm:$0x3]
      %v4951 = vsel %vm1323, %v4949, 0
      %4953 = vmatprep.subr.bf16.mxu0 0
      %4954 = vmatpush1.bf16.msra.mxu0 %v4090
      %4955 = vmatprep.subr.bf16.mxu0 0
      %4956 = vmatpush1.bf16.msra.mxu0 0
      %4957 = vmatprep.subr.bf16.mxu0 0
      %4958 = vmatpush1.bf16.msra.mxu0 0
      %4959 = vmatprep.subr.bf16.mxu0 0
      %4960 = vmatpush1.bf16.msra.mxu0 0
      %4961 = vmatprep.subr.bf16.mxu0 0
      %4962 = vmatpush1.bf16.msra.mxu0 0
      %4963 = vmatprep.subr.bf16.mxu0 0
      %4964 = vmatpush1.bf16.msra.mxu0 0
      %4965 = vmatprep.subr.bf16.mxu0 0
      %4966 = vmatpush1.bf16.msra.mxu0 0
      %4967 = vmatprep.subr.bf16.mxu0 0
      %4968 = vmatpush1.bf16.msra.mxu0 0
      %4969 = vmatprep.subr.bf16.mxu0 0
      %4970 = vmatpush1.bf16.msra.mxu0 0
      %4971 = vmatprep.subr.bf16.mxu0 0
      %4972 = vmatpush1.bf16.msra.mxu0 0
      %4973 = vmatprep.subr.bf16.mxu0 0
      %4974 = vmatpush1.bf16.msra.mxu0 0
      %4975 = vmatprep.subr.bf16.mxu0 0
      %4976 = vmatpush1.bf16.msra.mxu0 0
      %4977 = vmatprep.subr.bf16.mxu0 0
      %4978 = vmatpush1.bf16.msra.mxu0 0
      %4979 = vmatprep.subr.bf16.mxu0 0
      %4980 = vmatpush1.bf16.msra.mxu0 0
      %4981 = vmatprep.subr.bf16.mxu0 0
      %4982 = vmatpush1.bf16.msra.mxu0 0
      %4983 = vmatprep.subr.bf16.mxu0 0
      %4984 = vmatpush1.bf16.msra.mxu0 0
      %4985 = vmatprep.mubr.bf16.mxu0 0
      %4986 = vmatmul.mubr.bf16.gmra.mrb[0].mxu0 %v4951
      %v4987 = vpop.f32.mrb[0].mxu0
      %v4988 = vadd.f32 0.0, %v4987
      %v4989 = vpop.f32.mrb[0].mxu0
      %v4990 = vpop.f32.mrb[0].mxu0
      %v4991 = vpop.f32.mrb[0].mxu0
      %4992 = vdwg.mxu0
      %v4993 = vpack.c.bf16 %v4988, %v4988
      %s4994 = scalar_lea.vmem %s13, 224
      %v4995 = vld [vmem:[%s4994] sm:$0xf]
      %v4996 = vld [vmem:[%s4994 + $0x4] sm:$0xf]
      %v4997 = vld [vmem:[%s4994 + $0x8] sm:$0xf]
      %v4998 = vld [vmem:[%s4994 + $0xc] sm:$0xf]
      %v4999 = vld [vmem:[%s4994 + $0x10] sm:$0xf]
      %v5000 = vld [vmem:[%s4994 + $0x14] sm:$0xf]
      %v5001 = vld [vmem:[%s4994 + $0x18] sm:$0xf]
      %v5002 = vld [vmem:[%s4994 + $0x1c] sm:$0xf]
      %v5011 = vunpack.c.l.b16 %v4995
      %v5012 = vunpack.c.l.b16 %v4996
      %v5013 = vunpack.c.l.b16 %v4997
      %v5014 = vunpack.c.l.b16 %v4998
      %v5015 = vunpack.c.l.b16 %v4999
      %v5016 = vunpack.c.l.b16 %v5000
      %v5017 = vunpack.c.l.b16 %v5001
      %v5018 = vunpack.c.l.b16 %v5002
      %v5019 = vpack.c.b16 %v5012, %v5011
      %v5020 = vpack.c.b16 %v5014, %v5013
      %v5021 = vpack.c.b16 %v5016, %v5015
      %v5022 = vpack.c.b16 %v5018, %v5017
      %v5028 = vsel %vm3033, %v4993, 0
      %5030 = vmatprep.subr.bf16.mxu0 0
      %5031 = vmatpush1.bf16.msra.mxu0 %v5019
      %5032 = vmatprep.subr.bf16.mxu0 0
      %5033 = vmatpush1.bf16.msra.mxu0 %v5020
      %5034 = vmatprep.subr.bf16.mxu0 0
      %5035 = vmatpush1.bf16.msra.mxu0 %v5021
      %5036 = vmatprep.subr.bf16.mxu0 0
      %5037 = vmatpush1.bf16.msra.mxu0 %v5022
      %5038 = vmatprep.subr.bf16.mxu0 0
      %5039 = vmatpush1.bf16.msra.mxu0 0
      %5040 = vmatprep.subr.bf16.mxu0 0
      %5041 = vmatpush1.bf16.msra.mxu0 0
      %5042 = vmatprep.subr.bf16.mxu0 0
      %5043 = vmatpush1.bf16.msra.mxu0 0
      %5044 = vmatprep.subr.bf16.mxu0 0
      %5045 = vmatpush1.bf16.msra.mxu0 0
      %5046 = vmatprep.subr.bf16.mxu0 0
      %5047 = vmatpush1.bf16.msra.mxu0 0
      %5048 = vmatprep.subr.bf16.mxu0 0
      %5049 = vmatpush1.bf16.msra.mxu0 0
      %5050 = vmatprep.subr.bf16.mxu0 0
      %5051 = vmatpush1.bf16.msra.mxu0 0
      %5052 = vmatprep.subr.bf16.mxu0 0
      %5053 = vmatpush1.bf16.msra.mxu0 0
      %5054 = vmatprep.subr.bf16.mxu0 0
      %5055 = vmatpush1.bf16.msra.mxu0 0
      %5056 = vmatprep.subr.bf16.mxu0 0
      %5057 = vmatpush1.bf16.msra.mxu0 0
      %5058 = vmatprep.subr.bf16.mxu0 0
      %5059 = vmatpush1.bf16.msra.mxu0 0
      %5060 = vmatprep.subr.bf16.mxu0 0
      %5061 = vmatpush1.bf16.msra.mxu0 0
      %5062 = vmatprep.mubr.bf16.mxu0 0
      %5063 = vmatmul.mubr.bf16.gmra.mrb[0].mxu0 %v5028
      %v5064 = vpop.f32.mrb[0].mxu0
      %v5065 = vadd.f32 0.0, %v5064
      %v5066 = vpop.f32.mrb[0].mxu0
      %v5067 = vpop.f32.mrb[0].mxu0
      %v5068 = vpop.f32.mrb[0].mxu0
      %5069 = vdwg.mxu0
      %v5070 = vadd.f32 %v4947, %v5065
      %s5071 = scalar_lea.vmem %s12, 16
      %v5072 = vld [vmem:[%s5071] sm:$0x3]
      %v5074 = vsel %vm1323, %v5072, 0
      %5076 = vmatprep.subr.bf16.mxu0 0
      %5077 = vmatpush1.bf16.msra.mxu0 %v4090
      %5078 = vmatprep.subr.bf16.mxu0 0
      %5079 = vmatpush1.bf16.msra.mxu0 0
      %5080 = vmatprep.subr.bf16.mxu0 0
      %5081 = vmatpush1.bf16.msra.mxu0 0
      %5082 = vmatprep.subr.bf16.mxu0 0
      %5083 = vmatpush1.bf16.msra.mxu0 0
      %5084 = vmatprep.subr.bf16.mxu0 0
      %5085 = vmatpush1.bf16.msra.mxu0 0
      %5086 = vmatprep.subr.bf16.mxu0 0
      %5087 = vmatpush1.bf16.msra.mxu0 0
      %5088 = vmatprep.subr.bf16.mxu0 0
      %5089 = vmatpush1.bf16.msra.mxu0 0
      %5090 = vmatprep.subr.bf16.mxu0 0
      %5091 = vmatpush1.bf16.msra.mxu0 0
      %5092 = vmatprep.subr.bf16.mxu0 0
      %5093 = vmatpush1.bf16.msra.mxu0 0
      %5094 = vmatprep.subr.bf16.mxu0 0
      %5095 = vmatpush1.bf16.msra.mxu0 0
      %5096 = vmatprep.subr.bf16.mxu0 0
      %5097 = vmatpush1.bf16.msra.mxu0 0
      %5098 = vmatprep.subr.bf16.mxu0 0
      %5099 = vmatpush1.bf16.msra.mxu0 0
      %5100 = vmatprep.subr.bf16.mxu0 0
      %5101 = vmatpush1.bf16.msra.mxu0 0
      %5102 = vmatprep.subr.bf16.mxu0 0
      %5103 = vmatpush1.bf16.msra.mxu0 0
      %5104 = vmatprep.subr.bf16.mxu0 0
      %5105 = vmatpush1.bf16.msra.mxu0 0
      %5106 = vmatprep.subr.bf16.mxu0 0
      %5107 = vmatpush1.bf16.msra.mxu0 0
      %5108 = vmatprep.mubr.bf16.mxu0 0
      %5109 = vmatmul.mubr.bf16.gmra.mrb[0].mxu0 %v5074
      %v5110 = vpop.f32.mrb[0].mxu0
      %v5111 = vadd.f32 0.0, %v5110
      %v5112 = vpop.f32.mrb[0].mxu0
      %v5113 = vpop.f32.mrb[0].mxu0
      %v5114 = vpop.f32.mrb[0].mxu0
      %5115 = vdwg.mxu0
      %v5116 = vpack.c.bf16 %v5111, %v5111
      %s5117 = scalar_lea.vmem %s13, 256
      %v5118 = vld [vmem:[%s5117] sm:$0xf]
      %v5119 = vld [vmem:[%s5117 + $0x4] sm:$0xf]
      %v5120 = vld [vmem:[%s5117 + $0x8] sm:$0xf]
      %v5121 = vld [vmem:[%s5117 + $0xc] sm:$0xf]
      %v5122 = vld [vmem:[%s5117 + $0x10] sm:$0xf]
      %v5123 = vld [vmem:[%s5117 + $0x14] sm:$0xf]
      %v5124 = vld [vmem:[%s5117 + $0x18] sm:$0xf]
      %v5125 = vld [vmem:[%s5117 + $0x1c] sm:$0xf]
      %v5134 = vunpack.c.l.b16 %v5118
      %v5135 = vunpack.c.l.b16 %v5119
      %v5136 = vunpack.c.l.b16 %v5120
      %v5137 = vunpack.c.l.b16 %v5121
      %v5138 = vunpack.c.l.b16 %v5122
      %v5139 = vunpack.c.l.b16 %v5123
      %v5140 = vunpack.c.l.b16 %v5124
      %v5141 = vunpack.c.l.b16 %v5125
      %v5142 = vpack.c.b16 %v5135, %v5134
      %v5143 = vpack.c.b16 %v5137, %v5136
      %v5144 = vpack.c.b16 %v5139, %v5138
      %v5145 = vpack.c.b16 %v5141, %v5140
      %v5151 = vsel %vm3033, %v5116, 0
      %5153 = vmatprep.subr.bf16.mxu0 0
      %5154 = vmatpush1.bf16.msra.mxu0 %v5142
      %5155 = vmatprep.subr.bf16.mxu0 0
      %5156 = vmatpush1.bf16.msra.mxu0 %v5143
      %5157 = vmatprep.subr.bf16.mxu0 0
      %5158 = vmatpush1.bf16.msra.mxu0 %v5144
      %5159 = vmatprep.subr.bf16.mxu0 0
      %5160 = vmatpush1.bf16.msra.mxu0 %v5145
      %5161 = vmatprep.subr.bf16.mxu0 0
      %5162 = vmatpush1.bf16.msra.mxu0 0
      %5163 = vmatprep.subr.bf16.mxu0 0
      %5164 = vmatpush1.bf16.msra.mxu0 0
      %5165 = vmatprep.subr.bf16.mxu0 0
      %5166 = vmatpush1.bf16.msra.mxu0 0
      %5167 = vmatprep.subr.bf16.mxu0 0
      %5168 = vmatpush1.bf16.msra.mxu0 0
      %5169 = vmatprep.subr.bf16.mxu0 0
      %5170 = vmatpush1.bf16.msra.mxu0 0
      %5171 = vmatprep.subr.bf16.mxu0 0
      %5172 = vmatpush1.bf16.msra.mxu0 0
      %5173 = vmatprep.subr.bf16.mxu0 0
      %5174 = vmatpush1.bf16.msra.mxu0 0
      %5175 = vmatprep.subr.bf16.mxu0 0
      %5176 = vmatpush1.bf16.msra.mxu0 0
      %5177 = vmatprep.subr.bf16.mxu0 0
      %5178 = vmatpush1.bf16.msra.mxu0 0
      %5179 = vmatprep.subr.bf16.mxu0 0
      %5180 = vmatpush1.bf16.msra.mxu0 0
      %5181 = vmatprep.subr.bf16.mxu0 0
      %5182 = vmatpush1.bf16.msra.mxu0 0
      %5183 = vmatprep.subr.bf16.mxu0 0
      %5184 = vmatpush1.bf16.msra.mxu0 0
      %5185 = vmatprep.mubr.bf16.mxu0 0
      %5186 = vmatmul.mubr.bf16.gmra.mrb[0].mxu0 %v5151
      %v5187 = vpop.f32.mrb[0].mxu0
      %v5188 = vadd.f32 0.0, %v5187
      %v5189 = vpop.f32.mrb[0].mxu0
      %v5190 = vpop.f32.mrb[0].mxu0
      %v5191 = vpop.f32.mrb[0].mxu0
      %5192 = vdwg.mxu0
      %v5193 = vadd.f32 %v5070, %v5188
      %v5194 = vld [vmem:[%s14] sm:$0x1]
      %v5195 = vld [vmem:[%s15] sm:$0x1]
      %v5197 = vlaneseq
      %v5198 = vshrl.u32 %v5197, 7
      %v5199 = vsub.s32 0, %v5198
      %v5200 = vrot.slane %v5194, %v5199
      %v5202 = vadd.f32 %v5193, %v5200
      %vm5203 = vcmp.gt.f32.partialorder %v5202, 0.0
      %v5204 = vmul.f32 %v5202, 0.2
      %v5205 = vsel %vm5203, %v5202, %v5204
      %v5207 = vlaneseq
      %v5208 = vshrl.u32 %v5207, 7
      %v5209 = vsub.s32 0, %v5208
      %v5210 = vrot.slane %v5195, %v5209
      %v5212 = vadd.f32 %v5205, %v5210
      %v5213 = vld [vmem:[%s16] sm:$0xf]
      %v5214 = vmul.f32 %v5212, %v5213
      %vm5215 = vcmask 1043456
      %v5216 = vsel %vm5215, %v5214, 0.0
      %5217 = vadd.xlane.f32.xlu0 %v5216
      %v5218 = vpop.xlane.xlu0 %5217
      %v5219 = vsel %vm5215, %v5218, 0.0
      %v5220 = vrot.slane %v5219, 4
      %v5221 = vadd.f32 %v5219, %v5220
      %v5222 = vrot.slane %v5221, 2
      %v5223 = vadd.f32 %v5221, %v5222
      %v5224 = vrot.slane %v5223, 1
      %v5225 = vadd.f32 %v5223, %v5224
      %v5226 = vld [vmem:[#allocation2] sm:$0x1]
      %v5227 = vadd.f32 %v5225, %v5226
      %v5228 = vsub.f32 0.0, %v5227
      %v5229 = vmul.f32 %v5228, 1.442695
      %v5230 = vpow.pop %v5229
      %v5231 = vadd.f32 %v5230, 1.0
      %v5232 = vrcp.pop %v5231
      %v5233 = vmax.f32 %v5232, 0.0
      %v5234 = vmin.f32 %v5233, 1.0
      %5236 = vset.pattern.permute.xlu0 0
      %5237 = vperm.xlu0 %5236, %v5234
      %v5238 = vpop.permute.xlu0 %5237
      %v5240 = vlaneseq
      %v5241 = vshrl.u32 %v5240, 7
      %v5242 = vsub.s32 0, %v5241
      %v5243 = vrot.slane %v5238, %v5242
      %5244 = vst [vmem:[%s573] sm:$0x1] %v5243
      %p5245 = scmp.lt.s32.totalorder %s31, 1
      %s5246 = scalar_select %p5245, %s31, 1
      %s5247 = scalar_lea.vmem %s18, %s5246
      // Predicated region
      $region93: #{discriminator_forward.1} parent=91 // pred_check
        %p5248 = pneg %p432
      $region94: #{discriminator_forward.1} parent=91 // pred_check_branch
        %5250 = sbr.rel (%p5248) target = $region96
      $region95: #{discriminator_forward.1} parent=91 // pred_region
        _
      $region96: #{discriminator_forward.1} parent=91 // pred_fallthru
        _
    $region92: #{discriminator_forward.1} parent=5 // pred_fallthru
      _
    %p5251 = scmp.le.s32.totalorder 2, %s26
    // Predicated region
    $region97: #{discriminator_forward.1} parent=5 // pred_check
      %p5252 = pneg %p5251
    $region98: #{discriminator_forward.1} parent=5 // pred_check_branch
      %5254 = sbr.rel (%p5252) target = $region100
    $region99: #{discriminator_forward.1} parent=5 // pred_region
      %s5255 = ssub.s32 %s26, 2
      // Predicated region
      $region101: #{discriminator_forward.1} parent=99 // pred_check
        %p5256 = pneg %p438
      $region102: #{discriminator_forward.1} parent=99 // pred_check_branch
        %5258 = sbr.rel (%p5256) target = $region104
      $region103: #{discriminator_forward.1} parent=99 // pred_region
        %p5259 = scmp.lt.s32.totalorder %s32, 1
        %s5260 = scalar_select %p5259, %s32, 1
        %s5261 = scalar_lea.vmem %s18, %s5260
      $region104: #{discriminator_forward.1} parent=99 // pred_fallthru
        _
    $region100: #{discriminator_forward.1} parent=5 // pred_fallthru
      _
  $region6: #{discriminator_forward.1} parent=0 // loop_footer
    %s30 = sadd.s32 1, %s26
  $region7: #{discriminator_forward.1} parent=0 // loop_footer_branch
    %25 = sbr.rel target = $region3
  $region8: #{discriminator_forward.1} parent=0 // loop_exit
    _

</llo_original>
